<compile_context>
chip_gen: v7x
topology: tpu7x:2x2x1
jax: 0.10.0
libtpu: 0.0.40
codegen_flags: <defaults>
</compile_context>

<pallas_src>
import functools

import jax
import jax.numpy as jnp
from jax.experimental import pallas as pl
from jax.experimental.pallas import tpu as pltpu

# ---------------- module hyper-parameters (PyTorch defaults) ----------------
INPUT_CH = 3
HIDDEN_DIM = 64
GEO_FEAT_DIM = 15
HIDDEN_DIM_COLOR = 16

SIGMA_OUT = 1 + GEO_FEAT_DIM            # 16
COLOR_IN = GEO_FEAT_DIM + 3             # 18
OUT_DIM = 1 + 3                         # 4  (sigma + rgb)
IN_DIM = INPUT_CH + 3                   # 6  (pos + dirs)
FIRST_OUT = HIDDEN_DIM + HIDDEN_DIM_COLOR  # 80 (layer-0 pre-act + dirs contrib)

TB_MAX = 4096  # max batch (points) tile on the lane axis


def _round_up(v, m):
    return ((v + m - 1) // m) * m


def _pick_tb(n):
    """Large lane tile (amortize per-step overhead + MXU weight pushes),
    but don't over-pad tiny inputs.  Lane dim must stay a multiple of 128."""
    return min(TB_MAX, _round_up(max(n, 1), 128))


# ------------------------------- kernel -------------------------------------
def _nerf_kernel(x6_ref, wfirst_ref, w1_ref, w2_ref,
                 cw0h_ref, cb0_ref, cw1_ref, cb1_ref, out_ref):
    x6 = x6_ref[...]                                              # (6, TB) bf16

    # Fused first layer: rows [0:64] = sigma-net layer-0 pre-activation
    # (pos columns only), rows [64:80] = color-net dirs contribution
    # (dirs columns only).  Both row slices are 8-sublane aligned.
    first = jnp.dot(wfirst_ref[...], x6,
                    preferred_element_type=jnp.float32)           # (80, TB) f32
    h = jnp.maximum(first[0:HIDDEN_DIM, :], 0.0)                  # (64, TB)
    dirs_c = first[HIDDEN_DIM:FIRST_OUT, :]                       # (16, TB)

    # Sigma net layers 1..2 (bias-free Linear + ReLU).
    h = jnp.maximum(
        jnp.dot(w1_ref[...], h.astype(jnp.bfloat16),
                preferred_element_type=jnp.float32), 0.0)         # (64, TB)
    h2 = jnp.maximum(
        jnp.dot(w2_ref[...], h.astype(jnp.bfloat16),
                preferred_element_type=jnp.float32), 0.0)         # (16, TB) = [sigma; feat]

    # Color net layer 0: cw0h has a zero first column, so it consumes h2
    # directly (the sigma row contributes exactly 0); dirs term is dirs_c.
    color = jnp.maximum(
        jnp.dot(cw0h_ref[...], h2.astype(jnp.bfloat16),
                preferred_element_type=jnp.float32)
        + dirs_c + cb0_ref[...], 0.0)                             # (16, TB)
    # Color net layer 1.
    color = (jnp.dot(cw1_ref[...], color.astype(jnp.bfloat16),
                     preferred_element_type=jnp.float32)
             + cb1_ref[...])                                      # (3, TB)

    # Output block (4, TB): [sigma ; rgb], two lane-dense slice stores.
    out_ref[0:1, :] = h2[0:1, :]
    out_ref[1:OUT_DIM, :] = color


# ------------------------------ weight prep ---------------------------------
def _prep_weights(params):
    """PyTorch-layout params -> kernel-layout bf16 weights (zero-cost plumbing,
    done once outside the kernel)."""
    w0, w1, w2, cw0, cb0, cw1, cb1 = params
    f32 = jnp.float32
    bf = lambda a: a.astype(jnp.bfloat16)

    # (80, 6): [ w0 (64,3) | 0 (64,3) ]
    #          [ 0  (16,3) | cw0_dir (16,3) ]
    w_first = jnp.zeros((FIRST_OUT, IN_DIM), f32)
    w_first = w_first.at[:HIDDEN_DIM, :INPUT_CH].set(w0.astype(f32))
    w_first = w_first.at[HIDDEN_DIM:, INPUT_CH:].set(
        cw0[:, GEO_FEAT_DIM:].astype(f32))

    # (16, 16): zero first column (skips the sigma row of h2) + cw0_feat.
    cw0h = jnp.concatenate(
        [jnp.zeros((HIDDEN_DIM_COLOR, 1), f32),
         cw0[:, :GEO_FEAT_DIM].astype(f32)], axis=1)

    return (bf(w_first), bf(w1), bf(w2), bf(cw0h),
            cb0.reshape(-1, 1).astype(f32),
            bf(cw1),
            cb1.reshape(-1, 1).astype(f32))


# ------------------------------ entry points --------------------------------
def nerf_small_c_forward_fm(x6, params, *, tb=None):
    """Feature-major entry point.

    x6: (6, Np) bfloat16 with Np a multiple of 128 (rows = [pos(3); dirs(3)]).
    Returns (4, Np) float32 = [sigma; rgb].  No wrapper-side relayout at all —
    use this when the producer/consumer already hold feature-major data.
    """
    f, Np = x6.shape
    assert f == IN_DIM and x6.dtype == jnp.bfloat16
    if tb is None:
        tb = _pick_tb(Np)
    assert Np % tb == 0 and tb % 128 == 0
    n_tiles = Np // tb

    wfirst, w1b, w2b, cw0h, cb0c, cw1b, cb1c = _prep_weights(params)
    wspec = lambda a: pl.BlockSpec(a.shape, lambda i: (0, 0))

    return pl.pallas_call(
        _nerf_kernel,
        out_shape=jax.ShapeDtypeStruct((OUT_DIM, Np), jnp.float32),
        grid_spec=pltpu.PrefetchScalarGridSpec(
            num_scalar_prefetch=0,
            grid=(n_tiles,),
            in_specs=[
                pl.BlockSpec((IN_DIM, tb), lambda i: (0, i)),   # combined x
                wspec(wfirst), wspec(w1b), wspec(w2b),
                wspec(cw0h), wspec(cb0c), wspec(cw1b), wspec(cb1c),
            ],
            out_specs=pl.BlockSpec((OUT_DIM, tb), lambda i: (0, i)),
        ),
        compiler_params=pltpu.CompilerParams(
            dimension_semantics=("parallel",),
            vmem_limit_bytes=32 * 1024 * 1024),
    )(x6, wfirst, w1b, w2b, cw0h, cb0c, cw1b, cb1c)


def nerf_small_c_forward(x, params, *, tb=None):
    """Module-compatible interface: x (N, 6) float32 -> (N, 4) float32
    [sigma, rgb].  Ragged N is zero-padded up to a multiple of the tile."""
    N, F = x.shape
    assert F == IN_DIM
    if tb is None:
        tb = _pick_tb(N)
    Np = _round_up(N, tb)

    # Pad + cast + transpose as one fusable chain (single relayout pass).
    if Np != N:
        x = jnp.pad(x, ((0, Np - N), (0, 0)))
    x6 = x.astype(jnp.bfloat16).T                                 # (6, Np)

    out_t = nerf_small_c_forward_fm(x6, params, tb=tb)            # (4, Np)
    return out_t.T[:N]                                            # (N, 4)


# ------------------------- reference & self-test -----------------------------
def init_params(key):
    """Deterministic synthetic parameters in PyTorch layout: W (out,in), b (out,)."""
    ks = jax.random.split(key, 7)

    def lin_w(k, fan_in, fan_out):
        bound = 1.0 / jnp.sqrt(fan_in)
        return jax.random.uniform(k, (fan_out, fan_in), jnp.float32, -bound, bound)

    def lin_b(k, fan_in, fan_out):
        bound = 1.0 / jnp.sqrt(fan_in)
        return jax.random.uniform(k, (fan_out,), jnp.float32, -bound, bound)

    w0 = lin_w(ks[0], INPUT_CH, HIDDEN_DIM)            # (64, 3)
    w1 = lin_w(ks[1], HIDDEN_DIM, HIDDEN_DIM)          # (64, 64)
    w2 = lin_w(ks[2], HIDDEN_DIM, SIGMA_OUT)           # (16, 64)
    cw0 = lin_w(ks[3], COLOR_IN, HIDDEN_DIM_COLOR)     # (16, 18)
    cb0 = lin_b(ks[4], COLOR_IN, HIDDEN_DIM_COLOR)     # (16,)
    cw1 = lin_w(ks[5], HIDDEN_DIM_COLOR, 3)            # (3, 16)
    cb1 = lin_b(ks[6], HIDDEN_DIM_COLOR, 3)            # (3,)
    # NOTE: the module also has an unused parameter `self.rgb`; it does not
    # participate in forward(), so it is omitted here.
    return (w0, w1, w2, cw0, cb0, cw1, cb1)


def nerf_small_c_reference(x, params):
    """Pure-JAX reference mirroring the module's forward (ReLU after every
    sigma-net layer, incl. the last) with the kernel's bf16-input / f32-accum
    numerics."""
    w0, w1, w2, cw0, cb0, cw1, cb1 = params
    bf = lambda a: a.astype(jnp.bfloat16)
    h = bf(x[..., :INPUT_CH])
    dirs = bf(x[..., INPUT_CH:])
    h = jnp.maximum(jnp.dot(h, bf(w0).T, preferred_element_type=jnp.float32), 0.0)
    h = jnp.maximum(jnp.dot(bf(h), bf(w1).T, preferred_element_type=jnp.float32), 0.0)
    sigma = jnp.maximum(jnp.dot(bf(h), bf(w2).T, preferred_element_type=jnp.float32), 0.0)
    color = (jnp.dot(bf(sigma[..., 1:]), bf(cw0[:, :GEO_FEAT_DIM]).T,
                     preferred_element_type=jnp.float32)
             + jnp.dot(dirs, bf(cw0[:, GEO_FEAT_DIM:]).T,
                       preferred_element_type=jnp.float32)
             + cb0)
    color = jnp.maximum(color, 0.0)
    color = jnp.dot(bf(color), bf(cw1).T, preferred_element_type=jnp.float32) + cb1
    return jnp.concatenate([sigma[..., :1], color], axis=-1)


if __name__ == "__main__":
    key = jax.random.PRNGKey(0)
    k_param, k_x = jax.random.split(key)
    params = init_params(k_param)

    N = 3000  # deliberately not a multiple of 128: exercises the padding path
    x = jax.random.normal(k_x, (N, IN_DIM), jnp.float32)

    ref = nerf_small_c_reference(x, params)

    # 1) Default (large adaptive tile, single grid step for this small N).
    out = jax.block_until_ready(nerf_small_c_forward(x, params))
    assert out.shape == (N, OUT_DIM)
    assert jnp.allclose(out, ref, atol=1e-2, rtol=1e-2), "mismatch (default tile)"

    # 2) Forced smaller tile: exercises the multi-tile grid + megacore path.
    out_small = jax.block_until_ready(nerf_small_c_forward(x, params, tb=1024))
    assert jnp.allclose(out_small, ref, atol=1e-2, rtol=1e-2), "mismatch (tb=1024)"

    print("KERNEL_OK")
</pallas_src>

<mosaic_0001>
module attributes {stable_mosaic.version = 11 : i64} {
  func.func @_nerf_kernel(%arg0: i32, %arg1: memref<6x3072xbf16, #tpu.memory_space<vmem>>, %arg2: memref<80x6xbf16, #tpu.memory_space<vmem>>, %arg3: memref<64x64xbf16, #tpu.memory_space<vmem>>, %arg4: memref<16x64xbf16, #tpu.memory_space<vmem>>, %arg5: memref<16x16xbf16, #tpu.memory_space<vmem>>, %arg6: memref<16x1xf32, #tpu.memory_space<vmem>>, %arg7: memref<3x16xbf16, #tpu.memory_space<vmem>>, %arg8: memref<3x1xf32, #tpu.memory_space<vmem>>, %arg9: memref<4x3072xf32, #tpu.memory_space<vmem>>) attributes {dimension_semantics = [#tpu.dimension_semantics<parallel>], iteration_bounds = array<i64: 1>, scalar_prefetch = 0 : i64, scratch_operands = 0 : i64, tpu.core_type = #tpu.core_type<tc>, window_params = [{transform_indices = @transform_0, window_bounds = array<i64: 6, 3072>}, {pipeline_mode = #tpu.pipeline_mode<synchronous>, transform_indices = @transform_1, window_bounds = array<i64: 80, 6>}, {pipeline_mode = #tpu.pipeline_mode<synchronous>, transform_indices = @transform_2, window_bounds = array<i64: 64, 64>}, {pipeline_mode = #tpu.pipeline_mode<synchronous>, transform_indices = @transform_3, window_bounds = array<i64: 16, 64>}, {pipeline_mode = #tpu.pipeline_mode<synchronous>, transform_indices = @transform_4, window_bounds = array<i64: 16, 16>}, {pipeline_mode = #tpu.pipeline_mode<synchronous>, transform_indices = @transform_5, window_bounds = array<i64: 16, 1>}, {pipeline_mode = #tpu.pipeline_mode<synchronous>, transform_indices = @transform_6, window_bounds = array<i64: 3, 16>}, {pipeline_mode = #tpu.pipeline_mode<synchronous>, transform_indices = @transform_7, window_bounds = array<i64: 3, 1>}, {transform_indices = @transform_8, window_bounds = array<i64: 4, 3072>}]} {
    %c0 = arith.constant 0 : index
    %c0_0 = arith.constant 0 : index
    %0 = vector.load %arg1[%c0, %c0_0] : memref<6x3072xbf16, #tpu.memory_space<vmem>>, vector<6x3072xbf16>
    %c0_1 = arith.constant 0 : index
    %c0_2 = arith.constant 0 : index
    %1 = vector.load %arg2[%c0_1, %c0_2] : memref<80x6xbf16, #tpu.memory_space<vmem>>, vector<80x6xbf16>
    %cst = arith.constant dense<0.000000e+00> : vector<80x3072xf32>
    %2 = tpu.matmul %1, %0, %cst {dimension_numbers = #tpu.dot_dimension_numbers<[1], [0], [0], [1], [0, 0, 1, 1], [], []>} : vector<80x6xbf16>, vector<6x3072xbf16>, vector<80x3072xf32> -> vector<80x3072xf32>
    %3 = vector.extract_strided_slice %2 {offsets = [0, 0], sizes = [64, 3072], strides = [1, 1]} : vector<80x3072xf32> to vector<64x3072xf32>
    %cst_3 = arith.constant 0.000000e+00 : f32
    %4 = vector.broadcast %cst_3 : f32 to vector<64x3072xf32>
    %5 = arith.maximumf %3, %4 : vector<64x3072xf32>
    %6 = vector.extract_strided_slice %2 {offsets = [64, 0], sizes = [16, 3072], strides = [1, 1]} : vector<80x3072xf32> to vector<16x3072xf32>
    %c0_4 = arith.constant 0 : index
    %c0_5 = arith.constant 0 : index
    %7 = vector.load %arg3[%c0_4, %c0_5] : memref<64x64xbf16, #tpu.memory_space<vmem>>, vector<64x64xbf16>
    %8 = arith.truncf %5 : vector<64x3072xf32> to vector<64x3072xbf16>
    %cst_6 = arith.constant dense<0.000000e+00> : vector<64x3072xf32>
    %9 = tpu.matmul %7, %8, %cst_6 {dimension_numbers = #tpu.dot_dimension_numbers<[1], [0], [0], [1], [0, 0, 1, 1], [], []>} : vector<64x64xbf16>, vector<64x3072xbf16>, vector<64x3072xf32> -> vector<64x3072xf32>
    %cst_7 = arith.constant 0.000000e+00 : f32
    %10 = vector.broadcast %cst_7 : f32 to vector<64x3072xf32>
    %11 = arith.maximumf %9, %10 : vector<64x3072xf32>
    %c0_8 = arith.constant 0 : index
    %c0_9 = arith.constant 0 : index
    %12 = vector.load %arg4[%c0_8, %c0_9] : memref<16x64xbf16, #tpu.memory_space<vmem>>, vector<16x64xbf16>
    %13 = arith.truncf %11 : vector<64x3072xf32> to vector<64x3072xbf16>
    %cst_10 = arith.constant dense<0.000000e+00> : vector<16x3072xf32>
    %14 = tpu.matmul %12, %13, %cst_10 {dimension_numbers = #tpu.dot_dimension_numbers<[1], [0], [0], [1], [0, 0, 1, 1], [], []>} : vector<16x64xbf16>, vector<64x3072xbf16>, vector<16x3072xf32> -> vector<16x3072xf32>
    %cst_11 = arith.constant 0.000000e+00 : f32
    %15 = vector.broadcast %cst_11 : f32 to vector<16x3072xf32>
    %16 = arith.maximumf %14, %15 : vector<16x3072xf32>
    %c0_12 = arith.constant 0 : index
    %c0_13 = arith.constant 0 : index
    %17 = vector.load %arg5[%c0_12, %c0_13] : memref<16x16xbf16, #tpu.memory_space<vmem>>, vector<16x16xbf16>
    %18 = arith.truncf %16 : vector<16x3072xf32> to vector<16x3072xbf16>
    %cst_14 = arith.constant dense<0.000000e+00> : vector<16x3072xf32>
    %19 = tpu.matmul %17, %18, %cst_14 {dimension_numbers = #tpu.dot_dimension_numbers<[1], [0], [0], [1], [0, 0, 1, 1], [], []>} : vector<16x16xbf16>, vector<16x3072xbf16>, vector<16x3072xf32> -> vector<16x3072xf32>
    %20 = arith.addf %19, %6 : vector<16x3072xf32>
    %c0_15 = arith.constant 0 : index
    %c0_16 = arith.constant 0 : index
    %21 = vector.load %arg6[%c0_15, %c0_16] : memref<16x1xf32, #tpu.memory_space<vmem>>, vector<16x1xf32>
    %22 = vector.broadcast %21 : vector<16x1xf32> to vector<16x3072xf32>
    %23 = arith.addf %20, %22 : vector<16x3072xf32>
    %cst_17 = arith.constant 0.000000e+00 : f32
    %24 = vector.broadcast %cst_17 : f32 to vector<16x3072xf32>
    %25 = arith.maximumf %23, %24 : vector<16x3072xf32>
    %c0_18 = arith.constant 0 : index
    %c0_19 = arith.constant 0 : index
    %26 = vector.load %arg7[%c0_18, %c0_19] : memref<3x16xbf16, #tpu.memory_space<vmem>>, vector<3x16xbf16>
    %27 = arith.truncf %25 : vector<16x3072xf32> to vector<16x3072xbf16>
    %cst_20 = arith.constant dense<0.000000e+00> : vector<3x3072xf32>
    %28 = tpu.matmul %26, %27, %cst_20 {dimension_numbers = #tpu.dot_dimension_numbers<[1], [0], [0], [1], [0, 0, 1, 1], [], []>} : vector<3x16xbf16>, vector<16x3072xbf16>, vector<3x3072xf32> -> vector<3x3072xf32>
    %c0_21 = arith.constant 0 : index
    %c0_22 = arith.constant 0 : index
    %29 = vector.load %arg8[%c0_21, %c0_22] : memref<3x1xf32, #tpu.memory_space<vmem>>, vector<3x1xf32>
    %30 = vector.broadcast %29 : vector<3x1xf32> to vector<3x3072xf32>
    %31 = arith.addf %28, %30 : vector<3x3072xf32>
    %32 = vector.extract_strided_slice %16 {offsets = [0, 0], sizes = [1, 3072], strides = [1, 1]} : vector<16x3072xf32> to vector<1x3072xf32>
    %c0_23 = arith.constant 0 : index
    %c0_24 = arith.constant 0 : index
    %33 = vector.load %arg9[%c0_23, %c0_24] : memref<4x3072xf32, #tpu.memory_space<vmem>>, vector<1x3072xf32>
    tpu.vector_store %arg9[%c0_23, %c0_24], %32 {strides = array<i32>} : memref<4x3072xf32, #tpu.memory_space<vmem>>, vector<1x3072xf32>,
    %c1 = arith.constant 1 : index
    %c0_25 = arith.constant 0 : index
    %34 = vector.load %arg9[%c1, %c0_25] : memref<4x3072xf32, #tpu.memory_space<vmem>>, vector<3x3072xf32>
    tpu.vector_store %arg9[%c1, %c0_25], %31 {strides = array<i32>} : memref<4x3072xf32, #tpu.memory_space<vmem>>, vector<3x3072xf32>,
    return
  }
  func.func @transform_0(%arg0: i32) -> (i32, i32) {
    %c0_i32 = arith.constant 0 : i32
    %c0_i32_0 = arith.constant 0 : i32
    return %c0_i32, %arg0 : i32, i32
  }
  func.func @transform_1(%arg0: i32) -> (i32, i32) {
    %c0_i32 = arith.constant 0 : i32
    %c0_i32_0 = arith.constant 0 : i32
    %c0_i32_1 = arith.constant 0 : i32
    return %c0_i32, %c0_i32_0 : i32, i32
  }
  func.func @transform_2(%arg0: i32) -> (i32, i32) {
    %c0_i32 = arith.constant 0 : i32
    %c0_i32_0 = arith.constant 0 : i32
    %c0_i32_1 = arith.constant 0 : i32
    return %c0_i32, %c0_i32_0 : i32, i32
  }
  func.func @transform_3(%arg0: i32) -> (i32, i32) {
    %c0_i32 = arith.constant 0 : i32
    %c0_i32_0 = arith.constant 0 : i32
    %c0_i32_1 = arith.constant 0 : i32
    return %c0_i32, %c0_i32_0 : i32, i32
  }
  func.func @transform_4(%arg0: i32) -> (i32, i32) {
    %c0_i32 = arith.constant 0 : i32
    %c0_i32_0 = arith.constant 0 : i32
    %c0_i32_1 = arith.constant 0 : i32
    return %c0_i32, %c0_i32_0 : i32, i32
  }
  func.func @transform_5(%arg0: i32) -> (i32, i32) {
    %c0_i32 = arith.constant 0 : i32
    %c0_i32_0 = arith.constant 0 : i32
    %c0_i32_1 = arith.constant 0 : i32
    return %c0_i32, %c0_i32_0 : i32, i32
  }
  func.func @transform_6(%arg0: i32) -> (i32, i32) {
    %c0_i32 = arith.constant 0 : i32
    %c0_i32_0 = arith.constant 0 : i32
    %c0_i32_1 = arith.constant 0 : i32
    return %c0_i32, %c0_i32_0 : i32, i32
  }
  func.func @transform_7(%arg0: i32) -> (i32, i32) {
    %c0_i32 = arith.constant 0 : i32
    %c0_i32_0 = arith.constant 0 : i32
    %c0_i32_1 = arith.constant 0 : i32
    return %c0_i32, %c0_i32_0 : i32, i32
  }
  func.func @transform_8(%arg0: i32) -> (i32, i32) {
    %c0_i32 = arith.constant 0 : i32
    %c0_i32_0 = arith.constant 0 : i32
    return %c0_i32, %arg0 : i32, i32
  }
}

</mosaic_0001>

<llo_original>
// kernel: tpu_custom_call.1
$region0: #{tpu_custom_call.1}
  #allocation0 [shape = 'u32[]', space=smem, size = 0x4, offset = 0x4, fixed_abs, tag = 'smem constant byte address 0x4 - core index']
  #allocation1 [shape = 'u32[144,128]{1,0:T(1,128)}', space=vmem, size = 0x12000, scoped, tag = 'internal scratch']
  %s0 = inlined_call_operand.hbm [shape: bf16[6,3072], index: 0, kind: input, shape index: {}]
  %s1 = inlined_call_operand.vmem [shape: bf16[80,6], index: 1, kind: input, shape index: {}]
  %s2 = inlined_call_operand.vmem [shape: bf16[64,64], index: 2, kind: input, shape index: {}]
  %s3 = inlined_call_operand.vmem [shape: bf16[16,64], index: 3, kind: input, shape index: {}]
  %s4 = inlined_call_operand.vmem [shape: bf16[16,16], index: 4, kind: input, shape index: {}]
  %s5 = inlined_call_operand.vmem [shape: f32[16,1], index: 5, kind: input, shape index: {}]
  %s6 = inlined_call_operand.vmem [shape: bf16[3,16], index: 6, kind: input, shape index: {}]
  %s7 = inlined_call_operand.vmem [shape: f32[3,1], index: 7, kind: input, shape index: {}]
  %s8 = inlined_call_operand.hbm [shape: f32[4,3072], index: 8, kind: output, shape index: {}]
  %s9 = sld [smem:[#allocation0]]
  $region46: #{tpu_custom_call.1} parent=0
    _
  %s11 = ssub.s32 1, %s9
  %s12 = scalar_select 0, %s11, %s9
  $region1: #{tpu_custom_call.1} parent=0
    #allocation2 [shape = 'u8[49152]{0}', space=vmem, size = 0xc000, scoped, tag = 'input window, operand 0, single buffered']
    #allocation3 [shape = 's32[1]{0}', space=sflag, size = 0x4, scoped, tag = 'scoped memory for tpu_custom_call.1']
    #allocation4 [shape = 's32[1]{0}', space=sflag, size = 0x4, scoped, tag = 'scoped memory for tpu_custom_call.1']
    #allocation5 [shape = 'u8[49152]{0}', space=vmem, size = 0xc000, scoped, tag = 'output window, operand 0, single buffered']
    %13 = vsyncpa [#allocation3], 0
    %14 = vsyncpa [#allocation4], 0
    // Predicated region
    $region2: #{tpu_custom_call.1} parent=1 // pred_check
      _
    $region3: #{tpu_custom_call.1} parent=1 // pred_check_branch
      %16 = sbr.rel (0) target = $region5
    $region4: #{tpu_custom_call.1} parent=1 // pred_region
      %s18 = ssub.s32 1536, 1536
      %19 = vsyncadd [#allocation3], %s18
      %s21 = sshll.u32 [#allocation2], 4
      %s22 = int_to_ptr.vmem [resolvable:$true] %s21
      %24 = dma.hbm_to_vmem [thread:$0]  %s0, 1536, %s22, [#allocation3]
    $region5: #{tpu_custom_call.1} parent=1 // pred_fallthru
      _
    // Predicated region
    $region6: #{tpu_custom_call.1} parent=1 // pred_check
      _
    $region7: #{tpu_custom_call.1} parent=1 // pred_check_branch
      %26 = sbr.rel (0) target = $region9
    $region8: #{tpu_custom_call.1} parent=1 // pred_region
      _
    $region9: #{tpu_custom_call.1} parent=1 // pred_fallthru
      _
    // Predicated region
    $region10: #{tpu_custom_call.1} parent=1 // pred_check
      _
    $region11: #{tpu_custom_call.1} parent=1 // pred_check_branch
      %28 = sbr.rel (0) target = $region13
    $region12: #{tpu_custom_call.1} parent=1 // pred_region
      _
    $region13: #{tpu_custom_call.1} parent=1 // pred_fallthru
      _
    // Predicated region
    $region14: #{tpu_custom_call.1} parent=1 // pred_check
      _
    $region15: #{tpu_custom_call.1} parent=1 // pred_check_branch
      %30 = sbr.rel (0) target = $region17
    $region16: #{tpu_custom_call.1} parent=1 // pred_region
      _
    $region17: #{tpu_custom_call.1} parent=1 // pred_fallthru
      _
    // Predicated region
    $region18: #{tpu_custom_call.1} parent=1 // pred_check
      _
    $region19: #{tpu_custom_call.1} parent=1 // pred_check_branch
      %32 = sbr.rel (0) target = $region21
    $region20: #{tpu_custom_call.1} parent=1 // pred_region
      _
    $region21: #{tpu_custom_call.1} parent=1 // pred_fallthru
      _
    // Predicated region
    $region22: #{tpu_custom_call.1} parent=1 // pred_check
      _
    $region23: #{tpu_custom_call.1} parent=1 // pred_check_branch
      %34 = sbr.rel (0) target = $region25
    $region24: #{tpu_custom_call.1} parent=1 // pred_region
      _
    $region25: #{tpu_custom_call.1} parent=1 // pred_fallthru
      _
    // Predicated region
    $region26: #{tpu_custom_call.1} parent=1 // pred_check
      _
    $region27: #{tpu_custom_call.1} parent=1 // pred_check_branch
      %36 = sbr.rel (0) target = $region29
    $region28: #{tpu_custom_call.1} parent=1 // pred_region
      _
    $region29: #{tpu_custom_call.1} parent=1 // pred_fallthru
      _
    // Predicated region
    $region30: #{tpu_custom_call.1} parent=1 // pred_check
      _
    $region31: #{tpu_custom_call.1} parent=1 // pred_check_branch
      %38 = sbr.rel (0) target = $region33
    $region32: #{tpu_custom_call.1} parent=1 // pred_region
      _
    $region33: #{tpu_custom_call.1} parent=1 // pred_fallthru
      _
    // Predicated region
    $region34: #{tpu_custom_call.1} parent=1 // pred_check
      _
    $region35: #{tpu_custom_call.1} parent=1 // pred_check_branch
      %40 = sbr.rel (0) target = $region37
    $region36: #{tpu_custom_call.1} parent=1 // pred_region
      %41 = dma.done [#allocation3], 1536
    $region37: #{tpu_custom_call.1} parent=1 // pred_fallthru
      _
    %v43 = vld [vmem:[#allocation2] sm:$0x77]
    %v44 = vld [vmem:[#allocation2 + $0x8] sm:$0x77]
    %v45 = vld [vmem:[#allocation2 + $0x10] sm:$0x77]
    %v46 = vld [vmem:[#allocation2 + $0x18] sm:$0x77]
    %v47 = vld [vmem:[#allocation2 + $0x20] sm:$0x77]
    %v48 = vld [vmem:[#allocation2 + $0x28] sm:$0x77]
    %v49 = vld [vmem:[#allocation2 + $0x30] sm:$0x77]
    %v50 = vld [vmem:[#allocation2 + $0x38] sm:$0x77]
    %v51 = vld [vmem:[#allocation2 + $0x40] sm:$0x77]
    %v52 = vld [vmem:[#allocation2 + $0x48] sm:$0x77]
    %v53 = vld [vmem:[#allocation2 + $0x50] sm:$0x77]
    %v54 = vld [vmem:[#allocation2 + $0x58] sm:$0x77]
    %v55 = vld [vmem:[%s1] sm:$0xf]
    %v56 = vld [vmem:[%s1 + $0x4] sm:$0xf]
    %v57 = vld [vmem:[%s1 + $0x8] sm:$0xf]
    %v58 = vld [vmem:[%s1 + $0xc] sm:$0xf]
    %v59 = vld [vmem:[%s1 + $0x10] sm:$0xf]
    %v60 = vld [vmem:[%s1 + $0x14] sm:$0xf]
    %v61 = vld [vmem:[%s1 + $0x18] sm:$0xf]
    %v62 = vld [vmem:[%s1 + $0x1c] sm:$0xf]
    %v63 = vld [vmem:[%s1 + $0x20] sm:$0xf]
    %v64 = vld [vmem:[%s1 + $0x24] sm:$0xf]
    %v75 = vunpack.c.l.b16 %v55
    %v76 = vunpack.c.l.b16 %v56
    %v77 = vunpack.c.l.b16 %v57
    %v78 = vunpack.c.l.b16 %v58
    %v79 = vunpack.c.l.b16 %v59
    %v80 = vunpack.c.l.b16 %v60
    %v81 = vunpack.c.l.b16 %v61
    %v82 = vunpack.c.l.b16 %v62
    %v83 = vunpack.c.l.b16 %v63
    %v84 = vunpack.c.l.b16 %v64
    %v85 = vpack.c.b16 %v76, %v75
    %v86 = vpack.c.b16 %v78, %v77
    %v87 = vpack.c.b16 %v80, %v79
    %v88 = vpack.c.b16 %v82, %v81
    %v89 = vpack.c.b16 %v84, %v83
    %v102 = vunpack.c.l.b16 %v43
    %v103 = vunpack.c.h.b16 %v43
    %v104 = vunpack.c.l.b16 %v44
    %v105 = vunpack.c.h.b16 %v44
    %v106 = vunpack.c.l.b16 %v45
    %v107 = vunpack.c.h.b16 %v45
    %v108 = vunpack.c.l.b16 %v46
    %v109 = vunpack.c.h.b16 %v46
    %v110 = vunpack.c.l.b16 %v47
    %v111 = vunpack.c.h.b16 %v47
    %v112 = vunpack.c.l.b16 %v48
    %v113 = vunpack.c.h.b16 %v48
    %v114 = vunpack.c.l.b16 %v49
    %v115 = vunpack.c.h.b16 %v49
    %v116 = vunpack.c.l.b16 %v50
    %v117 = vunpack.c.h.b16 %v50
    %v118 = vunpack.c.l.b16 %v51
    %v119 = vunpack.c.h.b16 %v51
    %v120 = vunpack.c.l.b16 %v52
    %v121 = vunpack.c.h.b16 %v52
    %v122 = vunpack.c.l.b16 %v53
    %v123 = vunpack.c.h.b16 %v53
    %v124 = vunpack.c.l.b16 %v54
    %v125 = vunpack.c.h.b16 %v54
    %v126 = vpack.c.b16 %v102, %v102
    %v127 = vpack.c.b16 %v103, %v103
    %v128 = vpack.c.b16 %v104, %v104
    %v129 = vpack.c.b16 %v105, %v105
    %v130 = vpack.c.b16 %v106, %v106
    %v131 = vpack.c.b16 %v107, %v107
    %v132 = vpack.c.b16 %v108, %v108
    %v133 = vpack.c.b16 %v109, %v109
    %v134 = vpack.c.b16 %v110, %v110
    %v135 = vpack.c.b16 %v111, %v111
    %v136 = vpack.c.b16 %v112, %v112
    %v137 = vpack.c.b16 %v113, %v113
    %v138 = vpack.c.b16 %v114, %v114
    %v139 = vpack.c.b16 %v115, %v115
    %v140 = vpack.c.b16 %v116, %v116
    %v141 = vpack.c.b16 %v117, %v117
    %v142 = vpack.c.b16 %v118, %v118
    %v143 = vpack.c.b16 %v119, %v119
    %v144 = vpack.c.b16 %v120, %v120
    %v145 = vpack.c.b16 %v121, %v121
    %v146 = vpack.c.b16 %v122, %v122
    %v147 = vpack.c.b16 %v123, %v123
    %v148 = vpack.c.b16 %v124, %v124
    %v149 = vpack.c.b16 %v125, %v125
    %vm150 = vcmask 48128
    %v152 = vsel %vm150, %v85, 0
    %v155 = vsel %vm150, %v86, 0
    %v158 = vsel %vm150, %v87, 0
    %v161 = vsel %vm150, %v88, 0
    %v164 = vsel %vm150, %v89, 0
    %vm166 = vcmask 1042432
    %v168 = vsel %vm166, %v126, 0
    %v171 = vsel %vm166, %v127, 0
    %v174 = vsel %vm166, %v128, 0
    %v177 = vsel %vm166, %v129, 0
    %v180 = vsel %vm166, %v130, 0
    %v183 = vsel %vm166, %v131, 0
    %v186 = vsel %vm166, %v132, 0
    %v189 = vsel %vm166, %v133, 0
    %v192 = vsel %vm166, %v134, 0
    %v195 = vsel %vm166, %v135, 0
    %v198 = vsel %vm166, %v136, 0
    %v201 = vsel %vm166, %v137, 0
    %v204 = vsel %vm166, %v138, 0
    %v207 = vsel %vm166, %v139, 0
    %v210 = vsel %vm166, %v140, 0
    %v213 = vsel %vm166, %v141, 0
    %v216 = vsel %vm166, %v142, 0
    %v219 = vsel %vm166, %v143, 0
    %v222 = vsel %vm166, %v144, 0
    %v225 = vsel %vm166, %v145, 0
    %v228 = vsel %vm166, %v146, 0
    %v231 = vsel %vm166, %v147, 0
    %v234 = vsel %vm166, %v148, 0
    %v237 = vsel %vm166, %v149, 0
    %239 = vmatprep.subr.bf16.mxu0 %v171
    %240 = vmatpush1.bf16.msra.mxu0 %v168
    %241 = vmatprep.subr.bf16.mxu0 0
    %242 = vmatpush1.bf16.msra.mxu0 0
    %243 = vmatprep.subr.bf16.mxu0 0
    %244 = vmatpush1.bf16.msra.mxu0 0
    %245 = vmatprep.subr.bf16.mxu0 0
    %246 = vmatpush1.bf16.msra.mxu0 0
    %247 = vmatprep.subr.bf16.mxu0 0
    %248 = vmatpush1.bf16.msra.mxu0 0
    %249 = vmatprep.subr.bf16.mxu0 0
    %250 = vmatpush1.bf16.msra.mxu0 0
    %251 = vmatprep.subr.bf16.mxu0 0
    %252 = vmatpush1.bf16.msra.mxu0 0
    %253 = vmatprep.subr.bf16.mxu0 0
    %254 = vmatpush1.bf16.msra.mxu0 0
    %255 = vmatprep.subr.bf16.mxu0 0
    %256 = vmatpush1.bf16.msra.mxu0 0
    %257 = vmatprep.subr.bf16.mxu0 0
    %258 = vmatpush1.bf16.msra.mxu0 0
    %259 = vmatprep.subr.bf16.mxu0 0
    %260 = vmatpush1.bf16.msra.mxu0 0
    %261 = vmatprep.subr.bf16.mxu0 0
    %262 = vmatpush1.bf16.msra.mxu0 0
    %263 = vmatprep.subr.bf16.mxu0 0
    %264 = vmatpush1.bf16.msra.mxu0 0
    %265 = vmatprep.subr.bf16.mxu0 0
    %266 = vmatpush1.bf16.msra.mxu0 0
    %267 = vmatprep.subr.bf16.mxu0 0
    %268 = vmatpush1.bf16.msra.mxu0 0
    %269 = vmatprep.subr.bf16.mxu0 0
    %270 = vmatpush1.bf16.msra.mxu0 0
    %271 = vmatprep.mubr.bf16.mxu0 0
    %272 = vmatmul.mubr.bf16.gmra.mrb[0].mxu0 %v152
    %v273 = vpop.f32.mrb[0].mxu0
    %v274 = vadd.f32 0.0, %v273
    %v275 = vpop.f32.mrb[0].mxu0
    %v276 = vadd.f32 0.0, %v275
    %v277 = vpop.f32.mrb[0].mxu0
    %v278 = vadd.f32 0.0, %v277
    %v279 = vpop.f32.mrb[0].mxu0
    %v280 = vadd.f32 0.0, %v279
    %281 = vmatprep.mubr.bf16.mxu0 0
    %282 = vmatmul.mubr.bf16.gmra.mrb[0].mxu0 %v155
    %v283 = vpop.f32.mrb[0].mxu0
    %v284 = vadd.f32 0.0, %v283
    %v285 = vpop.f32.mrb[0].mxu0
    %v286 = vadd.f32 0.0, %v285
    %v287 = vpop.f32.mrb[0].mxu0
    %v288 = vadd.f32 0.0, %v287
    %v289 = vpop.f32.mrb[0].mxu0
    %v290 = vadd.f32 0.0, %v289
    %291 = vmatprep.mubr.bf16.mxu0 0
    %292 = vmatmul.mubr.bf16.gmra.mrb[0].mxu0 %v158
    %v293 = vpop.f32.mrb[0].mxu0
    %v294 = vadd.f32 0.0, %v293
    %v295 = vpop.f32.mrb[0].mxu0
    %v296 = vadd.f32 0.0, %v295
    %v297 = vpop.f32.mrb[0].mxu0
    %v298 = vadd.f32 0.0, %v297
    %v299 = vpop.f32.mrb[0].mxu0
    %v300 = vadd.f32 0.0, %v299
    %301 = vmatprep.mubr.bf16.mxu0 0
    %302 = vmatmul.mubr.bf16.gmra.mrb[0].mxu0 %v161
    %v303 = vpop.f32.mrb[0].mxu0
    %v304 = vadd.f32 0.0, %v303
    %v305 = vpop.f32.mrb[0].mxu0
    %v306 = vadd.f32 0.0, %v305
    %v307 = vpop.f32.mrb[0].mxu0
    %v308 = vadd.f32 0.0, %v307
    %v309 = vpop.f32.mrb[0].mxu0
    %v310 = vadd.f32 0.0, %v309
    %311 = vmatprep.mubr.bf16.mxu0 0
    %312 = vmatmul.mubr.bf16.gmra.mrb[0].mxu0 %v164
    %v313 = vpop.f32.mrb[0].mxu0
    %v314 = vadd.f32 0.0, %v313
    %v315 = vpop.f32.mrb[0].mxu0
    %v316 = vadd.f32 0.0, %v315
    %v317 = vpop.f32.mrb[0].mxu0
    %v318 = vadd.f32 0.0, %v317
    %v319 = vpop.f32.mrb[0].mxu0
    %v320 = vadd.f32 0.0, %v319
    %321 = vdwg.mxu0
    %322 = vmatprep.subr.bf16.mxu0 %v177
    %323 = vmatpush1.bf16.msra.mxu0 %v174
    %324 = vmatprep.subr.bf16.mxu0 0
    %325 = vmatpush1.bf16.msra.mxu0 0
    %326 = vmatprep.subr.bf16.mxu0 0
    %327 = vmatpush1.bf16.msra.mxu0 0
    %328 = vmatprep.subr.bf16.mxu0 0
    %329 = vmatpush1.bf16.msra.mxu0 0
    %330 = vmatprep.subr.bf16.mxu0 0
    %331 = vmatpush1.bf16.msra.mxu0 0
    %332 = vmatprep.subr.bf16.mxu0 0
    %333 = vmatpush1.bf16.msra.mxu0 0
    %334 = vmatprep.subr.bf16.mxu0 0
    %335 = vmatpush1.bf16.msra.mxu0 0
    %336 = vmatprep.subr.bf16.mxu0 0
    %337 = vmatpush1.bf16.msra.mxu0 0
    %338 = vmatprep.subr.bf16.mxu0 0
    %339 = vmatpush1.bf16.msra.mxu0 0
    %340 = vmatprep.subr.bf16.mxu0 0
    %341 = vmatpush1.bf16.msra.mxu0 0
    %342 = vmatprep.subr.bf16.mxu0 0
    %343 = vmatpush1.bf16.msra.mxu0 0
    %344 = vmatprep.subr.bf16.mxu0 0
    %345 = vmatpush1.bf16.msra.mxu0 0
    %346 = vmatprep.subr.bf16.mxu0 0
    %347 = vmatpush1.bf16.msra.mxu0 0
    %348 = vmatprep.subr.bf16.mxu0 0
    %349 = vmatpush1.bf16.msra.mxu0 0
    %350 = vmatprep.subr.bf16.mxu0 0
    %351 = vmatpush1.bf16.msra.mxu0 0
    %352 = vmatprep.subr.bf16.mxu0 0
    %353 = vmatpush1.bf16.msra.mxu0 0
    %354 = vmatprep.mubr.bf16.mxu0 0
    %355 = vmatmul.mubr.bf16.gmra.mrb[0].mxu0 %v152
    %v356 = vpop.f32.mrb[0].mxu0
    %v357 = vadd.f32 0.0, %v356
    %v358 = vpop.f32.mrb[0].mxu0
    %v359 = vadd.f32 0.0, %v358
    %v360 = vpop.f32.mrb[0].mxu0
    %v361 = vadd.f32 0.0, %v360
    %v362 = vpop.f32.mrb[0].mxu0
    %v363 = vadd.f32 0.0, %v362
    %364 = vmatprep.mubr.bf16.mxu0 0
    %365 = vmatmul.mubr.bf16.gmra.mrb[0].mxu0 %v155
    %v366 = vpop.f32.mrb[0].mxu0
    %v367 = vadd.f32 0.0, %v366
    %v368 = vpop.f32.mrb[0].mxu0
    %v369 = vadd.f32 0.0, %v368
    %v370 = vpop.f32.mrb[0].mxu0
    %v371 = vadd.f32 0.0, %v370
    %v372 = vpop.f32.mrb[0].mxu0
    %v373 = vadd.f32 0.0, %v372
    %374 = vmatprep.mubr.bf16.mxu0 0
    %375 = vmatmul.mubr.bf16.gmra.mrb[0].mxu0 %v158
    %v376 = vpop.f32.mrb[0].mxu0
    %v377 = vadd.f32 0.0, %v376
    %v378 = vpop.f32.mrb[0].mxu0
    %v379 = vadd.f32 0.0, %v378
    %v380 = vpop.f32.mrb[0].mxu0
    %v381 = vadd.f32 0.0, %v380
    %v382 = vpop.f32.mrb[0].mxu0
    %v383 = vadd.f32 0.0, %v382
    %384 = vmatprep.mubr.bf16.mxu0 0
    %385 = vmatmul.mubr.bf16.gmra.mrb[0].mxu0 %v161
    %v386 = vpop.f32.mrb[0].mxu0
    %v387 = vadd.f32 0.0, %v386
    %v388 = vpop.f32.mrb[0].mxu0
    %v389 = vadd.f32 0.0, %v388
    %v390 = vpop.f32.mrb[0].mxu0
    %v391 = vadd.f32 0.0, %v390
    %v392 = vpop.f32.mrb[0].mxu0
    %v393 = vadd.f32 0.0, %v392
    %394 = vmatprep.mubr.bf16.mxu0 0
    %395 = vmatmul.mubr.bf16.gmra.mrb[0].mxu0 %v164
    %v396 = vpop.f32.mrb[0].mxu0
    %v397 = vadd.f32 0.0, %v396
    %v398 = vpop.f32.mrb[0].mxu0
    %v399 = vadd.f32 0.0, %v398
    %v400 = vpop.f32.mrb[0].mxu0
    %v401 = vadd.f32 0.0, %v400
    %v402 = vpop.f32.mrb[0].mxu0
    %v403 = vadd.f32 0.0, %v402
    %404 = vdwg.mxu0
    %405 = vmatprep.subr.bf16.mxu0 %v183
    %406 = vmatpush1.bf16.msra.mxu0 %v180
    %407 = vmatprep.subr.bf16.mxu0 0
    %408 = vmatpush1.bf16.msra.mxu0 0
    %409 = vmatprep.subr.bf16.mxu0 0
    %410 = vmatpush1.bf16.msra.mxu0 0
    %411 = vmatprep.subr.bf16.mxu0 0
    %412 = vmatpush1.bf16.msra.mxu0 0
    %413 = vmatprep.subr.bf16.mxu0 0
    %414 = vmatpush1.bf16.msra.mxu0 0
    %415 = vmatprep.subr.bf16.mxu0 0
    %416 = vmatpush1.bf16.msra.mxu0 0
    %417 = vmatprep.subr.bf16.mxu0 0
    %418 = vmatpush1.bf16.msra.mxu0 0
    %419 = vmatprep.subr.bf16.mxu0 0
    %420 = vmatpush1.bf16.msra.mxu0 0
    %421 = vmatprep.subr.bf16.mxu0 0
    %422 = vmatpush1.bf16.msra.mxu0 0
    %423 = vmatprep.subr.bf16.mxu0 0
    %424 = vmatpush1.bf16.msra.mxu0 0
    %425 = vmatprep.subr.bf16.mxu0 0
    %426 = vmatpush1.bf16.msra.mxu0 0
    %427 = vmatprep.subr.bf16.mxu0 0
    %428 = vmatpush1.bf16.msra.mxu0 0
    %429 = vmatprep.subr.bf16.mxu0 0
    %430 = vmatpush1.bf16.msra.mxu0 0
    %431 = vmatprep.subr.bf16.mxu0 0
    %432 = vmatpush1.bf16.msra.mxu0 0
    %433 = vmatprep.subr.bf16.mxu0 0
    %434 = vmatpush1.bf16.msra.mxu0 0
    %435 = vmatprep.subr.bf16.mxu0 0
    %436 = vmatpush1.bf16.msra.mxu0 0
    %437 = vmatprep.mubr.bf16.mxu0 0
    %438 = vmatmul.mubr.bf16.gmra.mrb[0].mxu0 %v152
    %v439 = vpop.f32.mrb[0].mxu0
    %v440 = vadd.f32 0.0, %v439
    %v441 = vpop.f32.mrb[0].mxu0
    %v442 = vadd.f32 0.0, %v441
    %v443 = vpop.f32.mrb[0].mxu0
    %v444 = vadd.f32 0.0, %v443
    %v445 = vpop.f32.mrb[0].mxu0
    %v446 = vadd.f32 0.0, %v445
    %447 = vmatprep.mubr.bf16.mxu0 0
    %448 = vmatmul.mubr.bf16.gmra.mrb[0].mxu0 %v155
    %v449 = vpop.f32.mrb[0].mxu0
    %v450 = vadd.f32 0.0, %v449
    %v451 = vpop.f32.mrb[0].mxu0
    %v452 = vadd.f32 0.0, %v451
    %v453 = vpop.f32.mrb[0].mxu0
    %v454 = vadd.f32 0.0, %v453
    %v455 = vpop.f32.mrb[0].mxu0
    %v456 = vadd.f32 0.0, %v455
    %457 = vmatprep.mubr.bf16.mxu0 0
    %458 = vmatmul.mubr.bf16.gmra.mrb[0].mxu0 %v158
    %v459 = vpop.f32.mrb[0].mxu0
    %v460 = vadd.f32 0.0, %v459
    %v461 = vpop.f32.mrb[0].mxu0
    %v462 = vadd.f32 0.0, %v461
    %v463 = vpop.f32.mrb[0].mxu0
    %v464 = vadd.f32 0.0, %v463
    %v465 = vpop.f32.mrb[0].mxu0
    %v466 = vadd.f32 0.0, %v465
    %467 = vmatprep.mubr.bf16.mxu0 0
    %468 = vmatmul.mubr.bf16.gmra.mrb[0].mxu0 %v161
    %v469 = vpop.f32.mrb[0].mxu0
    %v470 = vadd.f32 0.0, %v469
    %v471 = vpop.f32.mrb[0].mxu0
    %v472 = vadd.f32 0.0, %v471
    %v473 = vpop.f32.mrb[0].mxu0
    %v474 = vadd.f32 0.0, %v473
    %v475 = vpop.f32.mrb[0].mxu0
    %v476 = vadd.f32 0.0, %v475
    %477 = vmatprep.mubr.bf16.mxu0 0
    %478 = vmatmul.mubr.bf16.gmra.mrb[0].mxu0 %v164
    %v479 = vpop.f32.mrb[0].mxu0
    %v480 = vadd.f32 0.0, %v479
    %v481 = vpop.f32.mrb[0].mxu0
    %v482 = vadd.f32 0.0, %v481
    %v483 = vpop.f32.mrb[0].mxu0
    %v484 = vadd.f32 0.0, %v483
    %v485 = vpop.f32.mrb[0].mxu0
    %v486 = vadd.f32 0.0, %v485
    %487 = vdwg.mxu0
    %488 = vmatprep.subr.bf16.mxu0 %v189
    %489 = vmatpush1.bf16.msra.mxu0 %v186
    %490 = vmatprep.subr.bf16.mxu0 0
    %491 = vmatpush1.bf16.msra.mxu0 0
    %492 = vmatprep.subr.bf16.mxu0 0
    %493 = vmatpush1.bf16.msra.mxu0 0
    %494 = vmatprep.subr.bf16.mxu0 0
    %495 = vmatpush1.bf16.msra.mxu0 0
    %496 = vmatprep.subr.bf16.mxu0 0
    %497 = vmatpush1.bf16.msra.mxu0 0
    %498 = vmatprep.subr.bf16.mxu0 0
    %499 = vmatpush1.bf16.msra.mxu0 0
    %500 = vmatprep.subr.bf16.mxu0 0
    %501 = vmatpush1.bf16.msra.mxu0 0
    %502 = vmatprep.subr.bf16.mxu0 0
    %503 = vmatpush1.bf16.msra.mxu0 0
    %504 = vmatprep.subr.bf16.mxu0 0
    %505 = vmatpush1.bf16.msra.mxu0 0
    %506 = vmatprep.subr.bf16.mxu0 0
    %507 = vmatpush1.bf16.msra.mxu0 0
    %508 = vmatprep.subr.bf16.mxu0 0
    %509 = vmatpush1.bf16.msra.mxu0 0
    %510 = vmatprep.subr.bf16.mxu0 0
    %511 = vmatpush1.bf16.msra.mxu0 0
    %512 = vmatprep.subr.bf16.mxu0 0
    %513 = vmatpush1.bf16.msra.mxu0 0
    %514 = vmatprep.subr.bf16.mxu0 0
    %515 = vmatpush1.bf16.msra.mxu0 0
    %516 = vmatprep.subr.bf16.mxu0 0
    %517 = vmatpush1.bf16.msra.mxu0 0
    %518 = vmatprep.subr.bf16.mxu0 0
    %519 = vmatpush1.bf16.msra.mxu0 0
    %520 = vmatprep.mubr.bf16.mxu0 0
    %521 = vmatmul.mubr.bf16.gmra.mrb[0].mxu0 %v152
    %v522 = vpop.f32.mrb[0].mxu0
    %v523 = vadd.f32 0.0, %v522
    %v524 = vpop.f32.mrb[0].mxu0
    %v525 = vadd.f32 0.0, %v524
    %v526 = vpop.f32.mrb[0].mxu0
    %v527 = vadd.f32 0.0, %v526
    %v528 = vpop.f32.mrb[0].mxu0
    %v529 = vadd.f32 0.0, %v528
    %530 = vmatprep.mubr.bf16.mxu0 0
    %531 = vmatmul.mubr.bf16.gmra.mrb[0].mxu0 %v155
    %v532 = vpop.f32.mrb[0].mxu0
    %v533 = vadd.f32 0.0, %v532
    %v534 = vpop.f32.mrb[0].mxu0
    %v535 = vadd.f32 0.0, %v534
    %v536 = vpop.f32.mrb[0].mxu0
    %v537 = vadd.f32 0.0, %v536
    %v538 = vpop.f32.mrb[0].mxu0
    %v539 = vadd.f32 0.0, %v538
    %540 = vmatprep.mubr.bf16.mxu0 0
    %541 = vmatmul.mubr.bf16.gmra.mrb[0].mxu0 %v158
    %v542 = vpop.f32.mrb[0].mxu0
    %v543 = vadd.f32 0.0, %v542
    %v544 = vpop.f32.mrb[0].mxu0
    %v545 = vadd.f32 0.0, %v544
    %v546 = vpop.f32.mrb[0].mxu0
    %v547 = vadd.f32 0.0, %v546
    %v548 = vpop.f32.mrb[0].mxu0
    %v549 = vadd.f32 0.0, %v548
    %550 = vmatprep.mubr.bf16.mxu0 0
    %551 = vmatmul.mubr.bf16.gmra.mrb[0].mxu0 %v161
    %v552 = vpop.f32.mrb[0].mxu0
    %v553 = vadd.f32 0.0, %v552
    %v554 = vpop.f32.mrb[0].mxu0
    %v555 = vadd.f32 0.0, %v554
    %v556 = vpop.f32.mrb[0].mxu0
    %v557 = vadd.f32 0.0, %v556
    %v558 = vpop.f32.mrb[0].mxu0
    %v559 = vadd.f32 0.0, %v558
    %560 = vmatprep.mubr.bf16.mxu0 0
    %561 = vmatmul.mubr.bf16.gmra.mrb[0].mxu0 %v164
    %v562 = vpop.f32.mrb[0].mxu0
    %v563 = vadd.f32 0.0, %v562
    %v564 = vpop.f32.mrb[0].mxu0
    %v565 = vadd.f32 0.0, %v564
    %v566 = vpop.f32.mrb[0].mxu0
    %v567 = vadd.f32 0.0, %v566
    %v568 = vpop.f32.mrb[0].mxu0
    %v569 = vadd.f32 0.0, %v568
    %570 = vdwg.mxu0
    %571 = vmatprep.subr.bf16.mxu0 %v195
    %572 = vmatpush1.bf16.msra.mxu0 %v192
    %573 = vmatprep.subr.bf16.mxu0 0
    %574 = vmatpush1.bf16.msra.mxu0 0
    %575 = vmatprep.subr.bf16.mxu0 0
    %576 = vmatpush1.bf16.msra.mxu0 0
    %577 = vmatprep.subr.bf16.mxu0 0
    %578 = vmatpush1.bf16.msra.mxu0 0
    %579 = vmatprep.subr.bf16.mxu0 0
    %580 = vmatpush1.bf16.msra.mxu0 0
    %581 = vmatprep.subr.bf16.mxu0 0
    %582 = vmatpush1.bf16.msra.mxu0 0
    %583 = vmatprep.subr.bf16.mxu0 0
    %584 = vmatpush1.bf16.msra.mxu0 0
    %585 = vmatprep.subr.bf16.mxu0 0
    %586 = vmatpush1.bf16.msra.mxu0 0
    %587 = vmatprep.subr.bf16.mxu0 0
    %588 = vmatpush1.bf16.msra.mxu0 0
    %589 = vmatprep.subr.bf16.mxu0 0
    %590 = vmatpush1.bf16.msra.mxu0 0
    %591 = vmatprep.subr.bf16.mxu0 0
    %592 = vmatpush1.bf16.msra.mxu0 0
    %593 = vmatprep.subr.bf16.mxu0 0
    %594 = vmatpush1.bf16.msra.mxu0 0
    %595 = vmatprep.subr.bf16.mxu0 0
    %596 = vmatpush1.bf16.msra.mxu0 0
    %597 = vmatprep.subr.bf16.mxu0 0
    %598 = vmatpush1.bf16.msra.mxu0 0
    %599 = vmatprep.subr.bf16.mxu0 0
    %600 = vmatpush1.bf16.msra.mxu0 0
    %601 = vmatprep.subr.bf16.mxu0 0
    %602 = vmatpush1.bf16.msra.mxu0 0
    %603 = vmatprep.mubr.bf16.mxu0 0
    %604 = vmatmul.mubr.bf16.gmra.mrb[0].mxu0 %v152
    %v605 = vpop.f32.mrb[0].mxu0
    %v606 = vadd.f32 0.0, %v605
    %v607 = vpop.f32.mrb[0].mxu0
    %v608 = vadd.f32 0.0, %v607
    %v609 = vpop.f32.mrb[0].mxu0
    %v610 = vadd.f32 0.0, %v609
    %v611 = vpop.f32.mrb[0].mxu0
    %v612 = vadd.f32 0.0, %v611
    %613 = vmatprep.mubr.bf16.mxu0 0
    %614 = vmatmul.mubr.bf16.gmra.mrb[0].mxu0 %v155
    %v615 = vpop.f32.mrb[0].mxu0
    %v616 = vadd.f32 0.0, %v615
    %v617 = vpop.f32.mrb[0].mxu0
    %v618 = vadd.f32 0.0, %v617
    %v619 = vpop.f32.mrb[0].mxu0
    %v620 = vadd.f32 0.0, %v619
    %v621 = vpop.f32.mrb[0].mxu0
    %v622 = vadd.f32 0.0, %v621
    %623 = vmatprep.mubr.bf16.mxu0 0
    %624 = vmatmul.mubr.bf16.gmra.mrb[0].mxu0 %v158
    %v625 = vpop.f32.mrb[0].mxu0
    %v626 = vadd.f32 0.0, %v625
    %v627 = vpop.f32.mrb[0].mxu0
    %v628 = vadd.f32 0.0, %v627
    %v629 = vpop.f32.mrb[0].mxu0
    %v630 = vadd.f32 0.0, %v629
    %v631 = vpop.f32.mrb[0].mxu0
    %v632 = vadd.f32 0.0, %v631
    %633 = vmatprep.mubr.bf16.mxu0 0
    %634 = vmatmul.mubr.bf16.gmra.mrb[0].mxu0 %v161
    %v635 = vpop.f32.mrb[0].mxu0
    %v636 = vadd.f32 0.0, %v635
    %v637 = vpop.f32.mrb[0].mxu0
    %v638 = vadd.f32 0.0, %v637
    %v639 = vpop.f32.mrb[0].mxu0
    %v640 = vadd.f32 0.0, %v639
    %v641 = vpop.f32.mrb[0].mxu0
    %v642 = vadd.f32 0.0, %v641
    %643 = vmatprep.mubr.bf16.mxu0 0
    %644 = vmatmul.mubr.bf16.gmra.mrb[0].mxu0 %v164
    %v645 = vpop.f32.mrb[0].mxu0
    %v646 = vadd.f32 0.0, %v645
    %v647 = vpop.f32.mrb[0].mxu0
    %v648 = vadd.f32 0.0, %v647
    %v649 = vpop.f32.mrb[0].mxu0
    %v650 = vadd.f32 0.0, %v649
    %v651 = vpop.f32.mrb[0].mxu0
    %v652 = vadd.f32 0.0, %v651
    %653 = vdwg.mxu0
    %654 = vmatprep.subr.bf16.mxu0 %v201
    %655 = vmatpush1.bf16.msra.mxu0 %v198
    %656 = vmatprep.subr.bf16.mxu0 0
    %657 = vmatpush1.bf16.msra.mxu0 0
    %658 = vmatprep.subr.bf16.mxu0 0
    %659 = vmatpush1.bf16.msra.mxu0 0
    %660 = vmatprep.subr.bf16.mxu0 0
    %661 = vmatpush1.bf16.msra.mxu0 0
    %662 = vmatprep.subr.bf16.mxu0 0
    %663 = vmatpush1.bf16.msra.mxu0 0
    %664 = vmatprep.subr.bf16.mxu0 0
    %665 = vmatpush1.bf16.msra.mxu0 0
    %666 = vmatprep.subr.bf16.mxu0 0
    %667 = vmatpush1.bf16.msra.mxu0 0
    %668 = vmatprep.subr.bf16.mxu0 0
    %669 = vmatpush1.bf16.msra.mxu0 0
    %670 = vmatprep.subr.bf16.mxu0 0
    %671 = vmatpush1.bf16.msra.mxu0 0
    %672 = vmatprep.subr.bf16.mxu0 0
    %673 = vmatpush1.bf16.msra.mxu0 0
    %674 = vmatprep.subr.bf16.mxu0 0
    %675 = vmatpush1.bf16.msra.mxu0 0
    %676 = vmatprep.subr.bf16.mxu0 0
    %677 = vmatpush1.bf16.msra.mxu0 0
    %678 = vmatprep.subr.bf16.mxu0 0
    %679 = vmatpush1.bf16.msra.mxu0 0
    %680 = vmatprep.subr.bf16.mxu0 0
    %681 = vmatpush1.bf16.msra.mxu0 0
    %682 = vmatprep.subr.bf16.mxu0 0
    %683 = vmatpush1.bf16.msra.mxu0 0
    %684 = vmatprep.subr.bf16.mxu0 0
    %685 = vmatpush1.bf16.msra.mxu0 0
    %686 = vmatprep.mubr.bf16.mxu0 0
    %687 = vmatmul.mubr.bf16.gmra.mrb[0].mxu0 %v152
    %v688 = vpop.f32.mrb[0].mxu0
    %v689 = vadd.f32 0.0, %v688
    %v690 = vpop.f32.mrb[0].mxu0
    %v691 = vadd.f32 0.0, %v690
    %v692 = vpop.f32.mrb[0].mxu0
    %v693 = vadd.f32 0.0, %v692
    %v694 = vpop.f32.mrb[0].mxu0
    %v695 = vadd.f32 0.0, %v694
    %696 = vmatprep.mubr.bf16.mxu0 0
    %697 = vmatmul.mubr.bf16.gmra.mrb[0].mxu0 %v155
    %v698 = vpop.f32.mrb[0].mxu0
    %v699 = vadd.f32 0.0, %v698
    %v700 = vpop.f32.mrb[0].mxu0
    %v701 = vadd.f32 0.0, %v700
    %v702 = vpop.f32.mrb[0].mxu0
    %v703 = vadd.f32 0.0, %v702
    %v704 = vpop.f32.mrb[0].mxu0
    %v705 = vadd.f32 0.0, %v704
    %706 = vmatprep.mubr.bf16.mxu0 0
    %707 = vmatmul.mubr.bf16.gmra.mrb[0].mxu0 %v158
    %v708 = vpop.f32.mrb[0].mxu0
    %v709 = vadd.f32 0.0, %v708
    %v710 = vpop.f32.mrb[0].mxu0
    %v711 = vadd.f32 0.0, %v710
    %v712 = vpop.f32.mrb[0].mxu0
    %v713 = vadd.f32 0.0, %v712
    %v714 = vpop.f32.mrb[0].mxu0
    %v715 = vadd.f32 0.0, %v714
    %716 = vmatprep.mubr.bf16.mxu0 0
    %717 = vmatmul.mubr.bf16.gmra.mrb[0].mxu0 %v161
    %v718 = vpop.f32.mrb[0].mxu0
    %v719 = vadd.f32 0.0, %v718
    %v720 = vpop.f32.mrb[0].mxu0
    %v721 = vadd.f32 0.0, %v720
    %v722 = vpop.f32.mrb[0].mxu0
    %v723 = vadd.f32 0.0, %v722
    %v724 = vpop.f32.mrb[0].mxu0
    %v725 = vadd.f32 0.0, %v724
    %726 = vmatprep.mubr.bf16.mxu0 0
    %727 = vmatmul.mubr.bf16.gmra.mrb[0].mxu0 %v164
    %v728 = vpop.f32.mrb[0].mxu0
    %v729 = vadd.f32 0.0, %v728
    %v730 = vpop.f32.mrb[0].mxu0
    %v731 = vadd.f32 0.0, %v730
    %v732 = vpop.f32.mrb[0].mxu0
    %v733 = vadd.f32 0.0, %v732
    %v734 = vpop.f32.mrb[0].mxu0
    %v735 = vadd.f32 0.0, %v734
    %736 = vdwg.mxu0
    %737 = vmatprep.subr.bf16.mxu0 %v207
    %738 = vmatpush1.bf16.msra.mxu0 %v204
    %739 = vmatprep.subr.bf16.mxu0 0
    %740 = vmatpush1.bf16.msra.mxu0 0
    %741 = vmatprep.subr.bf16.mxu0 0
    %742 = vmatpush1.bf16.msra.mxu0 0
    %743 = vmatprep.subr.bf16.mxu0 0
    %744 = vmatpush1.bf16.msra.mxu0 0
    %745 = vmatprep.subr.bf16.mxu0 0
    %746 = vmatpush1.bf16.msra.mxu0 0
    %747 = vmatprep.subr.bf16.mxu0 0
    %748 = vmatpush1.bf16.msra.mxu0 0
    %749 = vmatprep.subr.bf16.mxu0 0
    %750 = vmatpush1.bf16.msra.mxu0 0
    %751 = vmatprep.subr.bf16.mxu0 0
    %752 = vmatpush1.bf16.msra.mxu0 0
    %753 = vmatprep.subr.bf16.mxu0 0
    %754 = vmatpush1.bf16.msra.mxu0 0
    %755 = vmatprep.subr.bf16.mxu0 0
    %756 = vmatpush1.bf16.msra.mxu0 0
    %757 = vmatprep.subr.bf16.mxu0 0
    %758 = vmatpush1.bf16.msra.mxu0 0
    %759 = vmatprep.subr.bf16.mxu0 0
    %760 = vmatpush1.bf16.msra.mxu0 0
    %761 = vmatprep.subr.bf16.mxu0 0
    %762 = vmatpush1.bf16.msra.mxu0 0
    %763 = vmatprep.subr.bf16.mxu0 0
    %764 = vmatpush1.bf16.msra.mxu0 0
    %765 = vmatprep.subr.bf16.mxu0 0
    %766 = vmatpush1.bf16.msra.mxu0 0
    %767 = vmatprep.subr.bf16.mxu0 0
    %768 = vmatpush1.bf16.msra.mxu0 0
    %769 = vmatprep.mubr.bf16.mxu0 0
    %770 = vmatmul.mubr.bf16.gmra.mrb[0].mxu0 %v152
    %v771 = vpop.f32.mrb[0].mxu0
    %v772 = vadd.f32 0.0, %v771
    %v773 = vpop.f32.mrb[0].mxu0
    %v774 = vadd.f32 0.0, %v773
    %v775 = vpop.f32.mrb[0].mxu0
    %v776 = vadd.f32 0.0, %v775
    %v777 = vpop.f32.mrb[0].mxu0
    %v778 = vadd.f32 0.0, %v777
    %779 = vmatprep.mubr.bf16.mxu0 0
    %780 = vmatmul.mubr.bf16.gmra.mrb[0].mxu0 %v155
    %v781 = vpop.f32.mrb[0].mxu0
    %v782 = vadd.f32 0.0, %v781
    %v783 = vpop.f32.mrb[0].mxu0
    %v784 = vadd.f32 0.0, %v783
    %v785 = vpop.f32.mrb[0].mxu0
    %v786 = vadd.f32 0.0, %v785
    %v787 = vpop.f32.mrb[0].mxu0
    %v788 = vadd.f32 0.0, %v787
    %789 = vmatprep.mubr.bf16.mxu0 0
    %790 = vmatmul.mubr.bf16.gmra.mrb[0].mxu0 %v158
    %v791 = vpop.f32.mrb[0].mxu0
    %v792 = vadd.f32 0.0, %v791
    %v793 = vpop.f32.mrb[0].mxu0
    %v794 = vadd.f32 0.0, %v793
    %v795 = vpop.f32.mrb[0].mxu0
    %v796 = vadd.f32 0.0, %v795
    %v797 = vpop.f32.mrb[0].mxu0
    %v798 = vadd.f32 0.0, %v797
    %799 = vmatprep.mubr.bf16.mxu0 0
    %800 = vmatmul.mubr.bf16.gmra.mrb[0].mxu0 %v161
    %v801 = vpop.f32.mrb[0].mxu0
    %v802 = vadd.f32 0.0, %v801
    %v803 = vpop.f32.mrb[0].mxu0
    %v804 = vadd.f32 0.0, %v803
    %v805 = vpop.f32.mrb[0].mxu0
    %v806 = vadd.f32 0.0, %v805
    %v807 = vpop.f32.mrb[0].mxu0
    %v808 = vadd.f32 0.0, %v807
    %809 = vmatprep.mubr.bf16.mxu0 0
    %810 = vmatmul.mubr.bf16.gmra.mrb[0].mxu0 %v164
    %v811 = vpop.f32.mrb[0].mxu0
    %v812 = vadd.f32 0.0, %v811
    %v813 = vpop.f32.mrb[0].mxu0
    %v814 = vadd.f32 0.0, %v813
    %v815 = vpop.f32.mrb[0].mxu0
    %v816 = vadd.f32 0.0, %v815
    %v817 = vpop.f32.mrb[0].mxu0
    %v818 = vadd.f32 0.0, %v817
    %819 = vdwg.mxu0
    %820 = vmatprep.subr.bf16.mxu0 %v213
    %821 = vmatpush1.bf16.msra.mxu0 %v210
    %822 = vmatprep.subr.bf16.mxu0 0
    %823 = vmatpush1.bf16.msra.mxu0 0
    %824 = vmatprep.subr.bf16.mxu0 0
    %825 = vmatpush1.bf16.msra.mxu0 0
    %826 = vmatprep.subr.bf16.mxu0 0
    %827 = vmatpush1.bf16.msra.mxu0 0
    %828 = vmatprep.subr.bf16.mxu0 0
    %829 = vmatpush1.bf16.msra.mxu0 0
    %830 = vmatprep.subr.bf16.mxu0 0
    %831 = vmatpush1.bf16.msra.mxu0 0
    %832 = vmatprep.subr.bf16.mxu0 0
    %833 = vmatpush1.bf16.msra.mxu0 0
    %834 = vmatprep.subr.bf16.mxu0 0
    %835 = vmatpush1.bf16.msra.mxu0 0
    %836 = vmatprep.subr.bf16.mxu0 0
    %837 = vmatpush1.bf16.msra.mxu0 0
    %838 = vmatprep.subr.bf16.mxu0 0
    %839 = vmatpush1.bf16.msra.mxu0 0
    %840 = vmatprep.subr.bf16.mxu0 0
    %841 = vmatpush1.bf16.msra.mxu0 0
    %842 = vmatprep.subr.bf16.mxu0 0
    %843 = vmatpush1.bf16.msra.mxu0 0
    %844 = vmatprep.subr.bf16.mxu0 0
    %845 = vmatpush1.bf16.msra.mxu0 0
    %846 = vmatprep.subr.bf16.mxu0 0
    %847 = vmatpush1.bf16.msra.mxu0 0
    %848 = vmatprep.subr.bf16.mxu0 0
    %849 = vmatpush1.bf16.msra.mxu0 0
    %850 = vmatprep.subr.bf16.mxu0 0
    %851 = vmatpush1.bf16.msra.mxu0 0
    %852 = vmatprep.mubr.bf16.mxu0 0
    %853 = vmatmul.mubr.bf16.gmra.mrb[0].mxu0 %v152
    %v854 = vpop.f32.mrb[0].mxu0
    %v855 = vadd.f32 0.0, %v854
    %v856 = vpop.f32.mrb[0].mxu0
    %v857 = vadd.f32 0.0, %v856
    %v858 = vpop.f32.mrb[0].mxu0
    %v859 = vadd.f32 0.0, %v858
    %v860 = vpop.f32.mrb[0].mxu0
    %v861 = vadd.f32 0.0, %v860
    %862 = vmatprep.mubr.bf16.mxu0 0
    %863 = vmatmul.mubr.bf16.gmra.mrb[0].mxu0 %v155
    %v864 = vpop.f32.mrb[0].mxu0
    %v865 = vadd.f32 0.0, %v864
    %v866 = vpop.f32.mrb[0].mxu0
    %v867 = vadd.f32 0.0, %v866
    %v868 = vpop.f32.mrb[0].mxu0
    %v869 = vadd.f32 0.0, %v868
    %v870 = vpop.f32.mrb[0].mxu0
    %v871 = vadd.f32 0.0, %v870
    %872 = vmatprep.mubr.bf16.mxu0 0
    %873 = vmatmul.mubr.bf16.gmra.mrb[0].mxu0 %v158
    %v874 = vpop.f32.mrb[0].mxu0
    %v875 = vadd.f32 0.0, %v874
    %v876 = vpop.f32.mrb[0].mxu0
    %v877 = vadd.f32 0.0, %v876
    %v878 = vpop.f32.mrb[0].mxu0
    %v879 = vadd.f32 0.0, %v878
    %v880 = vpop.f32.mrb[0].mxu0
    %v881 = vadd.f32 0.0, %v880
    %882 = vmatprep.mubr.bf16.mxu0 0
    %883 = vmatmul.mubr.bf16.gmra.mrb[0].mxu0 %v161
    %v884 = vpop.f32.mrb[0].mxu0
    %v885 = vadd.f32 0.0, %v884
    %v886 = vpop.f32.mrb[0].mxu0
    %v887 = vadd.f32 0.0, %v886
    %v888 = vpop.f32.mrb[0].mxu0
    %v889 = vadd.f32 0.0, %v888
    %v890 = vpop.f32.mrb[0].mxu0
    %v891 = vadd.f32 0.0, %v890
    %892 = vmatprep.mubr.bf16.mxu0 0
    %893 = vmatmul.mubr.bf16.gmra.mrb[0].mxu0 %v164
    %v894 = vpop.f32.mrb[0].mxu0
    %v895 = vadd.f32 0.0, %v894
    %v896 = vpop.f32.mrb[0].mxu0
    %v897 = vadd.f32 0.0, %v896
    %v898 = vpop.f32.mrb[0].mxu0
    %v899 = vadd.f32 0.0, %v898
    %v900 = vpop.f32.mrb[0].mxu0
    %v901 = vadd.f32 0.0, %v900
    %902 = vdwg.mxu0
    %903 = vmatprep.subr.bf16.mxu0 %v219
    %904 = vmatpush1.bf16.msra.mxu0 %v216
    %905 = vmatprep.subr.bf16.mxu0 0
    %906 = vmatpush1.bf16.msra.mxu0 0
    %907 = vmatprep.subr.bf16.mxu0 0
    %908 = vmatpush1.bf16.msra.mxu0 0
    %909 = vmatprep.subr.bf16.mxu0 0
    %910 = vmatpush1.bf16.msra.mxu0 0
    %911 = vmatprep.subr.bf16.mxu0 0
    %912 = vmatpush1.bf16.msra.mxu0 0
    %913 = vmatprep.subr.bf16.mxu0 0
    %914 = vmatpush1.bf16.msra.mxu0 0
    %915 = vmatprep.subr.bf16.mxu0 0
    %916 = vmatpush1.bf16.msra.mxu0 0
    %917 = vmatprep.subr.bf16.mxu0 0
    %918 = vmatpush1.bf16.msra.mxu0 0
    %919 = vmatprep.subr.bf16.mxu0 0
    %920 = vmatpush1.bf16.msra.mxu0 0
    %921 = vmatprep.subr.bf16.mxu0 0
    %922 = vmatpush1.bf16.msra.mxu0 0
    %923 = vmatprep.subr.bf16.mxu0 0
    %924 = vmatpush1.bf16.msra.mxu0 0
    %925 = vmatprep.subr.bf16.mxu0 0
    %926 = vmatpush1.bf16.msra.mxu0 0
    %927 = vmatprep.subr.bf16.mxu0 0
    %928 = vmatpush1.bf16.msra.mxu0 0
    %929 = vmatprep.subr.bf16.mxu0 0
    %930 = vmatpush1.bf16.msra.mxu0 0
    %931 = vmatprep.subr.bf16.mxu0 0
    %932 = vmatpush1.bf16.msra.mxu0 0
    %933 = vmatprep.subr.bf16.mxu0 0
    %934 = vmatpush1.bf16.msra.mxu0 0
    %935 = vmatprep.mubr.bf16.mxu0 0
    %936 = vmatmul.mubr.bf16.gmra.mrb[0].mxu0 %v152
    %v937 = vpop.f32.mrb[0].mxu0
    %v938 = vadd.f32 0.0, %v937
    %v939 = vpop.f32.mrb[0].mxu0
    %v940 = vadd.f32 0.0, %v939
    %v941 = vpop.f32.mrb[0].mxu0
    %v942 = vadd.f32 0.0, %v941
    %v943 = vpop.f32.mrb[0].mxu0
    %v944 = vadd.f32 0.0, %v943
    %945 = vmatprep.mubr.bf16.mxu0 0
    %946 = vmatmul.mubr.bf16.gmra.mrb[0].mxu0 %v155
    %v947 = vpop.f32.mrb[0].mxu0
    %v948 = vadd.f32 0.0, %v947
    %v949 = vpop.f32.mrb[0].mxu0
    %v950 = vadd.f32 0.0, %v949
    %v951 = vpop.f32.mrb[0].mxu0
    %v952 = vadd.f32 0.0, %v951
    %v953 = vpop.f32.mrb[0].mxu0
    %v954 = vadd.f32 0.0, %v953
    %955 = vmatprep.mubr.bf16.mxu0 0
    %956 = vmatmul.mubr.bf16.gmra.mrb[0].mxu0 %v158
    %v957 = vpop.f32.mrb[0].mxu0
    %v958 = vadd.f32 0.0, %v957
    %v959 = vpop.f32.mrb[0].mxu0
    %v960 = vadd.f32 0.0, %v959
    %v961 = vpop.f32.mrb[0].mxu0
    %v962 = vadd.f32 0.0, %v961
    %v963 = vpop.f32.mrb[0].mxu0
    %v964 = vadd.f32 0.0, %v963
    %965 = vmatprep.mubr.bf16.mxu0 0
    %966 = vmatmul.mubr.bf16.gmra.mrb[0].mxu0 %v161
    %v967 = vpop.f32.mrb[0].mxu0
    %v968 = vadd.f32 0.0, %v967
    %v969 = vpop.f32.mrb[0].mxu0
    %v970 = vadd.f32 0.0, %v969
    %v971 = vpop.f32.mrb[0].mxu0
    %v972 = vadd.f32 0.0, %v971
    %v973 = vpop.f32.mrb[0].mxu0
    %v974 = vadd.f32 0.0, %v973
    %975 = vmatprep.mubr.bf16.mxu0 0
    %976 = vmatmul.mubr.bf16.gmra.mrb[0].mxu0 %v164
    %v977 = vpop.f32.mrb[0].mxu0
    %v978 = vadd.f32 0.0, %v977
    %v979 = vpop.f32.mrb[0].mxu0
    %v980 = vadd.f32 0.0, %v979
    %v981 = vpop.f32.mrb[0].mxu0
    %v982 = vadd.f32 0.0, %v981
    %v983 = vpop.f32.mrb[0].mxu0
    %v984 = vadd.f32 0.0, %v983
    %985 = vdwg.mxu0
    %986 = vmatprep.subr.bf16.mxu0 %v225
    %987 = vmatpush1.bf16.msra.mxu0 %v222
    %988 = vmatprep.subr.bf16.mxu0 0
    %989 = vmatpush1.bf16.msra.mxu0 0
    %990 = vmatprep.subr.bf16.mxu0 0
    %991 = vmatpush1.bf16.msra.mxu0 0
    %992 = vmatprep.subr.bf16.mxu0 0
    %993 = vmatpush1.bf16.msra.mxu0 0
    %994 = vmatprep.subr.bf16.mxu0 0
    %995 = vmatpush1.bf16.msra.mxu0 0
    %996 = vmatprep.subr.bf16.mxu0 0
    %997 = vmatpush1.bf16.msra.mxu0 0
    %998 = vmatprep.subr.bf16.mxu0 0
    %999 = vmatpush1.bf16.msra.mxu0 0
    %1000 = vmatprep.subr.bf16.mxu0 0
    %1001 = vmatpush1.bf16.msra.mxu0 0
    %1002 = vmatprep.subr.bf16.mxu0 0
    %1003 = vmatpush1.bf16.msra.mxu0 0
    %1004 = vmatprep.subr.bf16.mxu0 0
    %1005 = vmatpush1.bf16.msra.mxu0 0
    %1006 = vmatprep.subr.bf16.mxu0 0
    %1007 = vmatpush1.bf16.msra.mxu0 0
    %1008 = vmatprep.subr.bf16.mxu0 0
    %1009 = vmatpush1.bf16.msra.mxu0 0
    %1010 = vmatprep.subr.bf16.mxu0 0
    %1011 = vmatpush1.bf16.msra.mxu0 0
    %1012 = vmatprep.subr.bf16.mxu0 0
    %1013 = vmatpush1.bf16.msra.mxu0 0
    %1014 = vmatprep.subr.bf16.mxu0 0
    %1015 = vmatpush1.bf16.msra.mxu0 0
    %1016 = vmatprep.subr.bf16.mxu0 0
    %1017 = vmatpush1.bf16.msra.mxu0 0
    %1018 = vmatprep.mubr.bf16.mxu0 0
    %1019 = vmatmul.mubr.bf16.gmra.mrb[0].mxu0 %v152
    %v1020 = vpop.f32.mrb[0].mxu0
    %v1021 = vadd.f32 0.0, %v1020
    %v1022 = vpop.f32.mrb[0].mxu0
    %v1023 = vadd.f32 0.0, %v1022
    %v1024 = vpop.f32.mrb[0].mxu0
    %v1025 = vadd.f32 0.0, %v1024
    %v1026 = vpop.f32.mrb[0].mxu0
    %v1027 = vadd.f32 0.0, %v1026
    %1028 = vmatprep.mubr.bf16.mxu0 0
    %1029 = vmatmul.mubr.bf16.gmra.mrb[0].mxu0 %v155
    %v1030 = vpop.f32.mrb[0].mxu0
    %v1031 = vadd.f32 0.0, %v1030
    %v1032 = vpop.f32.mrb[0].mxu0
    %v1033 = vadd.f32 0.0, %v1032
    %v1034 = vpop.f32.mrb[0].mxu0
    %v1035 = vadd.f32 0.0, %v1034
    %v1036 = vpop.f32.mrb[0].mxu0
    %v1037 = vadd.f32 0.0, %v1036
    %1038 = vmatprep.mubr.bf16.mxu0 0
    %1039 = vmatmul.mubr.bf16.gmra.mrb[0].mxu0 %v158
    %v1040 = vpop.f32.mrb[0].mxu0
    %v1041 = vadd.f32 0.0, %v1040
    %v1042 = vpop.f32.mrb[0].mxu0
    %v1043 = vadd.f32 0.0, %v1042
    %v1044 = vpop.f32.mrb[0].mxu0
    %v1045 = vadd.f32 0.0, %v1044
    %v1046 = vpop.f32.mrb[0].mxu0
    %v1047 = vadd.f32 0.0, %v1046
    %1048 = vmatprep.mubr.bf16.mxu0 0
    %1049 = vmatmul.mubr.bf16.gmra.mrb[0].mxu0 %v161
    %v1050 = vpop.f32.mrb[0].mxu0
    %v1051 = vadd.f32 0.0, %v1050
    %v1052 = vpop.f32.mrb[0].mxu0
    %v1053 = vadd.f32 0.0, %v1052
    %v1054 = vpop.f32.mrb[0].mxu0
    %v1055 = vadd.f32 0.0, %v1054
    %v1056 = vpop.f32.mrb[0].mxu0
    %v1057 = vadd.f32 0.0, %v1056
    %1058 = vmatprep.mubr.bf16.mxu0 0
    %1059 = vmatmul.mubr.bf16.gmra.mrb[0].mxu0 %v164
    %v1060 = vpop.f32.mrb[0].mxu0
    %v1061 = vadd.f32 0.0, %v1060
    %v1062 = vpop.f32.mrb[0].mxu0
    %v1063 = vadd.f32 0.0, %v1062
    %v1064 = vpop.f32.mrb[0].mxu0
    %v1065 = vadd.f32 0.0, %v1064
    %v1066 = vpop.f32.mrb[0].mxu0
    %v1067 = vadd.f32 0.0, %v1066
    %1068 = vdwg.mxu0
    %1069 = vmatprep.subr.bf16.mxu0 %v231
    %1070 = vmatpush1.bf16.msra.mxu0 %v228
    %1071 = vmatprep.subr.bf16.mxu0 0
    %1072 = vmatpush1.bf16.msra.mxu0 0
    %1073 = vmatprep.subr.bf16.mxu0 0
    %1074 = vmatpush1.bf16.msra.mxu0 0
    %1075 = vmatprep.subr.bf16.mxu0 0
    %1076 = vmatpush1.bf16.msra.mxu0 0
    %1077 = vmatprep.subr.bf16.mxu0 0
    %1078 = vmatpush1.bf16.msra.mxu0 0
    %1079 = vmatprep.subr.bf16.mxu0 0
    %1080 = vmatpush1.bf16.msra.mxu0 0
    %1081 = vmatprep.subr.bf16.mxu0 0
    %1082 = vmatpush1.bf16.msra.mxu0 0
    %1083 = vmatprep.subr.bf16.mxu0 0
    %1084 = vmatpush1.bf16.msra.mxu0 0
    %1085 = vmatprep.subr.bf16.mxu0 0
    %1086 = vmatpush1.bf16.msra.mxu0 0
    %1087 = vmatprep.subr.bf16.mxu0 0
    %1088 = vmatpush1.bf16.msra.mxu0 0
    %1089 = vmatprep.subr.bf16.mxu0 0
    %1090 = vmatpush1.bf16.msra.mxu0 0
    %1091 = vmatprep.subr.bf16.mxu0 0
    %1092 = vmatpush1.bf16.msra.mxu0 0
    %1093 = vmatprep.subr.bf16.mxu0 0
    %1094 = vmatpush1.bf16.msra.mxu0 0
    %1095 = vmatprep.subr.bf16.mxu0 0
    %1096 = vmatpush1.bf16.msra.mxu0 0
    %1097 = vmatprep.subr.bf16.mxu0 0
    %1098 = vmatpush1.bf16.msra.mxu0 0
    %1099 = vmatprep.subr.bf16.mxu0 0
    %1100 = vmatpush1.bf16.msra.mxu0 0
    %1101 = vmatprep.mubr.bf16.mxu0 0
    %1102 = vmatmul.mubr.bf16.gmra.mrb[0].mxu0 %v152
    %v1103 = vpop.f32.mrb[0].mxu0
    %v1104 = vadd.f32 0.0, %v1103
    %v1105 = vpop.f32.mrb[0].mxu0
    %v1106 = vadd.f32 0.0, %v1105
    %v1107 = vpop.f32.mrb[0].mxu0
    %v1108 = vadd.f32 0.0, %v1107
    %v1109 = vpop.f32.mrb[0].mxu0
    %v1110 = vadd.f32 0.0, %v1109
    %1111 = vmatprep.mubr.bf16.mxu0 0
    %1112 = vmatmul.mubr.bf16.gmra.mrb[0].mxu0 %v155
    %v1113 = vpop.f32.mrb[0].mxu0
    %v1114 = vadd.f32 0.0, %v1113
    %v1115 = vpop.f32.mrb[0].mxu0
    %v1116 = vadd.f32 0.0, %v1115
    %v1117 = vpop.f32.mrb[0].mxu0
    %v1118 = vadd.f32 0.0, %v1117
    %v1119 = vpop.f32.mrb[0].mxu0
    %v1120 = vadd.f32 0.0, %v1119
    %1121 = vmatprep.mubr.bf16.mxu0 0
    %1122 = vmatmul.mubr.bf16.gmra.mrb[0].mxu0 %v158
    %v1123 = vpop.f32.mrb[0].mxu0
    %v1124 = vadd.f32 0.0, %v1123
    %v1125 = vpop.f32.mrb[0].mxu0
    %v1126 = vadd.f32 0.0, %v1125
    %v1127 = vpop.f32.mrb[0].mxu0
    %v1128 = vadd.f32 0.0, %v1127
    %v1129 = vpop.f32.mrb[0].mxu0
    %v1130 = vadd.f32 0.0, %v1129
    %1131 = vmatprep.mubr.bf16.mxu0 0
    %1132 = vmatmul.mubr.bf16.gmra.mrb[0].mxu0 %v161
    %v1133 = vpop.f32.mrb[0].mxu0
    %v1134 = vadd.f32 0.0, %v1133
    %v1135 = vpop.f32.mrb[0].mxu0
    %v1136 = vadd.f32 0.0, %v1135
    %v1137 = vpop.f32.mrb[0].mxu0
    %v1138 = vadd.f32 0.0, %v1137
    %v1139 = vpop.f32.mrb[0].mxu0
    %v1140 = vadd.f32 0.0, %v1139
    %1141 = vmatprep.mubr.bf16.mxu0 0
    %1142 = vmatmul.mubr.bf16.gmra.mrb[0].mxu0 %v164
    %v1143 = vpop.f32.mrb[0].mxu0
    %v1144 = vadd.f32 0.0, %v1143
    %v1145 = vpop.f32.mrb[0].mxu0
    %v1146 = vadd.f32 0.0, %v1145
    %v1147 = vpop.f32.mrb[0].mxu0
    %v1148 = vadd.f32 0.0, %v1147
    %v1149 = vpop.f32.mrb[0].mxu0
    %v1150 = vadd.f32 0.0, %v1149
    %1151 = vdwg.mxu0
    %1152 = vmatprep.subr.bf16.mxu0 %v237
    %1153 = vmatpush1.bf16.msra.mxu0 %v234
    %1154 = vmatprep.subr.bf16.mxu0 0
    %1155 = vmatpush1.bf16.msra.mxu0 0
    %1156 = vmatprep.subr.bf16.mxu0 0
    %1157 = vmatpush1.bf16.msra.mxu0 0
    %1158 = vmatprep.subr.bf16.mxu0 0
    %1159 = vmatpush1.bf16.msra.mxu0 0
    %1160 = vmatprep.subr.bf16.mxu0 0
    %1161 = vmatpush1.bf16.msra.mxu0 0
    %1162 = vmatprep.subr.bf16.mxu0 0
    %1163 = vmatpush1.bf16.msra.mxu0 0
    %1164 = vmatprep.subr.bf16.mxu0 0
    %1165 = vmatpush1.bf16.msra.mxu0 0
    %1166 = vmatprep.subr.bf16.mxu0 0
    %1167 = vmatpush1.bf16.msra.mxu0 0
    %1168 = vmatprep.subr.bf16.mxu0 0
    %1169 = vmatpush1.bf16.msra.mxu0 0
    %1170 = vmatprep.subr.bf16.mxu0 0
    %1171 = vmatpush1.bf16.msra.mxu0 0
    %1172 = vmatprep.subr.bf16.mxu0 0
    %1173 = vmatpush1.bf16.msra.mxu0 0
    %1174 = vmatprep.subr.bf16.mxu0 0
    %1175 = vmatpush1.bf16.msra.mxu0 0
    %1176 = vmatprep.subr.bf16.mxu0 0
    %1177 = vmatpush1.bf16.msra.mxu0 0
    %1178 = vmatprep.subr.bf16.mxu0 0
    %1179 = vmatpush1.bf16.msra.mxu0 0
    %1180 = vmatprep.subr.bf16.mxu0 0
    %1181 = vmatpush1.bf16.msra.mxu0 0
    %1182 = vmatprep.subr.bf16.mxu0 0
    %1183 = vmatpush1.bf16.msra.mxu0 0
    %1184 = vmatprep.mubr.bf16.mxu0 0
    %1185 = vmatmul.mubr.bf16.gmra.mrb[0].mxu0 %v152
    %v1186 = vpop.f32.mrb[0].mxu0
    %v1187 = vadd.f32 0.0, %v1186
    %v1188 = vpop.f32.mrb[0].mxu0
    %v1189 = vadd.f32 0.0, %v1188
    %v1190 = vpop.f32.mrb[0].mxu0
    %v1191 = vadd.f32 0.0, %v1190
    %v1192 = vpop.f32.mrb[0].mxu0
    %v1193 = vadd.f32 0.0, %v1192
    %1194 = vmatprep.mubr.bf16.mxu0 0
    %1195 = vmatmul.mubr.bf16.gmra.mrb[0].mxu0 %v155
    %v1196 = vpop.f32.mrb[0].mxu0
    %v1197 = vadd.f32 0.0, %v1196
    %v1198 = vpop.f32.mrb[0].mxu0
    %v1199 = vadd.f32 0.0, %v1198
    %v1200 = vpop.f32.mrb[0].mxu0
    %v1201 = vadd.f32 0.0, %v1200
    %v1202 = vpop.f32.mrb[0].mxu0
    %v1203 = vadd.f32 0.0, %v1202
    %1204 = vmatprep.mubr.bf16.mxu0 0
    %1205 = vmatmul.mubr.bf16.gmra.mrb[0].mxu0 %v158
    %v1206 = vpop.f32.mrb[0].mxu0
    %v1207 = vadd.f32 0.0, %v1206
    %v1208 = vpop.f32.mrb[0].mxu0
    %v1209 = vadd.f32 0.0, %v1208
    %v1210 = vpop.f32.mrb[0].mxu0
    %v1211 = vadd.f32 0.0, %v1210
    %v1212 = vpop.f32.mrb[0].mxu0
    %v1213 = vadd.f32 0.0, %v1212
    %1214 = vmatprep.mubr.bf16.mxu0 0
    %1215 = vmatmul.mubr.bf16.gmra.mrb[0].mxu0 %v161
    %v1216 = vpop.f32.mrb[0].mxu0
    %v1217 = vadd.f32 0.0, %v1216
    %v1218 = vpop.f32.mrb[0].mxu0
    %v1219 = vadd.f32 0.0, %v1218
    %v1220 = vpop.f32.mrb[0].mxu0
    %v1221 = vadd.f32 0.0, %v1220
    %v1222 = vpop.f32.mrb[0].mxu0
    %v1223 = vadd.f32 0.0, %v1222
    %1224 = vmatprep.mubr.bf16.mxu0 0
    %1225 = vmatmul.mubr.bf16.gmra.mrb[0].mxu0 %v164
    %v1226 = vpop.f32.mrb[0].mxu0
    %v1227 = vadd.f32 0.0, %v1226
    %v1228 = vpop.f32.mrb[0].mxu0
    %v1229 = vadd.f32 0.0, %v1228
    %v1230 = vpop.f32.mrb[0].mxu0
    %v1231 = vadd.f32 0.0, %v1230
    %v1232 = vpop.f32.mrb[0].mxu0
    %v1233 = vadd.f32 0.0, %v1232
    %1234 = vdwg.mxu0
    %v1235 = vmax.f32 %v274, 0.0
    %v1236 = vmax.f32 %v276, 0.0
    %v1237 = vmax.f32 %v357, 0.0
    %v1238 = vmax.f32 %v359, 0.0
    %v1239 = vmax.f32 %v440, 0.0
    %v1240 = vmax.f32 %v442, 0.0
    %v1241 = vmax.f32 %v523, 0.0
    %v1242 = vmax.f32 %v525, 0.0
    %v1243 = vmax.f32 %v606, 0.0
    %v1244 = vmax.f32 %v608, 0.0
    %v1245 = vmax.f32 %v689, 0.0
    %v1246 = vmax.f32 %v691, 0.0
    %v1247 = vmax.f32 %v772, 0.0
    %v1248 = vmax.f32 %v774, 0.0
    %v1249 = vmax.f32 %v855, 0.0
    %v1250 = vmax.f32 %v857, 0.0
    %v1251 = vmax.f32 %v938, 0.0
    %v1252 = vmax.f32 %v940, 0.0
    %v1253 = vmax.f32 %v1021, 0.0
    %v1254 = vmax.f32 %v1023, 0.0
    %v1255 = vmax.f32 %v1104, 0.0
    %v1256 = vmax.f32 %v1106, 0.0
    %v1257 = vmax.f32 %v1187, 0.0
    %v1258 = vmax.f32 %v1189, 0.0
    %v1259 = vmax.f32 %v278, 0.0
    %v1260 = vmax.f32 %v280, 0.0
    %v1261 = vmax.f32 %v361, 0.0
    %v1262 = vmax.f32 %v363, 0.0
    %v1263 = vmax.f32 %v444, 0.0
    %v1264 = vmax.f32 %v446, 0.0
    %v1265 = vmax.f32 %v527, 0.0
    %v1266 = vmax.f32 %v529, 0.0
    %v1267 = vmax.f32 %v610, 0.0
    %v1268 = vmax.f32 %v612, 0.0
    %v1269 = vmax.f32 %v693, 0.0
    %v1270 = vmax.f32 %v695, 0.0
    %v1271 = vmax.f32 %v776, 0.0
    %v1272 = vmax.f32 %v778, 0.0
    %v1273 = vmax.f32 %v859, 0.0
    %v1274 = vmax.f32 %v861, 0.0
    %v1275 = vmax.f32 %v942, 0.0
    %v1276 = vmax.f32 %v944, 0.0
    %v1277 = vmax.f32 %v1025, 0.0
    %v1278 = vmax.f32 %v1027, 0.0
    %v1279 = vmax.f32 %v1108, 0.0
    %v1280 = vmax.f32 %v1110, 0.0
    %v1281 = vmax.f32 %v1191, 0.0
    %v1282 = vmax.f32 %v1193, 0.0
    %v1283 = vmax.f32 %v284, 0.0
    %v1284 = vmax.f32 %v286, 0.0
    %v1285 = vmax.f32 %v367, 0.0
    %v1286 = vmax.f32 %v369, 0.0
    %v1287 = vmax.f32 %v450, 0.0
    %v1288 = vmax.f32 %v452, 0.0
    %v1289 = vmax.f32 %v533, 0.0
    %v1290 = vmax.f32 %v535, 0.0
    %v1291 = vmax.f32 %v616, 0.0
    %v1292 = vmax.f32 %v618, 0.0
    %v1293 = vmax.f32 %v699, 0.0
    %v1294 = vmax.f32 %v701, 0.0
    %v1295 = vmax.f32 %v782, 0.0
    %v1296 = vmax.f32 %v784, 0.0
    %v1297 = vmax.f32 %v865, 0.0
    %v1298 = vmax.f32 %v867, 0.0
    %v1299 = vmax.f32 %v948, 0.0
    %v1300 = vmax.f32 %v950, 0.0
    %v1301 = vmax.f32 %v1031, 0.0
    %v1302 = vmax.f32 %v1033, 0.0
    %v1303 = vmax.f32 %v1114, 0.0
    %v1304 = vmax.f32 %v1116, 0.0
    %v1305 = vmax.f32 %v1197, 0.0
    %v1306 = vmax.f32 %v1199, 0.0
    %v1307 = vmax.f32 %v288, 0.0
    %v1308 = vmax.f32 %v290, 0.0
    %v1309 = vmax.f32 %v371, 0.0
    %v1310 = vmax.f32 %v373, 0.0
    %v1311 = vmax.f32 %v454, 0.0
    %v1312 = vmax.f32 %v456, 0.0
    %v1313 = vmax.f32 %v537, 0.0
    %v1314 = vmax.f32 %v539, 0.0
    %v1315 = vmax.f32 %v620, 0.0
    %v1316 = vmax.f32 %v622, 0.0
    %v1317 = vmax.f32 %v703, 0.0
    %v1318 = vmax.f32 %v705, 0.0
    %v1319 = vmax.f32 %v786, 0.0
    %v1320 = vmax.f32 %v788, 0.0
    %v1321 = vmax.f32 %v869, 0.0
    %v1322 = vmax.f32 %v871, 0.0
    %v1323 = vmax.f32 %v952, 0.0
    %v1324 = vmax.f32 %v954, 0.0
    %v1325 = vmax.f32 %v1035, 0.0
    %v1326 = vmax.f32 %v1037, 0.0
    %v1327 = vmax.f32 %v1118, 0.0
    %v1328 = vmax.f32 %v1120, 0.0
    %v1329 = vmax.f32 %v1201, 0.0
    %v1330 = vmax.f32 %v1203, 0.0
    %v1331 = vmax.f32 %v294, 0.0
    %v1332 = vmax.f32 %v296, 0.0
    %v1333 = vmax.f32 %v377, 0.0
    %v1334 = vmax.f32 %v379, 0.0
    %v1335 = vmax.f32 %v460, 0.0
    %v1336 = vmax.f32 %v462, 0.0
    %v1337 = vmax.f32 %v543, 0.0
    %v1338 = vmax.f32 %v545, 0.0
    %v1339 = vmax.f32 %v626, 0.0
    %v1340 = vmax.f32 %v628, 0.0
    %v1341 = vmax.f32 %v709, 0.0
    %v1342 = vmax.f32 %v711, 0.0
    %v1343 = vmax.f32 %v792, 0.0
    %v1344 = vmax.f32 %v794, 0.0
    %v1345 = vmax.f32 %v875, 0.0
    %v1346 = vmax.f32 %v877, 0.0
    %v1347 = vmax.f32 %v958, 0.0
    %v1348 = vmax.f32 %v960, 0.0
    %v1349 = vmax.f32 %v1041, 0.0
    %v1350 = vmax.f32 %v1043, 0.0
    %v1351 = vmax.f32 %v1124, 0.0
    %v1352 = vmax.f32 %v1126, 0.0
    %v1353 = vmax.f32 %v1207, 0.0
    %v1354 = vmax.f32 %v1209, 0.0
    %v1355 = vmax.f32 %v298, 0.0
    %v1356 = vmax.f32 %v300, 0.0
    %v1357 = vmax.f32 %v381, 0.0
    %v1358 = vmax.f32 %v383, 0.0
    %v1359 = vmax.f32 %v464, 0.0
    %v1360 = vmax.f32 %v466, 0.0
    %v1361 = vmax.f32 %v547, 0.0
    %v1362 = vmax.f32 %v549, 0.0
    %v1363 = vmax.f32 %v630, 0.0
    %v1364 = vmax.f32 %v632, 0.0
    %v1365 = vmax.f32 %v713, 0.0
    %v1366 = vmax.f32 %v715, 0.0
    %v1367 = vmax.f32 %v796, 0.0
    %v1368 = vmax.f32 %v798, 0.0
    %v1369 = vmax.f32 %v879, 0.0
    %v1370 = vmax.f32 %v881, 0.0
    %v1371 = vmax.f32 %v962, 0.0
    %v1372 = vmax.f32 %v964, 0.0
    %v1373 = vmax.f32 %v1045, 0.0
    %v1374 = vmax.f32 %v1047, 0.0
    %v1375 = vmax.f32 %v1128, 0.0
    %v1376 = vmax.f32 %v1130, 0.0
    %v1377 = vmax.f32 %v1211, 0.0
    %v1378 = vmax.f32 %v1213, 0.0
    %v1379 = vmax.f32 %v304, 0.0
    %v1380 = vmax.f32 %v306, 0.0
    %v1381 = vmax.f32 %v387, 0.0
    %v1382 = vmax.f32 %v389, 0.0
    %v1383 = vmax.f32 %v470, 0.0
    %v1384 = vmax.f32 %v472, 0.0
    %v1385 = vmax.f32 %v553, 0.0
    %v1386 = vmax.f32 %v555, 0.0
    %v1387 = vmax.f32 %v636, 0.0
    %v1388 = vmax.f32 %v638, 0.0
    %v1389 = vmax.f32 %v719, 0.0
    %v1390 = vmax.f32 %v721, 0.0
    %v1391 = vmax.f32 %v802, 0.0
    %v1392 = vmax.f32 %v804, 0.0
    %v1393 = vmax.f32 %v885, 0.0
    %v1394 = vmax.f32 %v887, 0.0
    %v1395 = vmax.f32 %v968, 0.0
    %v1396 = vmax.f32 %v970, 0.0
    %v1397 = vmax.f32 %v1051, 0.0
    %v1398 = vmax.f32 %v1053, 0.0
    %v1399 = vmax.f32 %v1134, 0.0
    %v1400 = vmax.f32 %v1136, 0.0
    %v1401 = vmax.f32 %v1217, 0.0
    %v1402 = vmax.f32 %v1219, 0.0
    %v1403 = vmax.f32 %v308, 0.0
    %v1404 = vmax.f32 %v310, 0.0
    %v1405 = vmax.f32 %v391, 0.0
    %v1406 = vmax.f32 %v393, 0.0
    %v1407 = vmax.f32 %v474, 0.0
    %v1408 = vmax.f32 %v476, 0.0
    %v1409 = vmax.f32 %v557, 0.0
    %v1410 = vmax.f32 %v559, 0.0
    %v1411 = vmax.f32 %v640, 0.0
    %v1412 = vmax.f32 %v642, 0.0
    %v1413 = vmax.f32 %v723, 0.0
    %v1414 = vmax.f32 %v725, 0.0
    %v1415 = vmax.f32 %v806, 0.0
    %v1416 = vmax.f32 %v808, 0.0
    %v1417 = vmax.f32 %v889, 0.0
    %v1418 = vmax.f32 %v891, 0.0
    %v1419 = vmax.f32 %v972, 0.0
    %v1420 = vmax.f32 %v974, 0.0
    %v1421 = vmax.f32 %v1055, 0.0
    %v1422 = vmax.f32 %v1057, 0.0
    %v1423 = vmax.f32 %v1138, 0.0
    %v1424 = vmax.f32 %v1140, 0.0
    %v1425 = vmax.f32 %v1221, 0.0
    %v1426 = vmax.f32 %v1223, 0.0
    %v1427 = vld [vmem:[%s2] sm:$0xf]
    %v1428 = vld [vmem:[%s2 + $0x4] sm:$0xf]
    %v1429 = vld [vmem:[%s2 + $0x8] sm:$0xf]
    %v1430 = vld [vmem:[%s2 + $0xc] sm:$0xf]
    %v1431 = vld [vmem:[%s2 + $0x10] sm:$0xf]
    %v1432 = vld [vmem:[%s2 + $0x14] sm:$0xf]
    %v1433 = vld [vmem:[%s2 + $0x18] sm:$0xf]
    %v1434 = vld [vmem:[%s2 + $0x1c] sm:$0xf]
    %v1435 = vpack.c.bf16 %v1259, %v1235
    %v1436 = vpack.c.bf16 %v1260, %v1236
    %v1437 = vpack.c.bf16 %v1261, %v1237
    %v1438 = vpack.c.bf16 %v1262, %v1238
    %v1439 = vpack.c.bf16 %v1263, %v1239
    %v1440 = vpack.c.bf16 %v1264, %v1240
    %v1441 = vpack.c.bf16 %v1265, %v1241
    %v1442 = vpack.c.bf16 %v1266, %v1242
    %v1443 = vpack.c.bf16 %v1267, %v1243
    %v1444 = vpack.c.bf16 %v1268, %v1244
    %v1445 = vpack.c.bf16 %v1269, %v1245
    %v1446 = vpack.c.bf16 %v1270, %v1246
    %v1447 = vpack.c.bf16 %v1271, %v1247
    %v1448 = vpack.c.bf16 %v1272, %v1248
    %v1449 = vpack.c.bf16 %v1273, %v1249
    %v1450 = vpack.c.bf16 %v1274, %v1250
    %v1451 = vpack.c.bf16 %v1275, %v1251
    %v1452 = vpack.c.bf16 %v1276, %v1252
    %v1453 = vpack.c.bf16 %v1277, %v1253
    %v1454 = vpack.c.bf16 %v1278, %v1254
    %v1455 = vpack.c.bf16 %v1279, %v1255
    %v1456 = vpack.c.bf16 %v1280, %v1256
    %v1457 = vpack.c.bf16 %v1281, %v1257
    %v1458 = vpack.c.bf16 %v1282, %v1258
    %v1459 = vpack.c.bf16 %v1307, %v1283
    %v1460 = vpack.c.bf16 %v1308, %v1284
    %v1461 = vpack.c.bf16 %v1309, %v1285
    %v1462 = vpack.c.bf16 %v1310, %v1286
    %v1463 = vpack.c.bf16 %v1311, %v1287
    %v1464 = vpack.c.bf16 %v1312, %v1288
    %v1465 = vpack.c.bf16 %v1313, %v1289
    %v1466 = vpack.c.bf16 %v1314, %v1290
    %v1467 = vpack.c.bf16 %v1315, %v1291
    %v1468 = vpack.c.bf16 %v1316, %v1292
    %v1469 = vpack.c.bf16 %v1317, %v1293
    %v1470 = vpack.c.bf16 %v1318, %v1294
    %v1471 = vpack.c.bf16 %v1319, %v1295
    %v1472 = vpack.c.bf16 %v1320, %v1296
    %v1473 = vpack.c.bf16 %v1321, %v1297
    %v1474 = vpack.c.bf16 %v1322, %v1298
    %v1475 = vpack.c.bf16 %v1323, %v1299
    %v1476 = vpack.c.bf16 %v1324, %v1300
    %v1477 = vpack.c.bf16 %v1325, %v1301
    %v1478 = vpack.c.bf16 %v1326, %v1302
    %v1479 = vpack.c.bf16 %v1327, %v1303
    %v1480 = vpack.c.bf16 %v1328, %v1304
    %v1481 = vpack.c.bf16 %v1329, %v1305
    %v1482 = vpack.c.bf16 %v1330, %v1306
    %v1483 = vpack.c.bf16 %v1355, %v1331
    %v1484 = vpack.c.bf16 %v1356, %v1332
    %v1485 = vpack.c.bf16 %v1357, %v1333
    %v1486 = vpack.c.bf16 %v1358, %v1334
    %v1487 = vpack.c.bf16 %v1359, %v1335
    %v1488 = vpack.c.bf16 %v1360, %v1336
    %v1489 = vpack.c.bf16 %v1361, %v1337
    %v1490 = vpack.c.bf16 %v1362, %v1338
    %v1491 = vpack.c.bf16 %v1363, %v1339
    %v1492 = vpack.c.bf16 %v1364, %v1340
    %v1493 = vpack.c.bf16 %v1365, %v1341
    %v1494 = vpack.c.bf16 %v1366, %v1342
    %v1495 = vpack.c.bf16 %v1367, %v1343
    %v1496 = vpack.c.bf16 %v1368, %v1344
    %v1497 = vpack.c.bf16 %v1369, %v1345
    %v1498 = vpack.c.bf16 %v1370, %v1346
    %v1499 = vpack.c.bf16 %v1371, %v1347
    %v1500 = vpack.c.bf16 %v1372, %v1348
    %v1501 = vpack.c.bf16 %v1373, %v1349
    %v1502 = vpack.c.bf16 %v1374, %v1350
    %v1503 = vpack.c.bf16 %v1375, %v1351
    %v1504 = vpack.c.bf16 %v1376, %v1352
    %v1505 = vpack.c.bf16 %v1377, %v1353
    %v1506 = vpack.c.bf16 %v1378, %v1354
    %v1507 = vpack.c.bf16 %v1403, %v1379
    %v1508 = vpack.c.bf16 %v1404, %v1380
    %v1509 = vpack.c.bf16 %v1405, %v1381
    %v1510 = vpack.c.bf16 %v1406, %v1382
    %v1511 = vpack.c.bf16 %v1407, %v1383
    %v1512 = vpack.c.bf16 %v1408, %v1384
    %v1513 = vpack.c.bf16 %v1409, %v1385
    %v1514 = vpack.c.bf16 %v1410, %v1386
    %v1515 = vpack.c.bf16 %v1411, %v1387
    %v1516 = vpack.c.bf16 %v1412, %v1388
    %v1517 = vpack.c.bf16 %v1413, %v1389
    %v1518 = vpack.c.bf16 %v1414, %v1390
    %v1519 = vpack.c.bf16 %v1415, %v1391
    %v1520 = vpack.c.bf16 %v1416, %v1392
    %v1521 = vpack.c.bf16 %v1417, %v1393
    %v1522 = vpack.c.bf16 %v1418, %v1394
    %v1523 = vpack.c.bf16 %v1419, %v1395
    %v1524 = vpack.c.bf16 %v1420, %v1396
    %v1525 = vpack.c.bf16 %v1421, %v1397
    %v1526 = vpack.c.bf16 %v1422, %v1398
    %v1527 = vpack.c.bf16 %v1423, %v1399
    %v1528 = vpack.c.bf16 %v1424, %v1400
    %v1529 = vpack.c.bf16 %v1425, %v1401
    %v1530 = vpack.c.bf16 %v1426, %v1402
    %v1539 = vunpack.c.l.b16 %v1427
    %v1540 = vunpack.c.l.b16 %v1428
    %v1541 = vunpack.c.l.b16 %v1429
    %v1542 = vunpack.c.l.b16 %v1430
    %v1543 = vunpack.c.l.b16 %v1431
    %v1544 = vunpack.c.l.b16 %v1432
    %v1545 = vunpack.c.l.b16 %v1433
    %v1546 = vunpack.c.l.b16 %v1434
    %v1547 = vpack.c.b16 %v1540, %v1539
    %v1548 = vpack.c.b16 %v1542, %v1541
    %v1549 = vpack.c.b16 %v1544, %v1543
    %v1550 = vpack.c.b16 %v1546, %v1545
    %vm1551 = vcmask 523264
    %v1553 = vsel %vm1551, %v1547, 0
    %v1556 = vsel %vm1551, %v1548, 0
    %v1559 = vsel %vm1551, %v1549, 0
    %v1562 = vsel %vm1551, %v1550, 0
    %1564 = vmatprep.subr.bf16.mxu0 %v1436
    %1565 = vmatpush1.bf16.msra.mxu0 %v1435
    %1566 = vmatprep.subr.bf16.mxu0 %v1460
    %1567 = vmatpush1.bf16.msra.mxu0 %v1459
    %1568 = vmatprep.subr.bf16.mxu0 %v1484
    %1569 = vmatpush1.bf16.msra.mxu0 %v1483
    %1570 = vmatprep.subr.bf16.mxu0 %v1508
    %1571 = vmatpush1.bf16.msra.mxu0 %v1507
    %1572 = vmatprep.subr.bf16.mxu0 0
    %1573 = vmatpush1.bf16.msra.mxu0 0
    %1574 = vmatprep.subr.bf16.mxu0 0
    %1575 = vmatpush1.bf16.msra.mxu0 0
    %1576 = vmatprep.subr.bf16.mxu0 0
    %1577 = vmatpush1.bf16.msra.mxu0 0
    %1578 = vmatprep.subr.bf16.mxu0 0
    %1579 = vmatpush1.bf16.msra.mxu0 0
    %1580 = vmatprep.subr.bf16.mxu0 0
    %1581 = vmatpush1.bf16.msra.mxu0 0
    %1582 = vmatprep.subr.bf16.mxu0 0
    %1583 = vmatpush1.bf16.msra.mxu0 0
    %1584 = vmatprep.subr.bf16.mxu0 0
    %1585 = vmatpush1.bf16.msra.mxu0 0
    %1586 = vmatprep.subr.bf16.mxu0 0
    %1587 = vmatpush1.bf16.msra.mxu0 0
    %1588 = vmatprep.subr.bf16.mxu0 0
    %1589 = vmatpush1.bf16.msra.mxu0 0
    %1590 = vmatprep.subr.bf16.mxu0 0
    %1591 = vmatpush1.bf16.msra.mxu0 0
    %1592 = vmatprep.subr.bf16.mxu0 0
    %1593 = vmatpush1.bf16.msra.mxu0 0
    %1594 = vmatprep.subr.bf16.mxu0 0
    %1595 = vmatpush1.bf16.msra.mxu0 0
    %1596 = vmatprep.mubr.bf16.mxu0 0
    %1597 = vmatmul.mubr.bf16.gmra.mrb[0].mxu0 %v1553
    %v1598 = vpop.f32.mrb[0].mxu0
    %v1599 = vadd.f32 0.0, %v1598
    %v1600 = vpop.f32.mrb[0].mxu0
    %v1601 = vadd.f32 0.0, %v1600
    %v1602 = vpop.f32.mrb[0].mxu0
    %v1603 = vadd.f32 0.0, %v1602
    %v1604 = vpop.f32.mrb[0].mxu0
    %v1605 = vadd.f32 0.0, %v1604
    %1606 = vmatprep.mubr.bf16.mxu0 0
    %1607 = vmatmul.mubr.bf16.gmra.mrb[0].mxu0 %v1556
    %v1608 = vpop.f32.mrb[0].mxu0
    %v1609 = vadd.f32 0.0, %v1608
    %v1610 = vpop.f32.mrb[0].mxu0
    %v1611 = vadd.f32 0.0, %v1610
    %v1612 = vpop.f32.mrb[0].mxu0
    %v1613 = vadd.f32 0.0, %v1612
    %v1614 = vpop.f32.mrb[0].mxu0
    %v1615 = vadd.f32 0.0, %v1614
    %1616 = vmatprep.mubr.bf16.mxu0 0
    %1617 = vmatmul.mubr.bf16.gmra.mrb[0].mxu0 %v1559
    %v1618 = vpop.f32.mrb[0].mxu0
    %v1619 = vadd.f32 0.0, %v1618
    %v1620 = vpop.f32.mrb[0].mxu0
    %v1621 = vadd.f32 0.0, %v1620
    %v1622 = vpop.f32.mrb[0].mxu0
    %v1623 = vadd.f32 0.0, %v1622
    %v1624 = vpop.f32.mrb[0].mxu0
    %v1625 = vadd.f32 0.0, %v1624
    %1626 = vmatprep.mubr.bf16.mxu0 0
    %1627 = vmatmul.mubr.bf16.gmra.mrb[0].mxu0 %v1562
    %v1628 = vpop.f32.mrb[0].mxu0
    %v1629 = vadd.f32 0.0, %v1628
    %v1630 = vpop.f32.mrb[0].mxu0
    %v1631 = vadd.f32 0.0, %v1630
    %v1632 = vpop.f32.mrb[0].mxu0
    %v1633 = vadd.f32 0.0, %v1632
    %v1634 = vpop.f32.mrb[0].mxu0
    %v1635 = vadd.f32 0.0, %v1634
    %1636 = vdwg.mxu0
    %1637 = vmatprep.subr.bf16.mxu0 %v1438
    %1638 = vmatpush1.bf16.msra.mxu0 %v1437
    %1639 = vmatprep.subr.bf16.mxu0 %v1462
    %1640 = vmatpush1.bf16.msra.mxu0 %v1461
    %1641 = vmatprep.subr.bf16.mxu0 %v1486
    %1642 = vmatpush1.bf16.msra.mxu0 %v1485
    %1643 = vmatprep.subr.bf16.mxu0 %v1510
    %1644 = vmatpush1.bf16.msra.mxu0 %v1509
    %1645 = vmatprep.subr.bf16.mxu0 0
    %1646 = vmatpush1.bf16.msra.mxu0 0
    %1647 = vmatprep.subr.bf16.mxu0 0
    %1648 = vmatpush1.bf16.msra.mxu0 0
    %1649 = vmatprep.subr.bf16.mxu0 0
    %1650 = vmatpush1.bf16.msra.mxu0 0
    %1651 = vmatprep.subr.bf16.mxu0 0
    %1652 = vmatpush1.bf16.msra.mxu0 0
    %1653 = vmatprep.subr.bf16.mxu0 0
    %1654 = vmatpush1.bf16.msra.mxu0 0
    %1655 = vmatprep.subr.bf16.mxu0 0
    %1656 = vmatpush1.bf16.msra.mxu0 0
    %1657 = vmatprep.subr.bf16.mxu0 0
    %1658 = vmatpush1.bf16.msra.mxu0 0
    %1659 = vmatprep.subr.bf16.mxu0 0
    %1660 = vmatpush1.bf16.msra.mxu0 0
    %1661 = vmatprep.subr.bf16.mxu0 0
    %1662 = vmatpush1.bf16.msra.mxu0 0
    %1663 = vmatprep.subr.bf16.mxu0 0
    %1664 = vmatpush1.bf16.msra.mxu0 0
    %1665 = vmatprep.subr.bf16.mxu0 0
    %1666 = vmatpush1.bf16.msra.mxu0 0
    %1667 = vmatprep.subr.bf16.mxu0 0
    %1668 = vmatpush1.bf16.msra.mxu0 0
    %1669 = vmatprep.mubr.bf16.mxu0 0
    %1670 = vmatmul.mubr.bf16.gmra.mrb[0].mxu0 %v1553
    %v1671 = vpop.f32.mrb[0].mxu0
    %v1672 = vadd.f32 0.0, %v1671
    %v1673 = vpop.f32.mrb[0].mxu0
    %v1674 = vadd.f32 0.0, %v1673
    %v1675 = vpop.f32.mrb[0].mxu0
    %v1676 = vadd.f32 0.0, %v1675
    %v1677 = vpop.f32.mrb[0].mxu0
    %v1678 = vadd.f32 0.0, %v1677
    %1679 = vmatprep.mubr.bf16.mxu0 0
    %1680 = vmatmul.mubr.bf16.gmra.mrb[0].mxu0 %v1556
    %v1681 = vpop.f32.mrb[0].mxu0
    %v1682 = vadd.f32 0.0, %v1681
    %v1683 = vpop.f32.mrb[0].mxu0
    %v1684 = vadd.f32 0.0, %v1683
    %v1685 = vpop.f32.mrb[0].mxu0
    %v1686 = vadd.f32 0.0, %v1685
    %v1687 = vpop.f32.mrb[0].mxu0
    %v1688 = vadd.f32 0.0, %v1687
    %1689 = vmatprep.mubr.bf16.mxu0 0
    %1690 = vmatmul.mubr.bf16.gmra.mrb[0].mxu0 %v1559
    %v1691 = vpop.f32.mrb[0].mxu0
    %v1692 = vadd.f32 0.0, %v1691
    %v1693 = vpop.f32.mrb[0].mxu0
    %v1694 = vadd.f32 0.0, %v1693
    %v1695 = vpop.f32.mrb[0].mxu0
    %v1696 = vadd.f32 0.0, %v1695
    %v1697 = vpop.f32.mrb[0].mxu0
    %v1698 = vadd.f32 0.0, %v1697
    %1699 = vmatprep.mubr.bf16.mxu0 0
    %1700 = vmatmul.mubr.bf16.gmra.mrb[0].mxu0 %v1562
    %v1701 = vpop.f32.mrb[0].mxu0
    %v1702 = vadd.f32 0.0, %v1701
    %v1703 = vpop.f32.mrb[0].mxu0
    %v1704 = vadd.f32 0.0, %v1703
    %v1705 = vpop.f32.mrb[0].mxu0
    %v1706 = vadd.f32 0.0, %v1705
    %v1707 = vpop.f32.mrb[0].mxu0
    %v1708 = vadd.f32 0.0, %v1707
    %1709 = vdwg.mxu0
    %1710 = vmatprep.subr.bf16.mxu0 %v1440
    %1711 = vmatpush1.bf16.msra.mxu0 %v1439
    %1712 = vmatprep.subr.bf16.mxu0 %v1464
    %1713 = vmatpush1.bf16.msra.mxu0 %v1463
    %1714 = vmatprep.subr.bf16.mxu0 %v1488
    %1715 = vmatpush1.bf16.msra.mxu0 %v1487
    %1716 = vmatprep.subr.bf16.mxu0 %v1512
    %1717 = vmatpush1.bf16.msra.mxu0 %v1511
    %1718 = vmatprep.subr.bf16.mxu0 0
    %1719 = vmatpush1.bf16.msra.mxu0 0
    %1720 = vmatprep.subr.bf16.mxu0 0
    %1721 = vmatpush1.bf16.msra.mxu0 0
    %1722 = vmatprep.subr.bf16.mxu0 0
    %1723 = vmatpush1.bf16.msra.mxu0 0
    %1724 = vmatprep.subr.bf16.mxu0 0
    %1725 = vmatpush1.bf16.msra.mxu0 0
    %1726 = vmatprep.subr.bf16.mxu0 0
    %1727 = vmatpush1.bf16.msra.mxu0 0
    %1728 = vmatprep.subr.bf16.mxu0 0
    %1729 = vmatpush1.bf16.msra.mxu0 0
    %1730 = vmatprep.subr.bf16.mxu0 0
    %1731 = vmatpush1.bf16.msra.mxu0 0
    %1732 = vmatprep.subr.bf16.mxu0 0
    %1733 = vmatpush1.bf16.msra.mxu0 0
    %1734 = vmatprep.subr.bf16.mxu0 0
    %1735 = vmatpush1.bf16.msra.mxu0 0
    %1736 = vmatprep.subr.bf16.mxu0 0
    %1737 = vmatpush1.bf16.msra.mxu0 0
    %1738 = vmatprep.subr.bf16.mxu0 0
    %1739 = vmatpush1.bf16.msra.mxu0 0
    %1740 = vmatprep.subr.bf16.mxu0 0
    %1741 = vmatpush1.bf16.msra.mxu0 0
    %1742 = vmatprep.mubr.bf16.mxu0 0
    %1743 = vmatmul.mubr.bf16.gmra.mrb[0].mxu0 %v1553
    %v1744 = vpop.f32.mrb[0].mxu0
    %v1745 = vadd.f32 0.0, %v1744
    %v1746 = vpop.f32.mrb[0].mxu0
    %v1747 = vadd.f32 0.0, %v1746
    %v1748 = vpop.f32.mrb[0].mxu0
    %v1749 = vadd.f32 0.0, %v1748
    %v1750 = vpop.f32.mrb[0].mxu0
    %v1751 = vadd.f32 0.0, %v1750
    %1752 = vmatprep.mubr.bf16.mxu0 0
    %1753 = vmatmul.mubr.bf16.gmra.mrb[0].mxu0 %v1556
    %v1754 = vpop.f32.mrb[0].mxu0
    %v1755 = vadd.f32 0.0, %v1754
    %v1756 = vpop.f32.mrb[0].mxu0
    %v1757 = vadd.f32 0.0, %v1756
    %v1758 = vpop.f32.mrb[0].mxu0
    %v1759 = vadd.f32 0.0, %v1758
    %v1760 = vpop.f32.mrb[0].mxu0
    %v1761 = vadd.f32 0.0, %v1760
    %1762 = vmatprep.mubr.bf16.mxu0 0
    %1763 = vmatmul.mubr.bf16.gmra.mrb[0].mxu0 %v1559
    %v1764 = vpop.f32.mrb[0].mxu0
    %v1765 = vadd.f32 0.0, %v1764
    %v1766 = vpop.f32.mrb[0].mxu0
    %v1767 = vadd.f32 0.0, %v1766
    %v1768 = vpop.f32.mrb[0].mxu0
    %v1769 = vadd.f32 0.0, %v1768
    %v1770 = vpop.f32.mrb[0].mxu0
    %v1771 = vadd.f32 0.0, %v1770
    %1772 = vmatprep.mubr.bf16.mxu0 0
    %1773 = vmatmul.mubr.bf16.gmra.mrb[0].mxu0 %v1562
    %v1774 = vpop.f32.mrb[0].mxu0
    %v1775 = vadd.f32 0.0, %v1774
    %v1776 = vpop.f32.mrb[0].mxu0
    %v1777 = vadd.f32 0.0, %v1776
    %v1778 = vpop.f32.mrb[0].mxu0
    %v1779 = vadd.f32 0.0, %v1778
    %v1780 = vpop.f32.mrb[0].mxu0
    %v1781 = vadd.f32 0.0, %v1780
    %1782 = vdwg.mxu0
    %1783 = vmatprep.subr.bf16.mxu0 %v1442
    %1784 = vmatpush1.bf16.msra.mxu0 %v1441
    %1785 = vmatprep.subr.bf16.mxu0 %v1466
    %1786 = vmatpush1.bf16.msra.mxu0 %v1465
    %1787 = vmatprep.subr.bf16.mxu0 %v1490
    %1788 = vmatpush1.bf16.msra.mxu0 %v1489
    %1789 = vmatprep.subr.bf16.mxu0 %v1514
    %1790 = vmatpush1.bf16.msra.mxu0 %v1513
    %1791 = vmatprep.subr.bf16.mxu0 0
    %1792 = vmatpush1.bf16.msra.mxu0 0
    %1793 = vmatprep.subr.bf16.mxu0 0
    %1794 = vmatpush1.bf16.msra.mxu0 0
    %1795 = vmatprep.subr.bf16.mxu0 0
    %1796 = vmatpush1.bf16.msra.mxu0 0
    %1797 = vmatprep.subr.bf16.mxu0 0
    %1798 = vmatpush1.bf16.msra.mxu0 0
    %1799 = vmatprep.subr.bf16.mxu0 0
    %1800 = vmatpush1.bf16.msra.mxu0 0
    %1801 = vmatprep.subr.bf16.mxu0 0
    %1802 = vmatpush1.bf16.msra.mxu0 0
    %1803 = vmatprep.subr.bf16.mxu0 0
    %1804 = vmatpush1.bf16.msra.mxu0 0
    %1805 = vmatprep.subr.bf16.mxu0 0
    %1806 = vmatpush1.bf16.msra.mxu0 0
    %1807 = vmatprep.subr.bf16.mxu0 0
    %1808 = vmatpush1.bf16.msra.mxu0 0
    %1809 = vmatprep.subr.bf16.mxu0 0
    %1810 = vmatpush1.bf16.msra.mxu0 0
    %1811 = vmatprep.subr.bf16.mxu0 0
    %1812 = vmatpush1.bf16.msra.mxu0 0
    %1813 = vmatprep.subr.bf16.mxu0 0
    %1814 = vmatpush1.bf16.msra.mxu0 0
    %1815 = vmatprep.mubr.bf16.mxu0 0
    %1816 = vmatmul.mubr.bf16.gmra.mrb[0].mxu0 %v1553
    %v1817 = vpop.f32.mrb[0].mxu0
    %v1818 = vadd.f32 0.0, %v1817
    %v1819 = vpop.f32.mrb[0].mxu0
    %v1820 = vadd.f32 0.0, %v1819
    %v1821 = vpop.f32.mrb[0].mxu0
    %v1822 = vadd.f32 0.0, %v1821
    %v1823 = vpop.f32.mrb[0].mxu0
    %v1824 = vadd.f32 0.0, %v1823
    %1825 = vmatprep.mubr.bf16.mxu0 0
    %1826 = vmatmul.mubr.bf16.gmra.mrb[0].mxu0 %v1556
    %v1827 = vpop.f32.mrb[0].mxu0
    %v1828 = vadd.f32 0.0, %v1827
    %v1829 = vpop.f32.mrb[0].mxu0
    %v1830 = vadd.f32 0.0, %v1829
    %v1831 = vpop.f32.mrb[0].mxu0
    %v1832 = vadd.f32 0.0, %v1831
    %v1833 = vpop.f32.mrb[0].mxu0
    %v1834 = vadd.f32 0.0, %v1833
    %1835 = vmatprep.mubr.bf16.mxu0 0
    %1836 = vmatmul.mubr.bf16.gmra.mrb[0].mxu0 %v1559
    %v1837 = vpop.f32.mrb[0].mxu0
    %v1838 = vadd.f32 0.0, %v1837
    %v1839 = vpop.f32.mrb[0].mxu0
    %v1840 = vadd.f32 0.0, %v1839
    %v1841 = vpop.f32.mrb[0].mxu0
    %v1842 = vadd.f32 0.0, %v1841
    %v1843 = vpop.f32.mrb[0].mxu0
    %v1844 = vadd.f32 0.0, %v1843
    %1845 = vmatprep.mubr.bf16.mxu0 0
    %1846 = vmatmul.mubr.bf16.gmra.mrb[0].mxu0 %v1562
    %v1847 = vpop.f32.mrb[0].mxu0
    %v1848 = vadd.f32 0.0, %v1847
    %v1849 = vpop.f32.mrb[0].mxu0
    %v1850 = vadd.f32 0.0, %v1849
    %v1851 = vpop.f32.mrb[0].mxu0
    %v1852 = vadd.f32 0.0, %v1851
    %v1853 = vpop.f32.mrb[0].mxu0
    %v1854 = vadd.f32 0.0, %v1853
    %1855 = vdwg.mxu0
    %1856 = vmatprep.subr.bf16.mxu0 %v1444
    %1857 = vmatpush1.bf16.msra.mxu0 %v1443
    %1858 = vmatprep.subr.bf16.mxu0 %v1468
    %1859 = vmatpush1.bf16.msra.mxu0 %v1467
    %1860 = vmatprep.subr.bf16.mxu0 %v1492
    %1861 = vmatpush1.bf16.msra.mxu0 %v1491
    %1862 = vmatprep.subr.bf16.mxu0 %v1516
    %1863 = vmatpush1.bf16.msra.mxu0 %v1515
    %1864 = vmatprep.subr.bf16.mxu0 0
    %1865 = vmatpush1.bf16.msra.mxu0 0
    %1866 = vmatprep.subr.bf16.mxu0 0
    %1867 = vmatpush1.bf16.msra.mxu0 0
    %1868 = vmatprep.subr.bf16.mxu0 0
    %1869 = vmatpush1.bf16.msra.mxu0 0
    %1870 = vmatprep.subr.bf16.mxu0 0
    %1871 = vmatpush1.bf16.msra.mxu0 0
    %1872 = vmatprep.subr.bf16.mxu0 0
    %1873 = vmatpush1.bf16.msra.mxu0 0
    %1874 = vmatprep.subr.bf16.mxu0 0
    %1875 = vmatpush1.bf16.msra.mxu0 0
    %1876 = vmatprep.subr.bf16.mxu0 0
    %1877 = vmatpush1.bf16.msra.mxu0 0
    %1878 = vmatprep.subr.bf16.mxu0 0
    %1879 = vmatpush1.bf16.msra.mxu0 0
    %1880 = vmatprep.subr.bf16.mxu0 0
    %1881 = vmatpush1.bf16.msra.mxu0 0
    %1882 = vmatprep.subr.bf16.mxu0 0
    %1883 = vmatpush1.bf16.msra.mxu0 0
    %1884 = vmatprep.subr.bf16.mxu0 0
    %1885 = vmatpush1.bf16.msra.mxu0 0
    %1886 = vmatprep.subr.bf16.mxu0 0
    %1887 = vmatpush1.bf16.msra.mxu0 0
    %1888 = vmatprep.mubr.bf16.mxu0 0
    %1889 = vmatmul.mubr.bf16.gmra.mrb[0].mxu0 %v1553
    %v1890 = vpop.f32.mrb[0].mxu0
    %v1891 = vadd.f32 0.0, %v1890
    %v1892 = vpop.f32.mrb[0].mxu0
    %v1893 = vadd.f32 0.0, %v1892
    %v1894 = vpop.f32.mrb[0].mxu0
    %v1895 = vadd.f32 0.0, %v1894
    %v1896 = vpop.f32.mrb[0].mxu0
    %v1897 = vadd.f32 0.0, %v1896
    %1898 = vmatprep.mubr.bf16.mxu0 0
    %1899 = vmatmul.mubr.bf16.gmra.mrb[0].mxu0 %v1556
    %v1900 = vpop.f32.mrb[0].mxu0
    %v1901 = vadd.f32 0.0, %v1900
    %v1902 = vpop.f32.mrb[0].mxu0
    %v1903 = vadd.f32 0.0, %v1902
    %v1904 = vpop.f32.mrb[0].mxu0
    %v1905 = vadd.f32 0.0, %v1904
    %v1906 = vpop.f32.mrb[0].mxu0
    %v1907 = vadd.f32 0.0, %v1906
    %1908 = vmatprep.mubr.bf16.mxu0 0
    %1909 = vmatmul.mubr.bf16.gmra.mrb[0].mxu0 %v1559
    %v1910 = vpop.f32.mrb[0].mxu0
    %v1911 = vadd.f32 0.0, %v1910
    %v1912 = vpop.f32.mrb[0].mxu0
    %v1913 = vadd.f32 0.0, %v1912
    %v1914 = vpop.f32.mrb[0].mxu0
    %v1915 = vadd.f32 0.0, %v1914
    %v1916 = vpop.f32.mrb[0].mxu0
    %v1917 = vadd.f32 0.0, %v1916
    %1918 = vmatprep.mubr.bf16.mxu0 0
    %1919 = vmatmul.mubr.bf16.gmra.mrb[0].mxu0 %v1562
    %v1920 = vpop.f32.mrb[0].mxu0
    %v1921 = vadd.f32 0.0, %v1920
    %v1922 = vpop.f32.mrb[0].mxu0
    %v1923 = vadd.f32 0.0, %v1922
    %v1924 = vpop.f32.mrb[0].mxu0
    %v1925 = vadd.f32 0.0, %v1924
    %v1926 = vpop.f32.mrb[0].mxu0
    %v1927 = vadd.f32 0.0, %v1926
    %1928 = vdwg.mxu0
    %1929 = vmatprep.subr.bf16.mxu0 %v1446
    %1930 = vmatpush1.bf16.msra.mxu0 %v1445
    %1931 = vmatprep.subr.bf16.mxu0 %v1470
    %1932 = vmatpush1.bf16.msra.mxu0 %v1469
    %1933 = vmatprep.subr.bf16.mxu0 %v1494
    %1934 = vmatpush1.bf16.msra.mxu0 %v1493
    %1935 = vmatprep.subr.bf16.mxu0 %v1518
    %1936 = vmatpush1.bf16.msra.mxu0 %v1517
    %1937 = vmatprep.subr.bf16.mxu0 0
    %1938 = vmatpush1.bf16.msra.mxu0 0
    %1939 = vmatprep.subr.bf16.mxu0 0
    %1940 = vmatpush1.bf16.msra.mxu0 0
    %1941 = vmatprep.subr.bf16.mxu0 0
    %1942 = vmatpush1.bf16.msra.mxu0 0
    %1943 = vmatprep.subr.bf16.mxu0 0
    %1944 = vmatpush1.bf16.msra.mxu0 0
    %1945 = vmatprep.subr.bf16.mxu0 0
    %1946 = vmatpush1.bf16.msra.mxu0 0
    %1947 = vmatprep.subr.bf16.mxu0 0
    %1948 = vmatpush1.bf16.msra.mxu0 0
    %1949 = vmatprep.subr.bf16.mxu0 0
    %1950 = vmatpush1.bf16.msra.mxu0 0
    %1951 = vmatprep.subr.bf16.mxu0 0
    %1952 = vmatpush1.bf16.msra.mxu0 0
    %1953 = vmatprep.subr.bf16.mxu0 0
    %1954 = vmatpush1.bf16.msra.mxu0 0
    %1955 = vmatprep.subr.bf16.mxu0 0
    %1956 = vmatpush1.bf16.msra.mxu0 0
    %1957 = vmatprep.subr.bf16.mxu0 0
    %1958 = vmatpush1.bf16.msra.mxu0 0
    %1959 = vmatprep.subr.bf16.mxu0 0
    %1960 = vmatpush1.bf16.msra.mxu0 0
    %1961 = vmatprep.mubr.bf16.mxu0 0
    %1962 = vmatmul.mubr.bf16.gmra.mrb[0].mxu0 %v1553
    %v1963 = vpop.f32.mrb[0].mxu0
    %v1964 = vadd.f32 0.0, %v1963
    %v1965 = vpop.f32.mrb[0].mxu0
    %v1966 = vadd.f32 0.0, %v1965
    %v1967 = vpop.f32.mrb[0].mxu0
    %v1968 = vadd.f32 0.0, %v1967
    %v1969 = vpop.f32.mrb[0].mxu0
    %v1970 = vadd.f32 0.0, %v1969
    %1971 = vmatprep.mubr.bf16.mxu0 0
    %1972 = vmatmul.mubr.bf16.gmra.mrb[0].mxu0 %v1556
    %v1973 = vpop.f32.mrb[0].mxu0
    %v1974 = vadd.f32 0.0, %v1973
    %v1975 = vpop.f32.mrb[0].mxu0
    %v1976 = vadd.f32 0.0, %v1975
    %v1977 = vpop.f32.mrb[0].mxu0
    %v1978 = vadd.f32 0.0, %v1977
    %v1979 = vpop.f32.mrb[0].mxu0
    %v1980 = vadd.f32 0.0, %v1979
    %1981 = vmatprep.mubr.bf16.mxu0 0
    %1982 = vmatmul.mubr.bf16.gmra.mrb[0].mxu0 %v1559
    %v1983 = vpop.f32.mrb[0].mxu0
    %v1984 = vadd.f32 0.0, %v1983
    %v1985 = vpop.f32.mrb[0].mxu0
    %v1986 = vadd.f32 0.0, %v1985
    %v1987 = vpop.f32.mrb[0].mxu0
    %v1988 = vadd.f32 0.0, %v1987
    %v1989 = vpop.f32.mrb[0].mxu0
    %v1990 = vadd.f32 0.0, %v1989
    %1991 = vmatprep.mubr.bf16.mxu0 0
    %1992 = vmatmul.mubr.bf16.gmra.mrb[0].mxu0 %v1562
    %v1993 = vpop.f32.mrb[0].mxu0
    %v1994 = vadd.f32 0.0, %v1993
    %v1995 = vpop.f32.mrb[0].mxu0
    %v1996 = vadd.f32 0.0, %v1995
    %v1997 = vpop.f32.mrb[0].mxu0
    %v1998 = vadd.f32 0.0, %v1997
    %v1999 = vpop.f32.mrb[0].mxu0
    %v2000 = vadd.f32 0.0, %v1999
    %2001 = vdwg.mxu0
    %2002 = vmatprep.subr.bf16.mxu0 %v1448
    %2003 = vmatpush1.bf16.msra.mxu0 %v1447
    %2004 = vmatprep.subr.bf16.mxu0 %v1472
    %2005 = vmatpush1.bf16.msra.mxu0 %v1471
    %2006 = vmatprep.subr.bf16.mxu0 %v1496
    %2007 = vmatpush1.bf16.msra.mxu0 %v1495
    %2008 = vmatprep.subr.bf16.mxu0 %v1520
    %2009 = vmatpush1.bf16.msra.mxu0 %v1519
    %2010 = vmatprep.subr.bf16.mxu0 0
    %2011 = vmatpush1.bf16.msra.mxu0 0
    %2012 = vmatprep.subr.bf16.mxu0 0
    %2013 = vmatpush1.bf16.msra.mxu0 0
    %2014 = vmatprep.subr.bf16.mxu0 0
    %2015 = vmatpush1.bf16.msra.mxu0 0
    %2016 = vmatprep.subr.bf16.mxu0 0
    %2017 = vmatpush1.bf16.msra.mxu0 0
    %2018 = vmatprep.subr.bf16.mxu0 0
    %2019 = vmatpush1.bf16.msra.mxu0 0
    %2020 = vmatprep.subr.bf16.mxu0 0
    %2021 = vmatpush1.bf16.msra.mxu0 0
    %2022 = vmatprep.subr.bf16.mxu0 0
    %2023 = vmatpush1.bf16.msra.mxu0 0
    %2024 = vmatprep.subr.bf16.mxu0 0
    %2025 = vmatpush1.bf16.msra.mxu0 0
    %2026 = vmatprep.subr.bf16.mxu0 0
    %2027 = vmatpush1.bf16.msra.mxu0 0
    %2028 = vmatprep.subr.bf16.mxu0 0
    %2029 = vmatpush1.bf16.msra.mxu0 0
    %2030 = vmatprep.subr.bf16.mxu0 0
    %2031 = vmatpush1.bf16.msra.mxu0 0
    %2032 = vmatprep.subr.bf16.mxu0 0
    %2033 = vmatpush1.bf16.msra.mxu0 0
    %2034 = vmatprep.mubr.bf16.mxu0 0
    %2035 = vmatmul.mubr.bf16.gmra.mrb[0].mxu0 %v1553
    %v2036 = vpop.f32.mrb[0].mxu0
    %v2037 = vadd.f32 0.0, %v2036
    %v2038 = vpop.f32.mrb[0].mxu0
    %v2039 = vadd.f32 0.0, %v2038
    %v2040 = vpop.f32.mrb[0].mxu0
    %v2041 = vadd.f32 0.0, %v2040
    %v2042 = vpop.f32.mrb[0].mxu0
    %v2043 = vadd.f32 0.0, %v2042
    %2044 = vmatprep.mubr.bf16.mxu0 0
    %2045 = vmatmul.mubr.bf16.gmra.mrb[0].mxu0 %v1556
    %v2046 = vpop.f32.mrb[0].mxu0
    %v2047 = vadd.f32 0.0, %v2046
    %v2048 = vpop.f32.mrb[0].mxu0
    %v2049 = vadd.f32 0.0, %v2048
    %v2050 = vpop.f32.mrb[0].mxu0
    %v2051 = vadd.f32 0.0, %v2050
    %v2052 = vpop.f32.mrb[0].mxu0
    %v2053 = vadd.f32 0.0, %v2052
    %2054 = vmatprep.mubr.bf16.mxu0 0
    %2055 = vmatmul.mubr.bf16.gmra.mrb[0].mxu0 %v1559
    %v2056 = vpop.f32.mrb[0].mxu0
    %v2057 = vadd.f32 0.0, %v2056
    %v2058 = vpop.f32.mrb[0].mxu0
    %v2059 = vadd.f32 0.0, %v2058
    %v2060 = vpop.f32.mrb[0].mxu0
    %v2061 = vadd.f32 0.0, %v2060
    %v2062 = vpop.f32.mrb[0].mxu0
    %v2063 = vadd.f32 0.0, %v2062
    %2064 = vmatprep.mubr.bf16.mxu0 0
    %2065 = vmatmul.mubr.bf16.gmra.mrb[0].mxu0 %v1562
    %v2066 = vpop.f32.mrb[0].mxu0
    %v2067 = vadd.f32 0.0, %v2066
    %v2068 = vpop.f32.mrb[0].mxu0
    %v2069 = vadd.f32 0.0, %v2068
    %v2070 = vpop.f32.mrb[0].mxu0
    %v2071 = vadd.f32 0.0, %v2070
    %v2072 = vpop.f32.mrb[0].mxu0
    %v2073 = vadd.f32 0.0, %v2072
    %2074 = vdwg.mxu0
    %2075 = vmatprep.subr.bf16.mxu0 %v1450
    %2076 = vmatpush1.bf16.msra.mxu0 %v1449
    %2077 = vmatprep.subr.bf16.mxu0 %v1474
    %2078 = vmatpush1.bf16.msra.mxu0 %v1473
    %2079 = vmatprep.subr.bf16.mxu0 %v1498
    %2080 = vmatpush1.bf16.msra.mxu0 %v1497
    %2081 = vmatprep.subr.bf16.mxu0 %v1522
    %2082 = vmatpush1.bf16.msra.mxu0 %v1521
    %2083 = vmatprep.subr.bf16.mxu0 0
    %2084 = vmatpush1.bf16.msra.mxu0 0
    %2085 = vmatprep.subr.bf16.mxu0 0
    %2086 = vmatpush1.bf16.msra.mxu0 0
    %2087 = vmatprep.subr.bf16.mxu0 0
    %2088 = vmatpush1.bf16.msra.mxu0 0
    %2089 = vmatprep.subr.bf16.mxu0 0
    %2090 = vmatpush1.bf16.msra.mxu0 0
    %2091 = vmatprep.subr.bf16.mxu0 0
    %2092 = vmatpush1.bf16.msra.mxu0 0
    %2093 = vmatprep.subr.bf16.mxu0 0
    %2094 = vmatpush1.bf16.msra.mxu0 0
    %2095 = vmatprep.subr.bf16.mxu0 0
    %2096 = vmatpush1.bf16.msra.mxu0 0
    %2097 = vmatprep.subr.bf16.mxu0 0
    %2098 = vmatpush1.bf16.msra.mxu0 0
    %2099 = vmatprep.subr.bf16.mxu0 0
    %2100 = vmatpush1.bf16.msra.mxu0 0
    %2101 = vmatprep.subr.bf16.mxu0 0
    %2102 = vmatpush1.bf16.msra.mxu0 0
    %2103 = vmatprep.subr.bf16.mxu0 0
    %2104 = vmatpush1.bf16.msra.mxu0 0
    %2105 = vmatprep.subr.bf16.mxu0 0
    %2106 = vmatpush1.bf16.msra.mxu0 0
    %2107 = vmatprep.mubr.bf16.mxu0 0
    %2108 = vmatmul.mubr.bf16.gmra.mrb[0].mxu0 %v1553
    %v2109 = vpop.f32.mrb[0].mxu0
    %v2110 = vadd.f32 0.0, %v2109
    %v2111 = vpop.f32.mrb[0].mxu0
    %v2112 = vadd.f32 0.0, %v2111
    %v2113 = vpop.f32.mrb[0].mxu0
    %v2114 = vadd.f32 0.0, %v2113
    %v2115 = vpop.f32.mrb[0].mxu0
    %v2116 = vadd.f32 0.0, %v2115
    %2117 = vmatprep.mubr.bf16.mxu0 0
    %2118 = vmatmul.mubr.bf16.gmra.mrb[0].mxu0 %v1556
    %v2119 = vpop.f32.mrb[0].mxu0
    %v2120 = vadd.f32 0.0, %v2119
    %v2121 = vpop.f32.mrb[0].mxu0
    %v2122 = vadd.f32 0.0, %v2121
    %v2123 = vpop.f32.mrb[0].mxu0
    %v2124 = vadd.f32 0.0, %v2123
    %v2125 = vpop.f32.mrb[0].mxu0
    %v2126 = vadd.f32 0.0, %v2125
    %2127 = vmatprep.mubr.bf16.mxu0 0
    %2128 = vmatmul.mubr.bf16.gmra.mrb[0].mxu0 %v1559
    %v2129 = vpop.f32.mrb[0].mxu0
    %v2130 = vadd.f32 0.0, %v2129
    %v2131 = vpop.f32.mrb[0].mxu0
    %v2132 = vadd.f32 0.0, %v2131
    %v2133 = vpop.f32.mrb[0].mxu0
    %v2134 = vadd.f32 0.0, %v2133
    %v2135 = vpop.f32.mrb[0].mxu0
    %v2136 = vadd.f32 0.0, %v2135
    %2137 = vmatprep.mubr.bf16.mxu0 0
    %2138 = vmatmul.mubr.bf16.gmra.mrb[0].mxu0 %v1562
    %v2139 = vpop.f32.mrb[0].mxu0
    %v2140 = vadd.f32 0.0, %v2139
    %v2141 = vpop.f32.mrb[0].mxu0
    %v2142 = vadd.f32 0.0, %v2141
    %v2143 = vpop.f32.mrb[0].mxu0
    %v2144 = vadd.f32 0.0, %v2143
    %v2145 = vpop.f32.mrb[0].mxu0
    %v2146 = vadd.f32 0.0, %v2145
    %2147 = vdwg.mxu0
    %2148 = vmatprep.subr.bf16.mxu0 %v1452
    %2149 = vmatpush1.bf16.msra.mxu0 %v1451
    %2150 = vmatprep.subr.bf16.mxu0 %v1476
    %2151 = vmatpush1.bf16.msra.mxu0 %v1475
    %2152 = vmatprep.subr.bf16.mxu0 %v1500
    %2153 = vmatpush1.bf16.msra.mxu0 %v1499
    %2154 = vmatprep.subr.bf16.mxu0 %v1524
    %2155 = vmatpush1.bf16.msra.mxu0 %v1523
    %2156 = vmatprep.subr.bf16.mxu0 0
    %2157 = vmatpush1.bf16.msra.mxu0 0
    %2158 = vmatprep.subr.bf16.mxu0 0
    %2159 = vmatpush1.bf16.msra.mxu0 0
    %2160 = vmatprep.subr.bf16.mxu0 0
    %2161 = vmatpush1.bf16.msra.mxu0 0
    %2162 = vmatprep.subr.bf16.mxu0 0
    %2163 = vmatpush1.bf16.msra.mxu0 0
    %2164 = vmatprep.subr.bf16.mxu0 0
    %2165 = vmatpush1.bf16.msra.mxu0 0
    %2166 = vmatprep.subr.bf16.mxu0 0
    %2167 = vmatpush1.bf16.msra.mxu0 0
    %2168 = vmatprep.subr.bf16.mxu0 0
    %2169 = vmatpush1.bf16.msra.mxu0 0
    %2170 = vmatprep.subr.bf16.mxu0 0
    %2171 = vmatpush1.bf16.msra.mxu0 0
    %2172 = vmatprep.subr.bf16.mxu0 0
    %2173 = vmatpush1.bf16.msra.mxu0 0
    %2174 = vmatprep.subr.bf16.mxu0 0
    %2175 = vmatpush1.bf16.msra.mxu0 0
    %2176 = vmatprep.subr.bf16.mxu0 0
    %2177 = vmatpush1.bf16.msra.mxu0 0
    %2178 = vmatprep.subr.bf16.mxu0 0
    %2179 = vmatpush1.bf16.msra.mxu0 0
    %2180 = vmatprep.mubr.bf16.mxu0 0
    %2181 = vmatmul.mubr.bf16.gmra.mrb[0].mxu0 %v1553
    %v2182 = vpop.f32.mrb[0].mxu0
    %v2183 = vadd.f32 0.0, %v2182
    %v2184 = vpop.f32.mrb[0].mxu0
    %v2185 = vadd.f32 0.0, %v2184
    %v2186 = vpop.f32.mrb[0].mxu0
    %v2187 = vadd.f32 0.0, %v2186
    %v2188 = vpop.f32.mrb[0].mxu0
    %v2189 = vadd.f32 0.0, %v2188
    %2190 = vmatprep.mubr.bf16.mxu0 0
    %2191 = vmatmul.mubr.bf16.gmra.mrb[0].mxu0 %v1556
    %v2192 = vpop.f32.mrb[0].mxu0
    %v2193 = vadd.f32 0.0, %v2192
    %v2194 = vpop.f32.mrb[0].mxu0
    %v2195 = vadd.f32 0.0, %v2194
    %v2196 = vpop.f32.mrb[0].mxu0
    %v2197 = vadd.f32 0.0, %v2196
    %v2198 = vpop.f32.mrb[0].mxu0
    %v2199 = vadd.f32 0.0, %v2198
    %2200 = vmatprep.mubr.bf16.mxu0 0
    %2201 = vmatmul.mubr.bf16.gmra.mrb[0].mxu0 %v1559
    %v2202 = vpop.f32.mrb[0].mxu0
    %v2203 = vadd.f32 0.0, %v2202
    %v2204 = vpop.f32.mrb[0].mxu0
    %v2205 = vadd.f32 0.0, %v2204
    %v2206 = vpop.f32.mrb[0].mxu0
    %v2207 = vadd.f32 0.0, %v2206
    %v2208 = vpop.f32.mrb[0].mxu0
    %v2209 = vadd.f32 0.0, %v2208
    %2210 = vmatprep.mubr.bf16.mxu0 0
    %2211 = vmatmul.mubr.bf16.gmra.mrb[0].mxu0 %v1562
    %v2212 = vpop.f32.mrb[0].mxu0
    %v2213 = vadd.f32 0.0, %v2212
    %v2214 = vpop.f32.mrb[0].mxu0
    %v2215 = vadd.f32 0.0, %v2214
    %v2216 = vpop.f32.mrb[0].mxu0
    %v2217 = vadd.f32 0.0, %v2216
    %v2218 = vpop.f32.mrb[0].mxu0
    %v2219 = vadd.f32 0.0, %v2218
    %2220 = vdwg.mxu0
    %2221 = vmatprep.subr.bf16.mxu0 %v1454
    %2222 = vmatpush1.bf16.msra.mxu0 %v1453
    %2223 = vmatprep.subr.bf16.mxu0 %v1478
    %2224 = vmatpush1.bf16.msra.mxu0 %v1477
    %2225 = vmatprep.subr.bf16.mxu0 %v1502
    %2226 = vmatpush1.bf16.msra.mxu0 %v1501
    %2227 = vmatprep.subr.bf16.mxu0 %v1526
    %2228 = vmatpush1.bf16.msra.mxu0 %v1525
    %2229 = vmatprep.subr.bf16.mxu0 0
    %2230 = vmatpush1.bf16.msra.mxu0 0
    %2231 = vmatprep.subr.bf16.mxu0 0
    %2232 = vmatpush1.bf16.msra.mxu0 0
    %2233 = vmatprep.subr.bf16.mxu0 0
    %2234 = vmatpush1.bf16.msra.mxu0 0
    %2235 = vmatprep.subr.bf16.mxu0 0
    %2236 = vmatpush1.bf16.msra.mxu0 0
    %2237 = vmatprep.subr.bf16.mxu0 0
    %2238 = vmatpush1.bf16.msra.mxu0 0
    %2239 = vmatprep.subr.bf16.mxu0 0
    %2240 = vmatpush1.bf16.msra.mxu0 0
    %2241 = vmatprep.subr.bf16.mxu0 0
    %2242 = vmatpush1.bf16.msra.mxu0 0
    %2243 = vmatprep.subr.bf16.mxu0 0
    %2244 = vmatpush1.bf16.msra.mxu0 0
    %2245 = vmatprep.subr.bf16.mxu0 0
    %2246 = vmatpush1.bf16.msra.mxu0 0
    %2247 = vmatprep.subr.bf16.mxu0 0
    %2248 = vmatpush1.bf16.msra.mxu0 0
    %2249 = vmatprep.subr.bf16.mxu0 0
    %2250 = vmatpush1.bf16.msra.mxu0 0
    %2251 = vmatprep.subr.bf16.mxu0 0
    %2252 = vmatpush1.bf16.msra.mxu0 0
    %2253 = vmatprep.mubr.bf16.mxu0 0
    %2254 = vmatmul.mubr.bf16.gmra.mrb[0].mxu0 %v1553
    %v2255 = vpop.f32.mrb[0].mxu0
    %v2256 = vadd.f32 0.0, %v2255
    %v2257 = vpop.f32.mrb[0].mxu0
    %v2258 = vadd.f32 0.0, %v2257
    %v2259 = vpop.f32.mrb[0].mxu0
    %v2260 = vadd.f32 0.0, %v2259
    %v2261 = vpop.f32.mrb[0].mxu0
    %v2262 = vadd.f32 0.0, %v2261
    %2263 = vmatprep.mubr.bf16.mxu0 0
    %2264 = vmatmul.mubr.bf16.gmra.mrb[0].mxu0 %v1556
    %v2265 = vpop.f32.mrb[0].mxu0
    %v2266 = vadd.f32 0.0, %v2265
    %v2267 = vpop.f32.mrb[0].mxu0
    %v2268 = vadd.f32 0.0, %v2267
    %v2269 = vpop.f32.mrb[0].mxu0
    %v2270 = vadd.f32 0.0, %v2269
    %v2271 = vpop.f32.mrb[0].mxu0
    %v2272 = vadd.f32 0.0, %v2271
    %2273 = vmatprep.mubr.bf16.mxu0 0
    %2274 = vmatmul.mubr.bf16.gmra.mrb[0].mxu0 %v1559
    %v2275 = vpop.f32.mrb[0].mxu0
    %v2276 = vadd.f32 0.0, %v2275
    %v2277 = vpop.f32.mrb[0].mxu0
    %v2278 = vadd.f32 0.0, %v2277
    %v2279 = vpop.f32.mrb[0].mxu0
    %v2280 = vadd.f32 0.0, %v2279
    %v2281 = vpop.f32.mrb[0].mxu0
    %v2282 = vadd.f32 0.0, %v2281
    %2283 = vmatprep.mubr.bf16.mxu0 0
    %2284 = vmatmul.mubr.bf16.gmra.mrb[0].mxu0 %v1562
    %v2285 = vpop.f32.mrb[0].mxu0
    %v2286 = vadd.f32 0.0, %v2285
    %v2287 = vpop.f32.mrb[0].mxu0
    %v2288 = vadd.f32 0.0, %v2287
    %v2289 = vpop.f32.mrb[0].mxu0
    %v2290 = vadd.f32 0.0, %v2289
    %v2291 = vpop.f32.mrb[0].mxu0
    %v2292 = vadd.f32 0.0, %v2291
    %2293 = vdwg.mxu0
    %2294 = vmatprep.subr.bf16.mxu0 %v1456
    %2295 = vmatpush1.bf16.msra.mxu0 %v1455
    %2296 = vmatprep.subr.bf16.mxu0 %v1480
    %2297 = vmatpush1.bf16.msra.mxu0 %v1479
    %2298 = vmatprep.subr.bf16.mxu0 %v1504
    %2299 = vmatpush1.bf16.msra.mxu0 %v1503
    %2300 = vmatprep.subr.bf16.mxu0 %v1528
    %2301 = vmatpush1.bf16.msra.mxu0 %v1527
    %2302 = vmatprep.subr.bf16.mxu0 0
    %2303 = vmatpush1.bf16.msra.mxu0 0
    %2304 = vmatprep.subr.bf16.mxu0 0
    %2305 = vmatpush1.bf16.msra.mxu0 0
    %2306 = vmatprep.subr.bf16.mxu0 0
    %2307 = vmatpush1.bf16.msra.mxu0 0
    %2308 = vmatprep.subr.bf16.mxu0 0
    %2309 = vmatpush1.bf16.msra.mxu0 0
    %2310 = vmatprep.subr.bf16.mxu0 0
    %2311 = vmatpush1.bf16.msra.mxu0 0
    %2312 = vmatprep.subr.bf16.mxu0 0
    %2313 = vmatpush1.bf16.msra.mxu0 0
    %2314 = vmatprep.subr.bf16.mxu0 0
    %2315 = vmatpush1.bf16.msra.mxu0 0
    %2316 = vmatprep.subr.bf16.mxu0 0
    %2317 = vmatpush1.bf16.msra.mxu0 0
    %2318 = vmatprep.subr.bf16.mxu0 0
    %2319 = vmatpush1.bf16.msra.mxu0 0
    %2320 = vmatprep.subr.bf16.mxu0 0
    %2321 = vmatpush1.bf16.msra.mxu0 0
    %2322 = vmatprep.subr.bf16.mxu0 0
    %2323 = vmatpush1.bf16.msra.mxu0 0
    %2324 = vmatprep.subr.bf16.mxu0 0
    %2325 = vmatpush1.bf16.msra.mxu0 0
    %2326 = vmatprep.mubr.bf16.mxu0 0
    %2327 = vmatmul.mubr.bf16.gmra.mrb[0].mxu0 %v1553
    %v2328 = vpop.f32.mrb[0].mxu0
    %v2329 = vadd.f32 0.0, %v2328
    %v2330 = vpop.f32.mrb[0].mxu0
    %v2331 = vadd.f32 0.0, %v2330
    %v2332 = vpop.f32.mrb[0].mxu0
    %v2333 = vadd.f32 0.0, %v2332
    %v2334 = vpop.f32.mrb[0].mxu0
    %v2335 = vadd.f32 0.0, %v2334
    %2336 = vmatprep.mubr.bf16.mxu0 0
    %2337 = vmatmul.mubr.bf16.gmra.mrb[0].mxu0 %v1556
    %v2338 = vpop.f32.mrb[0].mxu0
    %v2339 = vadd.f32 0.0, %v2338
    %v2340 = vpop.f32.mrb[0].mxu0
    %v2341 = vadd.f32 0.0, %v2340
    %v2342 = vpop.f32.mrb[0].mxu0
    %v2343 = vadd.f32 0.0, %v2342
    %v2344 = vpop.f32.mrb[0].mxu0
    %v2345 = vadd.f32 0.0, %v2344
    %2346 = vmatprep.mubr.bf16.mxu0 0
    %2347 = vmatmul.mubr.bf16.gmra.mrb[0].mxu0 %v1559
    %v2348 = vpop.f32.mrb[0].mxu0
    %v2349 = vadd.f32 0.0, %v2348
    %v2350 = vpop.f32.mrb[0].mxu0
    %v2351 = vadd.f32 0.0, %v2350
    %v2352 = vpop.f32.mrb[0].mxu0
    %v2353 = vadd.f32 0.0, %v2352
    %v2354 = vpop.f32.mrb[0].mxu0
    %v2355 = vadd.f32 0.0, %v2354
    %2356 = vmatprep.mubr.bf16.mxu0 0
    %2357 = vmatmul.mubr.bf16.gmra.mrb[0].mxu0 %v1562
    %v2358 = vpop.f32.mrb[0].mxu0
    %v2359 = vadd.f32 0.0, %v2358
    %v2360 = vpop.f32.mrb[0].mxu0
    %v2361 = vadd.f32 0.0, %v2360
    %v2362 = vpop.f32.mrb[0].mxu0
    %v2363 = vadd.f32 0.0, %v2362
    %v2364 = vpop.f32.mrb[0].mxu0
    %v2365 = vadd.f32 0.0, %v2364
    %2366 = vdwg.mxu0
    %2367 = vmatprep.subr.bf16.mxu0 %v1458
    %2368 = vmatpush1.bf16.msra.mxu0 %v1457
    %2369 = vmatprep.subr.bf16.mxu0 %v1482
    %2370 = vmatpush1.bf16.msra.mxu0 %v1481
    %2371 = vmatprep.subr.bf16.mxu0 %v1506
    %2372 = vmatpush1.bf16.msra.mxu0 %v1505
    %2373 = vmatprep.subr.bf16.mxu0 %v1530
    %2374 = vmatpush1.bf16.msra.mxu0 %v1529
    %2375 = vmatprep.subr.bf16.mxu0 0
    %2376 = vmatpush1.bf16.msra.mxu0 0
    %2377 = vmatprep.subr.bf16.mxu0 0
    %2378 = vmatpush1.bf16.msra.mxu0 0
    %2379 = vmatprep.subr.bf16.mxu0 0
    %2380 = vmatpush1.bf16.msra.mxu0 0
    %2381 = vmatprep.subr.bf16.mxu0 0
    %2382 = vmatpush1.bf16.msra.mxu0 0
    %2383 = vmatprep.subr.bf16.mxu0 0
    %2384 = vmatpush1.bf16.msra.mxu0 0
    %2385 = vmatprep.subr.bf16.mxu0 0
    %2386 = vmatpush1.bf16.msra.mxu0 0
    %2387 = vmatprep.subr.bf16.mxu0 0
    %2388 = vmatpush1.bf16.msra.mxu0 0
    %2389 = vmatprep.subr.bf16.mxu0 0
    %2390 = vmatpush1.bf16.msra.mxu0 0
    %2391 = vmatprep.subr.bf16.mxu0 0
    %2392 = vmatpush1.bf16.msra.mxu0 0
    %2393 = vmatprep.subr.bf16.mxu0 0
    %2394 = vmatpush1.bf16.msra.mxu0 0
    %2395 = vmatprep.subr.bf16.mxu0 0
    %2396 = vmatpush1.bf16.msra.mxu0 0
    %2397 = vmatprep.subr.bf16.mxu0 0
    %2398 = vmatpush1.bf16.msra.mxu0 0
    %2399 = vmatprep.mubr.bf16.mxu0 0
    %2400 = vmatmul.mubr.bf16.gmra.mrb[0].mxu0 %v1553
    %v2401 = vpop.f32.mrb[0].mxu0
    %v2402 = vadd.f32 0.0, %v2401
    %v2403 = vpop.f32.mrb[0].mxu0
    %v2404 = vadd.f32 0.0, %v2403
    %v2405 = vpop.f32.mrb[0].mxu0
    %v2406 = vadd.f32 0.0, %v2405
    %v2407 = vpop.f32.mrb[0].mxu0
    %v2408 = vadd.f32 0.0, %v2407
    %2409 = vmatprep.mubr.bf16.mxu0 0
    %2410 = vmatmul.mubr.bf16.gmra.mrb[0].mxu0 %v1556
    %v2411 = vpop.f32.mrb[0].mxu0
    %v2412 = vadd.f32 0.0, %v2411
    %v2413 = vpop.f32.mrb[0].mxu0
    %v2414 = vadd.f32 0.0, %v2413
    %v2415 = vpop.f32.mrb[0].mxu0
    %v2416 = vadd.f32 0.0, %v2415
    %v2417 = vpop.f32.mrb[0].mxu0
    %v2418 = vadd.f32 0.0, %v2417
    %2419 = vmatprep.mubr.bf16.mxu0 0
    %2420 = vmatmul.mubr.bf16.gmra.mrb[0].mxu0 %v1559
    %v2421 = vpop.f32.mrb[0].mxu0
    %v2422 = vadd.f32 0.0, %v2421
    %v2423 = vpop.f32.mrb[0].mxu0
    %v2424 = vadd.f32 0.0, %v2423
    %v2425 = vpop.f32.mrb[0].mxu0
    %v2426 = vadd.f32 0.0, %v2425
    %v2427 = vpop.f32.mrb[0].mxu0
    %v2428 = vadd.f32 0.0, %v2427
    %2429 = vmatprep.mubr.bf16.mxu0 0
    %2430 = vmatmul.mubr.bf16.gmra.mrb[0].mxu0 %v1562
    %v2431 = vpop.f32.mrb[0].mxu0
    %v2432 = vadd.f32 0.0, %v2431
    %v2433 = vpop.f32.mrb[0].mxu0
    %v2434 = vadd.f32 0.0, %v2433
    %v2435 = vpop.f32.mrb[0].mxu0
    %v2436 = vadd.f32 0.0, %v2435
    %v2437 = vpop.f32.mrb[0].mxu0
    %v2438 = vadd.f32 0.0, %v2437
    %2439 = vdwg.mxu0
    %v2440 = vmax.f32 %v1599, 0.0
    %v2441 = vmax.f32 %v1601, 0.0
    %v2442 = vmax.f32 %v1672, 0.0
    %v2443 = vmax.f32 %v1674, 0.0
    %v2444 = vmax.f32 %v1745, 0.0
    %v2445 = vmax.f32 %v1747, 0.0
    %v2446 = vmax.f32 %v1818, 0.0
    %v2447 = vmax.f32 %v1820, 0.0
    %v2448 = vmax.f32 %v1891, 0.0
    %v2449 = vmax.f32 %v1893, 0.0
    %v2450 = vmax.f32 %v1964, 0.0
    %v2451 = vmax.f32 %v1966, 0.0
    %v2452 = vmax.f32 %v2037, 0.0
    %v2453 = vmax.f32 %v2039, 0.0
    %v2454 = vmax.f32 %v2110, 0.0
    %v2455 = vmax.f32 %v2112, 0.0
    %v2456 = vmax.f32 %v2183, 0.0
    %v2457 = vmax.f32 %v2185, 0.0
    %v2458 = vmax.f32 %v2256, 0.0
    %v2459 = vmax.f32 %v2258, 0.0
    %v2460 = vmax.f32 %v2329, 0.0
    %v2461 = vmax.f32 %v2331, 0.0
    %v2462 = vmax.f32 %v2402, 0.0
    %v2463 = vmax.f32 %v2404, 0.0
    %v2464 = vmax.f32 %v1603, 0.0
    %v2465 = vmax.f32 %v1605, 0.0
    %v2466 = vmax.f32 %v1676, 0.0
    %v2467 = vmax.f32 %v1678, 0.0
    %v2468 = vmax.f32 %v1749, 0.0
    %v2469 = vmax.f32 %v1751, 0.0
    %v2470 = vmax.f32 %v1822, 0.0
    %v2471 = vmax.f32 %v1824, 0.0
    %v2472 = vmax.f32 %v1895, 0.0
    %v2473 = vmax.f32 %v1897, 0.0
    %v2474 = vmax.f32 %v1968, 0.0
    %v2475 = vmax.f32 %v1970, 0.0
    %v2476 = vmax.f32 %v2041, 0.0
    %v2477 = vmax.f32 %v2043, 0.0
    %v2478 = vmax.f32 %v2114, 0.0
    %v2479 = vmax.f32 %v2116, 0.0
    %v2480 = vmax.f32 %v2187, 0.0
    %v2481 = vmax.f32 %v2189, 0.0
    %v2482 = vmax.f32 %v2260, 0.0
    %v2483 = vmax.f32 %v2262, 0.0
    %v2484 = vmax.f32 %v2333, 0.0
    %v2485 = vmax.f32 %v2335, 0.0
    %v2486 = vmax.f32 %v2406, 0.0
    %v2487 = vmax.f32 %v2408, 0.0
    %v2488 = vmax.f32 %v1609, 0.0
    %v2489 = vmax.f32 %v1611, 0.0
    %v2490 = vmax.f32 %v1682, 0.0
    %v2491 = vmax.f32 %v1684, 0.0
    %v2492 = vmax.f32 %v1755, 0.0
    %v2493 = vmax.f32 %v1757, 0.0
    %v2494 = vmax.f32 %v1828, 0.0
    %v2495 = vmax.f32 %v1830, 0.0
    %v2496 = vmax.f32 %v1901, 0.0
    %v2497 = vmax.f32 %v1903, 0.0
    %v2498 = vmax.f32 %v1974, 0.0
    %v2499 = vmax.f32 %v1976, 0.0
    %v2500 = vmax.f32 %v2047, 0.0
    %v2501 = vmax.f32 %v2049, 0.0
    %v2502 = vmax.f32 %v2120, 0.0
    %v2503 = vmax.f32 %v2122, 0.0
    %v2504 = vmax.f32 %v2193, 0.0
    %v2505 = vmax.f32 %v2195, 0.0
    %v2506 = vmax.f32 %v2266, 0.0
    %v2507 = vmax.f32 %v2268, 0.0
    %v2508 = vmax.f32 %v2339, 0.0
    %v2509 = vmax.f32 %v2341, 0.0
    %v2510 = vmax.f32 %v2412, 0.0
    %v2511 = vmax.f32 %v2414, 0.0
    %v2512 = vmax.f32 %v1613, 0.0
    %v2513 = vmax.f32 %v1615, 0.0
    %v2514 = vmax.f32 %v1686, 0.0
    %v2515 = vmax.f32 %v1688, 0.0
    %v2516 = vmax.f32 %v1759, 0.0
    %v2517 = vmax.f32 %v1761, 0.0
    %v2518 = vmax.f32 %v1832, 0.0
    %v2519 = vmax.f32 %v1834, 0.0
    %v2520 = vmax.f32 %v1905, 0.0
    %v2521 = vmax.f32 %v1907, 0.0
    %v2522 = vmax.f32 %v1978, 0.0
    %v2523 = vmax.f32 %v1980, 0.0
    %v2524 = vmax.f32 %v2051, 0.0
    %v2525 = vmax.f32 %v2053, 0.0
    %v2526 = vmax.f32 %v2124, 0.0
    %v2527 = vmax.f32 %v2126, 0.0
    %v2528 = vmax.f32 %v2197, 0.0
    %v2529 = vmax.f32 %v2199, 0.0
    %v2530 = vmax.f32 %v2270, 0.0
    %v2531 = vmax.f32 %v2272, 0.0
    %v2532 = vmax.f32 %v2343, 0.0
    %v2533 = vmax.f32 %v2345, 0.0
    %v2534 = vmax.f32 %v2416, 0.0
    %v2535 = vmax.f32 %v2418, 0.0
    %v2536 = vmax.f32 %v1619, 0.0
    %v2537 = vmax.f32 %v1621, 0.0
    %v2538 = vmax.f32 %v1692, 0.0
    %v2539 = vmax.f32 %v1694, 0.0
    %v2540 = vmax.f32 %v1765, 0.0
    %v2541 = vmax.f32 %v1767, 0.0
    %v2542 = vmax.f32 %v1838, 0.0
    %v2543 = vmax.f32 %v1840, 0.0
    %v2544 = vmax.f32 %v1911, 0.0
    %v2545 = vmax.f32 %v1913, 0.0
    %v2546 = vmax.f32 %v1984, 0.0
    %v2547 = vmax.f32 %v1986, 0.0
    %v2548 = vmax.f32 %v2057, 0.0
    %v2549 = vmax.f32 %v2059, 0.0
    %v2550 = vmax.f32 %v2130, 0.0
    %v2551 = vmax.f32 %v2132, 0.0
    %v2552 = vmax.f32 %v2203, 0.0
    %v2553 = vmax.f32 %v2205, 0.0
    %v2554 = vmax.f32 %v2276, 0.0
    %v2555 = vmax.f32 %v2278, 0.0
    %v2556 = vmax.f32 %v2349, 0.0
    %v2557 = vmax.f32 %v2351, 0.0
    %v2558 = vmax.f32 %v2422, 0.0
    %v2559 = vmax.f32 %v2424, 0.0
    %v2560 = vmax.f32 %v1623, 0.0
    %v2561 = vmax.f32 %v1625, 0.0
    %v2562 = vmax.f32 %v1696, 0.0
    %v2563 = vmax.f32 %v1698, 0.0
    %v2564 = vmax.f32 %v1769, 0.0
    %v2565 = vmax.f32 %v1771, 0.0
    %v2566 = vmax.f32 %v1842, 0.0
    %v2567 = vmax.f32 %v1844, 0.0
    %v2568 = vmax.f32 %v1915, 0.0
    %v2569 = vmax.f32 %v1917, 0.0
    %v2570 = vmax.f32 %v1988, 0.0
    %v2571 = vmax.f32 %v1990, 0.0
    %v2572 = vmax.f32 %v2061, 0.0
    %v2573 = vmax.f32 %v2063, 0.0
    %v2574 = vmax.f32 %v2134, 0.0
    %v2575 = vmax.f32 %v2136, 0.0
    %v2576 = vmax.f32 %v2207, 0.0
    %v2577 = vmax.f32 %v2209, 0.0
    %v2578 = vmax.f32 %v2280, 0.0
    %v2579 = vmax.f32 %v2282, 0.0
    %v2580 = vmax.f32 %v2353, 0.0
    %v2581 = vmax.f32 %v2355, 0.0
    %v2582 = vmax.f32 %v2426, 0.0
    %v2583 = vmax.f32 %v2428, 0.0
    %v2584 = vmax.f32 %v1629, 0.0
    %v2585 = vmax.f32 %v1631, 0.0
    %v2586 = vmax.f32 %v1702, 0.0
    %v2587 = vmax.f32 %v1704, 0.0
    %v2588 = vmax.f32 %v1775, 0.0
    %v2589 = vmax.f32 %v1777, 0.0
    %v2590 = vmax.f32 %v1848, 0.0
    %v2591 = vmax.f32 %v1850, 0.0
    %v2592 = vmax.f32 %v1921, 0.0
    %v2593 = vmax.f32 %v1923, 0.0
    %v2594 = vmax.f32 %v1994, 0.0
    %v2595 = vmax.f32 %v1996, 0.0
    %v2596 = vmax.f32 %v2067, 0.0
    %v2597 = vmax.f32 %v2069, 0.0
    %v2598 = vmax.f32 %v2140, 0.0
    %v2599 = vmax.f32 %v2142, 0.0
    %v2600 = vmax.f32 %v2213, 0.0
    %v2601 = vmax.f32 %v2215, 0.0
    %v2602 = vmax.f32 %v2286, 0.0
    %v2603 = vmax.f32 %v2288, 0.0
    %v2604 = vmax.f32 %v2359, 0.0
    %v2605 = vmax.f32 %v2361, 0.0
    %v2606 = vmax.f32 %v2432, 0.0
    %v2607 = vmax.f32 %v2434, 0.0
    %v2608 = vmax.f32 %v1633, 0.0
    %v2609 = vmax.f32 %v1635, 0.0
    %v2610 = vmax.f32 %v1706, 0.0
    %v2611 = vmax.f32 %v1708, 0.0
    %v2612 = vmax.f32 %v1779, 0.0
    %v2613 = vmax.f32 %v1781, 0.0
    %v2614 = vmax.f32 %v1852, 0.0
    %v2615 = vmax.f32 %v1854, 0.0
    %v2616 = vmax.f32 %v1925, 0.0
    %v2617 = vmax.f32 %v1927, 0.0
    %v2618 = vmax.f32 %v1998, 0.0
    %v2619 = vmax.f32 %v2000, 0.0
    %v2620 = vmax.f32 %v2071, 0.0
    %v2621 = vmax.f32 %v2073, 0.0
    %v2622 = vmax.f32 %v2144, 0.0
    %v2623 = vmax.f32 %v2146, 0.0
    %v2624 = vmax.f32 %v2217, 0.0
    %v2625 = vmax.f32 %v2219, 0.0
    %v2626 = vmax.f32 %v2290, 0.0
    %v2627 = vmax.f32 %v2292, 0.0
    %v2628 = vmax.f32 %v2363, 0.0
    %v2629 = vmax.f32 %v2365, 0.0
    %v2630 = vmax.f32 %v2436, 0.0
    %v2631 = vmax.f32 %v2438, 0.0
    %v2632 = vld [vmem:[%s3] sm:$0xf]
    %v2633 = vld [vmem:[%s3 + $0x4] sm:$0xf]
    %v2634 = vpack.c.bf16 %v2464, %v2440
    %v2635 = vpack.c.bf16 %v2465, %v2441
    %v2636 = vpack.c.bf16 %v2466, %v2442
    %v2637 = vpack.c.bf16 %v2467, %v2443
    %v2638 = vpack.c.bf16 %v2468, %v2444
    %v2639 = vpack.c.bf16 %v2469, %v2445
    %v2640 = vpack.c.bf16 %v2470, %v2446
    %v2641 = vpack.c.bf16 %v2471, %v2447
    %v2642 = vpack.c.bf16 %v2472, %v2448
    %v2643 = vpack.c.bf16 %v2473, %v2449
    %v2644 = vpack.c.bf16 %v2474, %v2450
    %v2645 = vpack.c.bf16 %v2475, %v2451
    %v2646 = vpack.c.bf16 %v2476, %v2452
    %v2647 = vpack.c.bf16 %v2477, %v2453
    %v2648 = vpack.c.bf16 %v2478, %v2454
    %v2649 = vpack.c.bf16 %v2479, %v2455
    %v2650 = vpack.c.bf16 %v2480, %v2456
    %v2651 = vpack.c.bf16 %v2481, %v2457
    %v2652 = vpack.c.bf16 %v2482, %v2458
    %v2653 = vpack.c.bf16 %v2483, %v2459
    %v2654 = vpack.c.bf16 %v2484, %v2460
    %v2655 = vpack.c.bf16 %v2485, %v2461
    %v2656 = vpack.c.bf16 %v2486, %v2462
    %v2657 = vpack.c.bf16 %v2487, %v2463
    %v2658 = vpack.c.bf16 %v2512, %v2488
    %v2659 = vpack.c.bf16 %v2513, %v2489
    %v2660 = vpack.c.bf16 %v2514, %v2490
    %v2661 = vpack.c.bf16 %v2515, %v2491
    %v2662 = vpack.c.bf16 %v2516, %v2492
    %v2663 = vpack.c.bf16 %v2517, %v2493
    %v2664 = vpack.c.bf16 %v2518, %v2494
    %v2665 = vpack.c.bf16 %v2519, %v2495
    %v2666 = vpack.c.bf16 %v2520, %v2496
    %v2667 = vpack.c.bf16 %v2521, %v2497
    %v2668 = vpack.c.bf16 %v2522, %v2498
    %v2669 = vpack.c.bf16 %v2523, %v2499
    %v2670 = vpack.c.bf16 %v2524, %v2500
    %v2671 = vpack.c.bf16 %v2525, %v2501
    %v2672 = vpack.c.bf16 %v2526, %v2502
    %v2673 = vpack.c.bf16 %v2527, %v2503
    %v2674 = vpack.c.bf16 %v2528, %v2504
    %v2675 = vpack.c.bf16 %v2529, %v2505
    %v2676 = vpack.c.bf16 %v2530, %v2506
    %v2677 = vpack.c.bf16 %v2531, %v2507
    %v2678 = vpack.c.bf16 %v2532, %v2508
    %v2679 = vpack.c.bf16 %v2533, %v2509
    %v2680 = vpack.c.bf16 %v2534, %v2510
    %v2681 = vpack.c.bf16 %v2535, %v2511
    %v2682 = vpack.c.bf16 %v2560, %v2536
    %v2683 = vpack.c.bf16 %v2561, %v2537
    %v2684 = vpack.c.bf16 %v2562, %v2538
    %v2685 = vpack.c.bf16 %v2563, %v2539
    %v2686 = vpack.c.bf16 %v2564, %v2540
    %v2687 = vpack.c.bf16 %v2565, %v2541
    %v2688 = vpack.c.bf16 %v2566, %v2542
    %v2689 = vpack.c.bf16 %v2567, %v2543
    %v2690 = vpack.c.bf16 %v2568, %v2544
    %v2691 = vpack.c.bf16 %v2569, %v2545
    %v2692 = vpack.c.bf16 %v2570, %v2546
    %v2693 = vpack.c.bf16 %v2571, %v2547
    %v2694 = vpack.c.bf16 %v2572, %v2548
    %v2695 = vpack.c.bf16 %v2573, %v2549
    %v2696 = vpack.c.bf16 %v2574, %v2550
    %v2697 = vpack.c.bf16 %v2575, %v2551
    %v2698 = vpack.c.bf16 %v2576, %v2552
    %v2699 = vpack.c.bf16 %v2577, %v2553
    %v2700 = vpack.c.bf16 %v2578, %v2554
    %v2701 = vpack.c.bf16 %v2579, %v2555
    %v2702 = vpack.c.bf16 %v2580, %v2556
    %v2703 = vpack.c.bf16 %v2581, %v2557
    %v2704 = vpack.c.bf16 %v2582, %v2558
    %v2705 = vpack.c.bf16 %v2583, %v2559
    %v2706 = vpack.c.bf16 %v2608, %v2584
    %v2707 = vpack.c.bf16 %v2609, %v2585
    %v2708 = vpack.c.bf16 %v2610, %v2586
    %v2709 = vpack.c.bf16 %v2611, %v2587
    %v2710 = vpack.c.bf16 %v2612, %v2588
    %v2711 = vpack.c.bf16 %v2613, %v2589
    %v2712 = vpack.c.bf16 %v2614, %v2590
    %v2713 = vpack.c.bf16 %v2615, %v2591
    %v2714 = vpack.c.bf16 %v2616, %v2592
    %v2715 = vpack.c.bf16 %v2617, %v2593
    %v2716 = vpack.c.bf16 %v2618, %v2594
    %v2717 = vpack.c.bf16 %v2619, %v2595
    %v2718 = vpack.c.bf16 %v2620, %v2596
    %v2719 = vpack.c.bf16 %v2621, %v2597
    %v2720 = vpack.c.bf16 %v2622, %v2598
    %v2721 = vpack.c.bf16 %v2623, %v2599
    %v2722 = vpack.c.bf16 %v2624, %v2600
    %v2723 = vpack.c.bf16 %v2625, %v2601
    %v2724 = vpack.c.bf16 %v2626, %v2602
    %v2725 = vpack.c.bf16 %v2627, %v2603
    %v2726 = vpack.c.bf16 %v2628, %v2604
    %v2727 = vpack.c.bf16 %v2629, %v2605
    %v2728 = vpack.c.bf16 %v2630, %v2606
    %v2729 = vpack.c.bf16 %v2631, %v2607
    %v2732 = vunpack.c.l.b16 %v2632
    %v2733 = vunpack.c.l.b16 %v2633
    %v2734 = vpack.c.b16 %v2733, %v2732
    %v2736 = vsel %vm1551, %v2734, 0
    %2738 = vmatprep.subr.bf16.mxu0 %v2635
    %2739 = vmatpush1.bf16.msra.mxu0 %v2634
    %2740 = vmatprep.subr.bf16.mxu0 %v2659
    %2741 = vmatpush1.bf16.msra.mxu0 %v2658
    %2742 = vmatprep.subr.bf16.mxu0 %v2683
    %2743 = vmatpush1.bf16.msra.mxu0 %v2682
    %2744 = vmatprep.subr.bf16.mxu0 %v2707
    %2745 = vmatpush1.bf16.msra.mxu0 %v2706
    %2746 = vmatprep.subr.bf16.mxu0 0
    %2747 = vmatpush1.bf16.msra.mxu0 0
    %2748 = vmatprep.subr.bf16.mxu0 0
    %2749 = vmatpush1.bf16.msra.mxu0 0
    %2750 = vmatprep.subr.bf16.mxu0 0
    %2751 = vmatpush1.bf16.msra.mxu0 0
    %2752 = vmatprep.subr.bf16.mxu0 0
    %2753 = vmatpush1.bf16.msra.mxu0 0
    %2754 = vmatprep.subr.bf16.mxu0 0
    %2755 = vmatpush1.bf16.msra.mxu0 0
    %2756 = vmatprep.subr.bf16.mxu0 0
    %2757 = vmatpush1.bf16.msra.mxu0 0
    %2758 = vmatprep.subr.bf16.mxu0 0
    %2759 = vmatpush1.bf16.msra.mxu0 0
    %2760 = vmatprep.subr.bf16.mxu0 0
    %2761 = vmatpush1.bf16.msra.mxu0 0
    %2762 = vmatprep.subr.bf16.mxu0 0
    %2763 = vmatpush1.bf16.msra.mxu0 0
    %2764 = vmatprep.subr.bf16.mxu0 0
    %2765 = vmatpush1.bf16.msra.mxu0 0
    %2766 = vmatprep.subr.bf16.mxu0 0
    %2767 = vmatpush1.bf16.msra.mxu0 0
    %2768 = vmatprep.subr.bf16.mxu0 0
    %2769 = vmatpush1.bf16.msra.mxu0 0
    %2770 = vmatprep.mubr.bf16.mxu0 0
    %2771 = vmatmul.mubr.bf16.gmra.mrb[0].mxu0 %v2736
    %v2772 = vpop.f32.mrb[0].mxu0
    %v2773 = vadd.f32 0.0, %v2772
    %v2774 = vpop.f32.mrb[0].mxu0
    %v2775 = vadd.f32 0.0, %v2774
    %v2776 = vpop.f32.mrb[0].mxu0
    %v2777 = vadd.f32 0.0, %v2776
    %v2778 = vpop.f32.mrb[0].mxu0
    %v2779 = vadd.f32 0.0, %v2778
    %2780 = vdwg.mxu0
    %2781 = vmatprep.subr.bf16.mxu0 %v2637
    %2782 = vmatpush1.bf16.msra.mxu0 %v2636
    %2783 = vmatprep.subr.bf16.mxu0 %v2661
    %2784 = vmatpush1.bf16.msra.mxu0 %v2660
    %2785 = vmatprep.subr.bf16.mxu0 %v2685
    %2786 = vmatpush1.bf16.msra.mxu0 %v2684
    %2787 = vmatprep.subr.bf16.mxu0 %v2709
    %2788 = vmatpush1.bf16.msra.mxu0 %v2708
    %2789 = vmatprep.subr.bf16.mxu0 0
    %2790 = vmatpush1.bf16.msra.mxu0 0
    %2791 = vmatprep.subr.bf16.mxu0 0
    %2792 = vmatpush1.bf16.msra.mxu0 0
    %2793 = vmatprep.subr.bf16.mxu0 0
    %2794 = vmatpush1.bf16.msra.mxu0 0
    %2795 = vmatprep.subr.bf16.mxu0 0
    %2796 = vmatpush1.bf16.msra.mxu0 0
    %2797 = vmatprep.subr.bf16.mxu0 0
    %2798 = vmatpush1.bf16.msra.mxu0 0
    %2799 = vmatprep.subr.bf16.mxu0 0
    %2800 = vmatpush1.bf16.msra.mxu0 0
    %2801 = vmatprep.subr.bf16.mxu0 0
    %2802 = vmatpush1.bf16.msra.mxu0 0
    %2803 = vmatprep.subr.bf16.mxu0 0
    %2804 = vmatpush1.bf16.msra.mxu0 0
    %2805 = vmatprep.subr.bf16.mxu0 0
    %2806 = vmatpush1.bf16.msra.mxu0 0
    %2807 = vmatprep.subr.bf16.mxu0 0
    %2808 = vmatpush1.bf16.msra.mxu0 0
    %2809 = vmatprep.subr.bf16.mxu0 0
    %2810 = vmatpush1.bf16.msra.mxu0 0
    %2811 = vmatprep.subr.bf16.mxu0 0
    %2812 = vmatpush1.bf16.msra.mxu0 0
    %2813 = vmatprep.mubr.bf16.mxu0 0
    %2814 = vmatmul.mubr.bf16.gmra.mrb[0].mxu0 %v2736
    %v2815 = vpop.f32.mrb[0].mxu0
    %v2816 = vadd.f32 0.0, %v2815
    %v2817 = vpop.f32.mrb[0].mxu0
    %v2818 = vadd.f32 0.0, %v2817
    %v2819 = vpop.f32.mrb[0].mxu0
    %v2820 = vadd.f32 0.0, %v2819
    %v2821 = vpop.f32.mrb[0].mxu0
    %v2822 = vadd.f32 0.0, %v2821
    %2823 = vdwg.mxu0
    %2824 = vmatprep.subr.bf16.mxu0 %v2639
    %2825 = vmatpush1.bf16.msra.mxu0 %v2638
    %2826 = vmatprep.subr.bf16.mxu0 %v2663
    %2827 = vmatpush1.bf16.msra.mxu0 %v2662
    %2828 = vmatprep.subr.bf16.mxu0 %v2687
    %2829 = vmatpush1.bf16.msra.mxu0 %v2686
    %2830 = vmatprep.subr.bf16.mxu0 %v2711
    %2831 = vmatpush1.bf16.msra.mxu0 %v2710
    %2832 = vmatprep.subr.bf16.mxu0 0
    %2833 = vmatpush1.bf16.msra.mxu0 0
    %2834 = vmatprep.subr.bf16.mxu0 0
    %2835 = vmatpush1.bf16.msra.mxu0 0
    %2836 = vmatprep.subr.bf16.mxu0 0
    %2837 = vmatpush1.bf16.msra.mxu0 0
    %2838 = vmatprep.subr.bf16.mxu0 0
    %2839 = vmatpush1.bf16.msra.mxu0 0
    %2840 = vmatprep.subr.bf16.mxu0 0
    %2841 = vmatpush1.bf16.msra.mxu0 0
    %2842 = vmatprep.subr.bf16.mxu0 0
    %2843 = vmatpush1.bf16.msra.mxu0 0
    %2844 = vmatprep.subr.bf16.mxu0 0
    %2845 = vmatpush1.bf16.msra.mxu0 0
    %2846 = vmatprep.subr.bf16.mxu0 0
    %2847 = vmatpush1.bf16.msra.mxu0 0
    %2848 = vmatprep.subr.bf16.mxu0 0
    %2849 = vmatpush1.bf16.msra.mxu0 0
    %2850 = vmatprep.subr.bf16.mxu0 0
    %2851 = vmatpush1.bf16.msra.mxu0 0
    %2852 = vmatprep.subr.bf16.mxu0 0
    %2853 = vmatpush1.bf16.msra.mxu0 0
    %2854 = vmatprep.subr.bf16.mxu0 0
    %2855 = vmatpush1.bf16.msra.mxu0 0
    %2856 = vmatprep.mubr.bf16.mxu0 0
    %2857 = vmatmul.mubr.bf16.gmra.mrb[0].mxu0 %v2736
    %v2858 = vpop.f32.mrb[0].mxu0
    %v2859 = vadd.f32 0.0, %v2858
    %v2860 = vpop.f32.mrb[0].mxu0
    %v2861 = vadd.f32 0.0, %v2860
    %v2862 = vpop.f32.mrb[0].mxu0
    %v2863 = vadd.f32 0.0, %v2862
    %v2864 = vpop.f32.mrb[0].mxu0
    %v2865 = vadd.f32 0.0, %v2864
    %2866 = vdwg.mxu0
    %2867 = vmatprep.subr.bf16.mxu0 %v2641
    %2868 = vmatpush1.bf16.msra.mxu0 %v2640
    %2869 = vmatprep.subr.bf16.mxu0 %v2665
    %2870 = vmatpush1.bf16.msra.mxu0 %v2664
    %2871 = vmatprep.subr.bf16.mxu0 %v2689
    %2872 = vmatpush1.bf16.msra.mxu0 %v2688
    %2873 = vmatprep.subr.bf16.mxu0 %v2713
    %2874 = vmatpush1.bf16.msra.mxu0 %v2712
    %2875 = vmatprep.subr.bf16.mxu0 0
    %2876 = vmatpush1.bf16.msra.mxu0 0
    %2877 = vmatprep.subr.bf16.mxu0 0
    %2878 = vmatpush1.bf16.msra.mxu0 0
    %2879 = vmatprep.subr.bf16.mxu0 0
    %2880 = vmatpush1.bf16.msra.mxu0 0
    %2881 = vmatprep.subr.bf16.mxu0 0
    %2882 = vmatpush1.bf16.msra.mxu0 0
    %2883 = vmatprep.subr.bf16.mxu0 0
    %2884 = vmatpush1.bf16.msra.mxu0 0
    %2885 = vmatprep.subr.bf16.mxu0 0
    %2886 = vmatpush1.bf16.msra.mxu0 0
    %2887 = vmatprep.subr.bf16.mxu0 0
    %2888 = vmatpush1.bf16.msra.mxu0 0
    %2889 = vmatprep.subr.bf16.mxu0 0
    %2890 = vmatpush1.bf16.msra.mxu0 0
    %2891 = vmatprep.subr.bf16.mxu0 0
    %2892 = vmatpush1.bf16.msra.mxu0 0
    %2893 = vmatprep.subr.bf16.mxu0 0
    %2894 = vmatpush1.bf16.msra.mxu0 0
    %2895 = vmatprep.subr.bf16.mxu0 0
    %2896 = vmatpush1.bf16.msra.mxu0 0
    %2897 = vmatprep.subr.bf16.mxu0 0
    %2898 = vmatpush1.bf16.msra.mxu0 0
    %2899 = vmatprep.mubr.bf16.mxu0 0
    %2900 = vmatmul.mubr.bf16.gmra.mrb[0].mxu0 %v2736
    %v2901 = vpop.f32.mrb[0].mxu0
    %v2902 = vadd.f32 0.0, %v2901
    %v2903 = vpop.f32.mrb[0].mxu0
    %v2904 = vadd.f32 0.0, %v2903
    %v2905 = vpop.f32.mrb[0].mxu0
    %v2906 = vadd.f32 0.0, %v2905
    %v2907 = vpop.f32.mrb[0].mxu0
    %v2908 = vadd.f32 0.0, %v2907
    %2909 = vdwg.mxu0
    %2910 = vmatprep.subr.bf16.mxu0 %v2643
    %2911 = vmatpush1.bf16.msra.mxu0 %v2642
    %2912 = vmatprep.subr.bf16.mxu0 %v2667
    %2913 = vmatpush1.bf16.msra.mxu0 %v2666
    %2914 = vmatprep.subr.bf16.mxu0 %v2691
    %2915 = vmatpush1.bf16.msra.mxu0 %v2690
    %2916 = vmatprep.subr.bf16.mxu0 %v2715
    %2917 = vmatpush1.bf16.msra.mxu0 %v2714
    %2918 = vmatprep.subr.bf16.mxu0 0
    %2919 = vmatpush1.bf16.msra.mxu0 0
    %2920 = vmatprep.subr.bf16.mxu0 0
    %2921 = vmatpush1.bf16.msra.mxu0 0
    %2922 = vmatprep.subr.bf16.mxu0 0
    %2923 = vmatpush1.bf16.msra.mxu0 0
    %2924 = vmatprep.subr.bf16.mxu0 0
    %2925 = vmatpush1.bf16.msra.mxu0 0
    %2926 = vmatprep.subr.bf16.mxu0 0
    %2927 = vmatpush1.bf16.msra.mxu0 0
    %2928 = vmatprep.subr.bf16.mxu0 0
    %2929 = vmatpush1.bf16.msra.mxu0 0
    %2930 = vmatprep.subr.bf16.mxu0 0
    %2931 = vmatpush1.bf16.msra.mxu0 0
    %2932 = vmatprep.subr.bf16.mxu0 0
    %2933 = vmatpush1.bf16.msra.mxu0 0
    %2934 = vmatprep.subr.bf16.mxu0 0
    %2935 = vmatpush1.bf16.msra.mxu0 0
    %2936 = vmatprep.subr.bf16.mxu0 0
    %2937 = vmatpush1.bf16.msra.mxu0 0
    %2938 = vmatprep.subr.bf16.mxu0 0
    %2939 = vmatpush1.bf16.msra.mxu0 0
    %2940 = vmatprep.subr.bf16.mxu0 0
    %2941 = vmatpush1.bf16.msra.mxu0 0
    %2942 = vmatprep.mubr.bf16.mxu0 0
    %2943 = vmatmul.mubr.bf16.gmra.mrb[0].mxu0 %v2736
    %v2944 = vpop.f32.mrb[0].mxu0
    %v2945 = vadd.f32 0.0, %v2944
    %v2946 = vpop.f32.mrb[0].mxu0
    %v2947 = vadd.f32 0.0, %v2946
    %v2948 = vpop.f32.mrb[0].mxu0
    %v2949 = vadd.f32 0.0, %v2948
    %v2950 = vpop.f32.mrb[0].mxu0
    %v2951 = vadd.f32 0.0, %v2950
    %2952 = vdwg.mxu0
    %2953 = vmatprep.subr.bf16.mxu0 %v2645
    %2954 = vmatpush1.bf16.msra.mxu0 %v2644
    %2955 = vmatprep.subr.bf16.mxu0 %v2669
    %2956 = vmatpush1.bf16.msra.mxu0 %v2668
    %2957 = vmatprep.subr.bf16.mxu0 %v2693
    %2958 = vmatpush1.bf16.msra.mxu0 %v2692
    %2959 = vmatprep.subr.bf16.mxu0 %v2717
    %2960 = vmatpush1.bf16.msra.mxu0 %v2716
    %2961 = vmatprep.subr.bf16.mxu0 0
    %2962 = vmatpush1.bf16.msra.mxu0 0
    %2963 = vmatprep.subr.bf16.mxu0 0
    %2964 = vmatpush1.bf16.msra.mxu0 0
    %2965 = vmatprep.subr.bf16.mxu0 0
    %2966 = vmatpush1.bf16.msra.mxu0 0
    %2967 = vmatprep.subr.bf16.mxu0 0
    %2968 = vmatpush1.bf16.msra.mxu0 0
    %2969 = vmatprep.subr.bf16.mxu0 0
    %2970 = vmatpush1.bf16.msra.mxu0 0
    %2971 = vmatprep.subr.bf16.mxu0 0
    %2972 = vmatpush1.bf16.msra.mxu0 0
    %2973 = vmatprep.subr.bf16.mxu0 0
    %2974 = vmatpush1.bf16.msra.mxu0 0
    %2975 = vmatprep.subr.bf16.mxu0 0
    %2976 = vmatpush1.bf16.msra.mxu0 0
    %2977 = vmatprep.subr.bf16.mxu0 0
    %2978 = vmatpush1.bf16.msra.mxu0 0
    %2979 = vmatprep.subr.bf16.mxu0 0
    %2980 = vmatpush1.bf16.msra.mxu0 0
    %2981 = vmatprep.subr.bf16.mxu0 0
    %2982 = vmatpush1.bf16.msra.mxu0 0
    %2983 = vmatprep.subr.bf16.mxu0 0
    %2984 = vmatpush1.bf16.msra.mxu0 0
    %2985 = vmatprep.mubr.bf16.mxu0 0
    %2986 = vmatmul.mubr.bf16.gmra.mrb[0].mxu0 %v2736
    %v2987 = vpop.f32.mrb[0].mxu0
    %v2988 = vadd.f32 0.0, %v2987
    %v2989 = vpop.f32.mrb[0].mxu0
    %v2990 = vadd.f32 0.0, %v2989
    %v2991 = vpop.f32.mrb[0].mxu0
    %v2992 = vadd.f32 0.0, %v2991
    %v2993 = vpop.f32.mrb[0].mxu0
    %v2994 = vadd.f32 0.0, %v2993
    %2995 = vdwg.mxu0
    %2996 = vmatprep.subr.bf16.mxu0 %v2647
    %2997 = vmatpush1.bf16.msra.mxu0 %v2646
    %2998 = vmatprep.subr.bf16.mxu0 %v2671
    %2999 = vmatpush1.bf16.msra.mxu0 %v2670
    %3000 = vmatprep.subr.bf16.mxu0 %v2695
    %3001 = vmatpush1.bf16.msra.mxu0 %v2694
    %3002 = vmatprep.subr.bf16.mxu0 %v2719
    %3003 = vmatpush1.bf16.msra.mxu0 %v2718
    %3004 = vmatprep.subr.bf16.mxu0 0
    %3005 = vmatpush1.bf16.msra.mxu0 0
    %3006 = vmatprep.subr.bf16.mxu0 0
    %3007 = vmatpush1.bf16.msra.mxu0 0
    %3008 = vmatprep.subr.bf16.mxu0 0
    %3009 = vmatpush1.bf16.msra.mxu0 0
    %3010 = vmatprep.subr.bf16.mxu0 0
    %3011 = vmatpush1.bf16.msra.mxu0 0
    %3012 = vmatprep.subr.bf16.mxu0 0
    %3013 = vmatpush1.bf16.msra.mxu0 0
    %3014 = vmatprep.subr.bf16.mxu0 0
    %3015 = vmatpush1.bf16.msra.mxu0 0
    %3016 = vmatprep.subr.bf16.mxu0 0
    %3017 = vmatpush1.bf16.msra.mxu0 0
    %3018 = vmatprep.subr.bf16.mxu0 0
    %3019 = vmatpush1.bf16.msra.mxu0 0
    %3020 = vmatprep.subr.bf16.mxu0 0
    %3021 = vmatpush1.bf16.msra.mxu0 0
    %3022 = vmatprep.subr.bf16.mxu0 0
    %3023 = vmatpush1.bf16.msra.mxu0 0
    %3024 = vmatprep.subr.bf16.mxu0 0
    %3025 = vmatpush1.bf16.msra.mxu0 0
    %3026 = vmatprep.subr.bf16.mxu0 0
    %3027 = vmatpush1.bf16.msra.mxu0 0
    %3028 = vmatprep.mubr.bf16.mxu0 0
    %3029 = vmatmul.mubr.bf16.gmra.mrb[0].mxu0 %v2736
    %v3030 = vpop.f32.mrb[0].mxu0
    %v3031 = vadd.f32 0.0, %v3030
    %v3032 = vpop.f32.mrb[0].mxu0
    %v3033 = vadd.f32 0.0, %v3032
    %v3034 = vpop.f32.mrb[0].mxu0
    %v3035 = vadd.f32 0.0, %v3034
    %v3036 = vpop.f32.mrb[0].mxu0
    %v3037 = vadd.f32 0.0, %v3036
    %3038 = vdwg.mxu0
    %3039 = vmatprep.subr.bf16.mxu0 %v2649
    %3040 = vmatpush1.bf16.msra.mxu0 %v2648
    %3041 = vmatprep.subr.bf16.mxu0 %v2673
    %3042 = vmatpush1.bf16.msra.mxu0 %v2672
    %3043 = vmatprep.subr.bf16.mxu0 %v2697
    %3044 = vmatpush1.bf16.msra.mxu0 %v2696
    %3045 = vmatprep.subr.bf16.mxu0 %v2721
    %3046 = vmatpush1.bf16.msra.mxu0 %v2720
    %3047 = vmatprep.subr.bf16.mxu0 0
    %3048 = vmatpush1.bf16.msra.mxu0 0
    %3049 = vmatprep.subr.bf16.mxu0 0
    %3050 = vmatpush1.bf16.msra.mxu0 0
    %3051 = vmatprep.subr.bf16.mxu0 0
    %3052 = vmatpush1.bf16.msra.mxu0 0
    %3053 = vmatprep.subr.bf16.mxu0 0
    %3054 = vmatpush1.bf16.msra.mxu0 0
    %3055 = vmatprep.subr.bf16.mxu0 0
    %3056 = vmatpush1.bf16.msra.mxu0 0
    %3057 = vmatprep.subr.bf16.mxu0 0
    %3058 = vmatpush1.bf16.msra.mxu0 0
    %3059 = vmatprep.subr.bf16.mxu0 0
    %3060 = vmatpush1.bf16.msra.mxu0 0
    %3061 = vmatprep.subr.bf16.mxu0 0
    %3062 = vmatpush1.bf16.msra.mxu0 0
    %3063 = vmatprep.subr.bf16.mxu0 0
    %3064 = vmatpush1.bf16.msra.mxu0 0
    %3065 = vmatprep.subr.bf16.mxu0 0
    %3066 = vmatpush1.bf16.msra.mxu0 0
    %3067 = vmatprep.subr.bf16.mxu0 0
    %3068 = vmatpush1.bf16.msra.mxu0 0
    %3069 = vmatprep.subr.bf16.mxu0 0
    %3070 = vmatpush1.bf16.msra.mxu0 0
    %3071 = vmatprep.mubr.bf16.mxu0 0
    %3072 = vmatmul.mubr.bf16.gmra.mrb[0].mxu0 %v2736
    %v3073 = vpop.f32.mrb[0].mxu0
    %v3074 = vadd.f32 0.0, %v3073
    %v3075 = vpop.f32.mrb[0].mxu0
    %v3076 = vadd.f32 0.0, %v3075
    %v3077 = vpop.f32.mrb[0].mxu0
    %v3078 = vadd.f32 0.0, %v3077
    %v3079 = vpop.f32.mrb[0].mxu0
    %v3080 = vadd.f32 0.0, %v3079
    %3081 = vdwg.mxu0
    %3082 = vmatprep.subr.bf16.mxu0 %v2651
    %3083 = vmatpush1.bf16.msra.mxu0 %v2650
    %3084 = vmatprep.subr.bf16.mxu0 %v2675
    %3085 = vmatpush1.bf16.msra.mxu0 %v2674
    %3086 = vmatprep.subr.bf16.mxu0 %v2699
    %3087 = vmatpush1.bf16.msra.mxu0 %v2698
    %3088 = vmatprep.subr.bf16.mxu0 %v2723
    %3089 = vmatpush1.bf16.msra.mxu0 %v2722
    %3090 = vmatprep.subr.bf16.mxu0 0
    %3091 = vmatpush1.bf16.msra.mxu0 0
    %3092 = vmatprep.subr.bf16.mxu0 0
    %3093 = vmatpush1.bf16.msra.mxu0 0
    %3094 = vmatprep.subr.bf16.mxu0 0
    %3095 = vmatpush1.bf16.msra.mxu0 0
    %3096 = vmatprep.subr.bf16.mxu0 0
    %3097 = vmatpush1.bf16.msra.mxu0 0
    %3098 = vmatprep.subr.bf16.mxu0 0
    %3099 = vmatpush1.bf16.msra.mxu0 0
    %3100 = vmatprep.subr.bf16.mxu0 0
    %3101 = vmatpush1.bf16.msra.mxu0 0
    %3102 = vmatprep.subr.bf16.mxu0 0
    %3103 = vmatpush1.bf16.msra.mxu0 0
    %3104 = vmatprep.subr.bf16.mxu0 0
    %3105 = vmatpush1.bf16.msra.mxu0 0
    %3106 = vmatprep.subr.bf16.mxu0 0
    %3107 = vmatpush1.bf16.msra.mxu0 0
    %3108 = vmatprep.subr.bf16.mxu0 0
    %3109 = vmatpush1.bf16.msra.mxu0 0
    %3110 = vmatprep.subr.bf16.mxu0 0
    %3111 = vmatpush1.bf16.msra.mxu0 0
    %3112 = vmatprep.subr.bf16.mxu0 0
    %3113 = vmatpush1.bf16.msra.mxu0 0
    %3114 = vmatprep.mubr.bf16.mxu0 0
    %3115 = vmatmul.mubr.bf16.gmra.mrb[0].mxu0 %v2736
    %v3116 = vpop.f32.mrb[0].mxu0
    %v3117 = vadd.f32 0.0, %v3116
    %v3118 = vpop.f32.mrb[0].mxu0
    %v3119 = vadd.f32 0.0, %v3118
    %v3120 = vpop.f32.mrb[0].mxu0
    %v3121 = vadd.f32 0.0, %v3120
    %v3122 = vpop.f32.mrb[0].mxu0
    %v3123 = vadd.f32 0.0, %v3122
    %3124 = vdwg.mxu0
    %3125 = vmatprep.subr.bf16.mxu0 %v2653
    %3126 = vmatpush1.bf16.msra.mxu0 %v2652
    %3127 = vmatprep.subr.bf16.mxu0 %v2677
    %3128 = vmatpush1.bf16.msra.mxu0 %v2676
    %3129 = vmatprep.subr.bf16.mxu0 %v2701
    %3130 = vmatpush1.bf16.msra.mxu0 %v2700
    %3131 = vmatprep.subr.bf16.mxu0 %v2725
    %3132 = vmatpush1.bf16.msra.mxu0 %v2724
    %3133 = vmatprep.subr.bf16.mxu0 0
    %3134 = vmatpush1.bf16.msra.mxu0 0
    %3135 = vmatprep.subr.bf16.mxu0 0
    %3136 = vmatpush1.bf16.msra.mxu0 0
    %3137 = vmatprep.subr.bf16.mxu0 0
    %3138 = vmatpush1.bf16.msra.mxu0 0
    %3139 = vmatprep.subr.bf16.mxu0 0
    %3140 = vmatpush1.bf16.msra.mxu0 0
    %3141 = vmatprep.subr.bf16.mxu0 0
    %3142 = vmatpush1.bf16.msra.mxu0 0
    %3143 = vmatprep.subr.bf16.mxu0 0
    %3144 = vmatpush1.bf16.msra.mxu0 0
    %3145 = vmatprep.subr.bf16.mxu0 0
    %3146 = vmatpush1.bf16.msra.mxu0 0
    %3147 = vmatprep.subr.bf16.mxu0 0
    %3148 = vmatpush1.bf16.msra.mxu0 0
    %3149 = vmatprep.subr.bf16.mxu0 0
    %3150 = vmatpush1.bf16.msra.mxu0 0
    %3151 = vmatprep.subr.bf16.mxu0 0
    %3152 = vmatpush1.bf16.msra.mxu0 0
    %3153 = vmatprep.subr.bf16.mxu0 0
    %3154 = vmatpush1.bf16.msra.mxu0 0
    %3155 = vmatprep.subr.bf16.mxu0 0
    %3156 = vmatpush1.bf16.msra.mxu0 0
    %3157 = vmatprep.mubr.bf16.mxu0 0
    %3158 = vmatmul.mubr.bf16.gmra.mrb[0].mxu0 %v2736
    %v3159 = vpop.f32.mrb[0].mxu0
    %v3160 = vadd.f32 0.0, %v3159
    %v3161 = vpop.f32.mrb[0].mxu0
    %v3162 = vadd.f32 0.0, %v3161
    %v3163 = vpop.f32.mrb[0].mxu0
    %v3164 = vadd.f32 0.0, %v3163
    %v3165 = vpop.f32.mrb[0].mxu0
    %v3166 = vadd.f32 0.0, %v3165
    %3167 = vdwg.mxu0
    %3168 = vmatprep.subr.bf16.mxu0 %v2655
    %3169 = vmatpush1.bf16.msra.mxu0 %v2654
    %3170 = vmatprep.subr.bf16.mxu0 %v2679
    %3171 = vmatpush1.bf16.msra.mxu0 %v2678
    %3172 = vmatprep.subr.bf16.mxu0 %v2703
    %3173 = vmatpush1.bf16.msra.mxu0 %v2702
    %3174 = vmatprep.subr.bf16.mxu0 %v2727
    %3175 = vmatpush1.bf16.msra.mxu0 %v2726
    %3176 = vmatprep.subr.bf16.mxu0 0
    %3177 = vmatpush1.bf16.msra.mxu0 0
    %3178 = vmatprep.subr.bf16.mxu0 0
    %3179 = vmatpush1.bf16.msra.mxu0 0
    %3180 = vmatprep.subr.bf16.mxu0 0
    %3181 = vmatpush1.bf16.msra.mxu0 0
    %3182 = vmatprep.subr.bf16.mxu0 0
    %3183 = vmatpush1.bf16.msra.mxu0 0
    %3184 = vmatprep.subr.bf16.mxu0 0
    %3185 = vmatpush1.bf16.msra.mxu0 0
    %3186 = vmatprep.subr.bf16.mxu0 0
    %3187 = vmatpush1.bf16.msra.mxu0 0
    %3188 = vmatprep.subr.bf16.mxu0 0
    %3189 = vmatpush1.bf16.msra.mxu0 0
    %3190 = vmatprep.subr.bf16.mxu0 0
    %3191 = vmatpush1.bf16.msra.mxu0 0
    %3192 = vmatprep.subr.bf16.mxu0 0
    %3193 = vmatpush1.bf16.msra.mxu0 0
    %3194 = vmatprep.subr.bf16.mxu0 0
    %3195 = vmatpush1.bf16.msra.mxu0 0
    %3196 = vmatprep.subr.bf16.mxu0 0
    %3197 = vmatpush1.bf16.msra.mxu0 0
    %3198 = vmatprep.subr.bf16.mxu0 0
    %3199 = vmatpush1.bf16.msra.mxu0 0
    %3200 = vmatprep.mubr.bf16.mxu0 0
    %3201 = vmatmul.mubr.bf16.gmra.mrb[0].mxu0 %v2736
    %v3202 = vpop.f32.mrb[0].mxu0
    %v3203 = vadd.f32 0.0, %v3202
    %v3204 = vpop.f32.mrb[0].mxu0
    %v3205 = vadd.f32 0.0, %v3204
    %v3206 = vpop.f32.mrb[0].mxu0
    %v3207 = vadd.f32 0.0, %v3206
    %v3208 = vpop.f32.mrb[0].mxu0
    %v3209 = vadd.f32 0.0, %v3208
    %3210 = vdwg.mxu0
    %3211 = vmatprep.subr.bf16.mxu0 %v2657
    %3212 = vmatpush1.bf16.msra.mxu0 %v2656
    %3213 = vmatprep.subr.bf16.mxu0 %v2681
    %3214 = vmatpush1.bf16.msra.mxu0 %v2680
    %3215 = vmatprep.subr.bf16.mxu0 %v2705
    %3216 = vmatpush1.bf16.msra.mxu0 %v2704
    %3217 = vmatprep.subr.bf16.mxu0 %v2729
    %3218 = vmatpush1.bf16.msra.mxu0 %v2728
    %3219 = vmatprep.subr.bf16.mxu0 0
    %3220 = vmatpush1.bf16.msra.mxu0 0
    %3221 = vmatprep.subr.bf16.mxu0 0
    %3222 = vmatpush1.bf16.msra.mxu0 0
    %3223 = vmatprep.subr.bf16.mxu0 0
    %3224 = vmatpush1.bf16.msra.mxu0 0
    %3225 = vmatprep.subr.bf16.mxu0 0
    %3226 = vmatpush1.bf16.msra.mxu0 0
    %3227 = vmatprep.subr.bf16.mxu0 0
    %3228 = vmatpush1.bf16.msra.mxu0 0
    %3229 = vmatprep.subr.bf16.mxu0 0
    %3230 = vmatpush1.bf16.msra.mxu0 0
    %3231 = vmatprep.subr.bf16.mxu0 0
    %3232 = vmatpush1.bf16.msra.mxu0 0
    %3233 = vmatprep.subr.bf16.mxu0 0
    %3234 = vmatpush1.bf16.msra.mxu0 0
    %3235 = vmatprep.subr.bf16.mxu0 0
    %3236 = vmatpush1.bf16.msra.mxu0 0
    %3237 = vmatprep.subr.bf16.mxu0 0
    %3238 = vmatpush1.bf16.msra.mxu0 0
    %3239 = vmatprep.subr.bf16.mxu0 0
    %3240 = vmatpush1.bf16.msra.mxu0 0
    %3241 = vmatprep.subr.bf16.mxu0 0
    %3242 = vmatpush1.bf16.msra.mxu0 0
    %3243 = vmatprep.mubr.bf16.mxu0 0
    %3244 = vmatmul.mubr.bf16.gmra.mrb[0].mxu0 %v2736
    %v3245 = vpop.f32.mrb[0].mxu0
    %v3246 = vadd.f32 0.0, %v3245
    %v3247 = vpop.f32.mrb[0].mxu0
    %v3248 = vadd.f32 0.0, %v3247
    %v3249 = vpop.f32.mrb[0].mxu0
    %v3250 = vadd.f32 0.0, %v3249
    %v3251 = vpop.f32.mrb[0].mxu0
    %v3252 = vadd.f32 0.0, %v3251
    %3253 = vdwg.mxu0
    %v3254 = vmax.f32 %v2773, 0.0
    %v3255 = vmax.f32 %v2775, 0.0
    %v3256 = vmax.f32 %v2816, 0.0
    %v3257 = vmax.f32 %v2818, 0.0
    %v3258 = vmax.f32 %v2859, 0.0
    %v3259 = vmax.f32 %v2861, 0.0
    %v3260 = vmax.f32 %v2902, 0.0
    %v3261 = vmax.f32 %v2904, 0.0
    %v3262 = vmax.f32 %v2945, 0.0
    %v3263 = vmax.f32 %v2947, 0.0
    %v3264 = vmax.f32 %v2988, 0.0
    %v3265 = vmax.f32 %v2990, 0.0
    %v3266 = vmax.f32 %v3031, 0.0
    %v3267 = vmax.f32 %v3033, 0.0
    %v3268 = vmax.f32 %v3074, 0.0
    %v3269 = vmax.f32 %v3076, 0.0
    %v3270 = vmax.f32 %v3117, 0.0
    %v3271 = vmax.f32 %v3119, 0.0
    %v3272 = vmax.f32 %v3160, 0.0
    %v3273 = vmax.f32 %v3162, 0.0
    %v3274 = vmax.f32 %v3203, 0.0
    %v3275 = vmax.f32 %v3205, 0.0
    %v3276 = vmax.f32 %v3246, 0.0
    %v3277 = vmax.f32 %v3248, 0.0
    %v3278 = vmax.f32 %v2777, 0.0
    %v3279 = vmax.f32 %v2779, 0.0
    %v3280 = vmax.f32 %v2820, 0.0
    %v3281 = vmax.f32 %v2822, 0.0
    %v3282 = vmax.f32 %v2863, 0.0
    %v3283 = vmax.f32 %v2865, 0.0
    %v3284 = vmax.f32 %v2906, 0.0
    %v3285 = vmax.f32 %v2908, 0.0
    %v3286 = vmax.f32 %v2949, 0.0
    %v3287 = vmax.f32 %v2951, 0.0
    %v3288 = vmax.f32 %v2992, 0.0
    %v3289 = vmax.f32 %v2994, 0.0
    %v3290 = vmax.f32 %v3035, 0.0
    %v3291 = vmax.f32 %v3037, 0.0
    %v3292 = vmax.f32 %v3078, 0.0
    %v3293 = vmax.f32 %v3080, 0.0
    %v3294 = vmax.f32 %v3121, 0.0
    %v3295 = vmax.f32 %v3123, 0.0
    %v3296 = vmax.f32 %v3164, 0.0
    %v3297 = vmax.f32 %v3166, 0.0
    %v3298 = vmax.f32 %v3207, 0.0
    %v3299 = vmax.f32 %v3209, 0.0
    %v3300 = vmax.f32 %v3250, 0.0
    %v3301 = vmax.f32 %v3252, 0.0
    %v3302 = vld [vmem:[%s4] sm:$0xf]
    %v3303 = vld [vmem:[%s4 + $0x4] sm:$0xf]
    %v3304 = vpack.c.bf16 %v3278, %v3254
    %v3305 = vpack.c.bf16 %v3279, %v3255
    %v3306 = vpack.c.bf16 %v3280, %v3256
    %v3307 = vpack.c.bf16 %v3281, %v3257
    %v3308 = vpack.c.bf16 %v3282, %v3258
    %v3309 = vpack.c.bf16 %v3283, %v3259
    %v3310 = vpack.c.bf16 %v3284, %v3260
    %v3311 = vpack.c.bf16 %v3285, %v3261
    %v3312 = vpack.c.bf16 %v3286, %v3262
    %v3313 = vpack.c.bf16 %v3287, %v3263
    %v3314 = vpack.c.bf16 %v3288, %v3264
    %v3315 = vpack.c.bf16 %v3289, %v3265
    %v3316 = vpack.c.bf16 %v3290, %v3266
    %v3317 = vpack.c.bf16 %v3291, %v3267
    %v3318 = vpack.c.bf16 %v3292, %v3268
    %v3319 = vpack.c.bf16 %v3293, %v3269
    %v3320 = vpack.c.bf16 %v3294, %v3270
    %v3321 = vpack.c.bf16 %v3295, %v3271
    %v3322 = vpack.c.bf16 %v3296, %v3272
    %v3323 = vpack.c.bf16 %v3297, %v3273
    %v3324 = vpack.c.bf16 %v3298, %v3274
    %v3325 = vpack.c.bf16 %v3299, %v3275
    %v3326 = vpack.c.bf16 %v3300, %v3276
    %v3327 = vpack.c.bf16 %v3301, %v3277
    %v3330 = vunpack.c.l.b16 %v3302
    %v3331 = vunpack.c.l.b16 %v3303
    %v3332 = vpack.c.b16 %v3331, %v3330
    %vm3333 = vcmask 130048
    %v3335 = vsel %vm3333, %v3332, 0
    %3337 = vmatprep.subr.bf16.mxu0 %v3305
    %3338 = vmatpush1.bf16.msra.mxu0 %v3304
    %3339 = vmatprep.subr.bf16.mxu0 0
    %3340 = vmatpush1.bf16.msra.mxu0 0
    %3341 = vmatprep.subr.bf16.mxu0 0
    %3342 = vmatpush1.bf16.msra.mxu0 0
    %3343 = vmatprep.subr.bf16.mxu0 0
    %3344 = vmatpush1.bf16.msra.mxu0 0
    %3345 = vmatprep.subr.bf16.mxu0 0
    %3346 = vmatpush1.bf16.msra.mxu0 0
    %3347 = vmatprep.subr.bf16.mxu0 0
    %3348 = vmatpush1.bf16.msra.mxu0 0
    %3349 = vmatprep.subr.bf16.mxu0 0
    %3350 = vmatpush1.bf16.msra.mxu0 0
    %3351 = vmatprep.subr.bf16.mxu0 0
    %3352 = vmatpush1.bf16.msra.mxu0 0
    %3353 = vmatprep.subr.bf16.mxu0 0
    %3354 = vmatpush1.bf16.msra.mxu0 0
    %3355 = vmatprep.subr.bf16.mxu0 0
    %3356 = vmatpush1.bf16.msra.mxu0 0
    %3357 = vmatprep.subr.bf16.mxu0 0
    %3358 = vmatpush1.bf16.msra.mxu0 0
    %3359 = vmatprep.subr.bf16.mxu0 0
    %3360 = vmatpush1.bf16.msra.mxu0 0
    %3361 = vmatprep.subr.bf16.mxu0 0
    %3362 = vmatpush1.bf16.msra.mxu0 0
    %3363 = vmatprep.subr.bf16.mxu0 0
    %3364 = vmatpush1.bf16.msra.mxu0 0
    %3365 = vmatprep.subr.bf16.mxu0 0
    %3366 = vmatpush1.bf16.msra.mxu0 0
    %3367 = vmatprep.subr.bf16.mxu0 0
    %3368 = vmatpush1.bf16.msra.mxu0 0
    %3369 = vmatprep.mubr.bf16.mxu0 0
    %3370 = vmatmul.mubr.bf16.gmra.mrb[0].mxu0 %v3335
    %v3371 = vpop.f32.mrb[0].mxu0
    %v3372 = vadd.f32 %v314, %v3371
    %v3373 = vpop.f32.mrb[0].mxu0
    %v3374 = vadd.f32 %v316, %v3373
    %v3375 = vpop.f32.mrb[0].mxu0
    %v3376 = vadd.f32 %v318, %v3375
    %v3377 = vpop.f32.mrb[0].mxu0
    %v3378 = vadd.f32 %v320, %v3377
    %3379 = vdwg.mxu0
    %3380 = vmatprep.subr.bf16.mxu0 %v3307
    %3381 = vmatpush1.bf16.msra.mxu0 %v3306
    %3382 = vmatprep.subr.bf16.mxu0 0
    %3383 = vmatpush1.bf16.msra.mxu0 0
    %3384 = vmatprep.subr.bf16.mxu0 0
    %3385 = vmatpush1.bf16.msra.mxu0 0
    %3386 = vmatprep.subr.bf16.mxu0 0
    %3387 = vmatpush1.bf16.msra.mxu0 0
    %3388 = vmatprep.subr.bf16.mxu0 0
    %3389 = vmatpush1.bf16.msra.mxu0 0
    %3390 = vmatprep.subr.bf16.mxu0 0
    %3391 = vmatpush1.bf16.msra.mxu0 0
    %3392 = vmatprep.subr.bf16.mxu0 0
    %3393 = vmatpush1.bf16.msra.mxu0 0
    %3394 = vmatprep.subr.bf16.mxu0 0
    %3395 = vmatpush1.bf16.msra.mxu0 0
    %3396 = vmatprep.subr.bf16.mxu0 0
    %3397 = vmatpush1.bf16.msra.mxu0 0
    %3398 = vmatprep.subr.bf16.mxu0 0
    %3399 = vmatpush1.bf16.msra.mxu0 0
    %3400 = vmatprep.subr.bf16.mxu0 0
    %3401 = vmatpush1.bf16.msra.mxu0 0
    %3402 = vmatprep.subr.bf16.mxu0 0
    %3403 = vmatpush1.bf16.msra.mxu0 0
    %3404 = vmatprep.subr.bf16.mxu0 0
    %3405 = vmatpush1.bf16.msra.mxu0 0
    %3406 = vmatprep.subr.bf16.mxu0 0
    %3407 = vmatpush1.bf16.msra.mxu0 0
    %3408 = vmatprep.subr.bf16.mxu0 0
    %3409 = vmatpush1.bf16.msra.mxu0 0
    %3410 = vmatprep.subr.bf16.mxu0 0
    %3411 = vmatpush1.bf16.msra.mxu0 0
    %3412 = vmatprep.mubr.bf16.mxu0 0
    %3413 = vmatmul.mubr.bf16.gmra.mrb[0].mxu0 %v3335
    %v3414 = vpop.f32.mrb[0].mxu0
    %v3415 = vadd.f32 %v397, %v3414
    %v3416 = vpop.f32.mrb[0].mxu0
    %v3417 = vadd.f32 %v399, %v3416
    %v3418 = vpop.f32.mrb[0].mxu0
    %v3419 = vadd.f32 %v401, %v3418
    %v3420 = vpop.f32.mrb[0].mxu0
    %v3421 = vadd.f32 %v403, %v3420
    %3422 = vdwg.mxu0
    %3423 = vmatprep.subr.bf16.mxu0 %v3309
    %3424 = vmatpush1.bf16.msra.mxu0 %v3308
    %3425 = vmatprep.subr.bf16.mxu0 0
    %3426 = vmatpush1.bf16.msra.mxu0 0
    %3427 = vmatprep.subr.bf16.mxu0 0
    %3428 = vmatpush1.bf16.msra.mxu0 0
    %3429 = vmatprep.subr.bf16.mxu0 0
    %3430 = vmatpush1.bf16.msra.mxu0 0
    %3431 = vmatprep.subr.bf16.mxu0 0
    %3432 = vmatpush1.bf16.msra.mxu0 0
    %3433 = vmatprep.subr.bf16.mxu0 0
    %3434 = vmatpush1.bf16.msra.mxu0 0
    %3435 = vmatprep.subr.bf16.mxu0 0
    %3436 = vmatpush1.bf16.msra.mxu0 0
    %3437 = vmatprep.subr.bf16.mxu0 0
    %3438 = vmatpush1.bf16.msra.mxu0 0
    %3439 = vmatprep.subr.bf16.mxu0 0
    %3440 = vmatpush1.bf16.msra.mxu0 0
    %3441 = vmatprep.subr.bf16.mxu0 0
    %3442 = vmatpush1.bf16.msra.mxu0 0
    %3443 = vmatprep.subr.bf16.mxu0 0
    %3444 = vmatpush1.bf16.msra.mxu0 0
    %3445 = vmatprep.subr.bf16.mxu0 0
    %3446 = vmatpush1.bf16.msra.mxu0 0
    %3447 = vmatprep.subr.bf16.mxu0 0
    %3448 = vmatpush1.bf16.msra.mxu0 0
    %3449 = vmatprep.subr.bf16.mxu0 0
    %3450 = vmatpush1.bf16.msra.mxu0 0
    %3451 = vmatprep.subr.bf16.mxu0 0
    %3452 = vmatpush1.bf16.msra.mxu0 0
    %3453 = vmatprep.subr.bf16.mxu0 0
    %3454 = vmatpush1.bf16.msra.mxu0 0
    %3455 = vmatprep.mubr.bf16.mxu0 0
    %3456 = vmatmul.mubr.bf16.gmra.mrb[0].mxu0 %v3335
    %v3457 = vpop.f32.mrb[0].mxu0
    %v3458 = vadd.f32 %v480, %v3457
    %v3459 = vpop.f32.mrb[0].mxu0
    %v3460 = vadd.f32 %v482, %v3459
    %v3461 = vpop.f32.mrb[0].mxu0
    %v3462 = vadd.f32 %v484, %v3461
    %v3463 = vpop.f32.mrb[0].mxu0
    %v3464 = vadd.f32 %v486, %v3463
    %3465 = vdwg.mxu0
    %3466 = vmatprep.subr.bf16.mxu0 %v3311
    %3467 = vmatpush1.bf16.msra.mxu0 %v3310
    %3468 = vmatprep.subr.bf16.mxu0 0
    %3469 = vmatpush1.bf16.msra.mxu0 0
    %3470 = vmatprep.subr.bf16.mxu0 0
    %3471 = vmatpush1.bf16.msra.mxu0 0
    %3472 = vmatprep.subr.bf16.mxu0 0
    %3473 = vmatpush1.bf16.msra.mxu0 0
    %3474 = vmatprep.subr.bf16.mxu0 0
    %3475 = vmatpush1.bf16.msra.mxu0 0
    %3476 = vmatprep.subr.bf16.mxu0 0
    %3477 = vmatpush1.bf16.msra.mxu0 0
    %3478 = vmatprep.subr.bf16.mxu0 0
    %3479 = vmatpush1.bf16.msra.mxu0 0
    %3480 = vmatprep.subr.bf16.mxu0 0
    %3481 = vmatpush1.bf16.msra.mxu0 0
    %3482 = vmatprep.subr.bf16.mxu0 0
    %3483 = vmatpush1.bf16.msra.mxu0 0
    %3484 = vmatprep.subr.bf16.mxu0 0
    %3485 = vmatpush1.bf16.msra.mxu0 0
    %3486 = vmatprep.subr.bf16.mxu0 0
    %3487 = vmatpush1.bf16.msra.mxu0 0
    %3488 = vmatprep.subr.bf16.mxu0 0
    %3489 = vmatpush1.bf16.msra.mxu0 0
    %3490 = vmatprep.subr.bf16.mxu0 0
    %3491 = vmatpush1.bf16.msra.mxu0 0
    %3492 = vmatprep.subr.bf16.mxu0 0
    %3493 = vmatpush1.bf16.msra.mxu0 0
    %3494 = vmatprep.subr.bf16.mxu0 0
    %3495 = vmatpush1.bf16.msra.mxu0 0
    %3496 = vmatprep.subr.bf16.mxu0 0
    %3497 = vmatpush1.bf16.msra.mxu0 0
    %3498 = vmatprep.mubr.bf16.mxu0 0
    %3499 = vmatmul.mubr.bf16.gmra.mrb[0].mxu0 %v3335
    %v3500 = vpop.f32.mrb[0].mxu0
    %v3501 = vadd.f32 %v563, %v3500
    %v3502 = vpop.f32.mrb[0].mxu0
    %v3503 = vadd.f32 %v565, %v3502
    %v3504 = vpop.f32.mrb[0].mxu0
    %v3505 = vadd.f32 %v567, %v3504
    %v3506 = vpop.f32.mrb[0].mxu0
    %v3507 = vadd.f32 %v569, %v3506
    %3508 = vdwg.mxu0
    %3509 = vmatprep.subr.bf16.mxu0 %v3313
    %3510 = vmatpush1.bf16.msra.mxu0 %v3312
    %3511 = vmatprep.subr.bf16.mxu0 0
    %3512 = vmatpush1.bf16.msra.mxu0 0
    %3513 = vmatprep.subr.bf16.mxu0 0
    %3514 = vmatpush1.bf16.msra.mxu0 0
    %3515 = vmatprep.subr.bf16.mxu0 0
    %3516 = vmatpush1.bf16.msra.mxu0 0
    %3517 = vmatprep.subr.bf16.mxu0 0
    %3518 = vmatpush1.bf16.msra.mxu0 0
    %3519 = vmatprep.subr.bf16.mxu0 0
    %3520 = vmatpush1.bf16.msra.mxu0 0
    %3521 = vmatprep.subr.bf16.mxu0 0
    %3522 = vmatpush1.bf16.msra.mxu0 0
    %3523 = vmatprep.subr.bf16.mxu0 0
    %3524 = vmatpush1.bf16.msra.mxu0 0
    %3525 = vmatprep.subr.bf16.mxu0 0
    %3526 = vmatpush1.bf16.msra.mxu0 0
    %3527 = vmatprep.subr.bf16.mxu0 0
    %3528 = vmatpush1.bf16.msra.mxu0 0
    %3529 = vmatprep.subr.bf16.mxu0 0
    %3530 = vmatpush1.bf16.msra.mxu0 0
    %3531 = vmatprep.subr.bf16.mxu0 0
    %3532 = vmatpush1.bf16.msra.mxu0 0
    %3533 = vmatprep.subr.bf16.mxu0 0
    %3534 = vmatpush1.bf16.msra.mxu0 0
    %3535 = vmatprep.subr.bf16.mxu0 0
    %3536 = vmatpush1.bf16.msra.mxu0 0
    %3537 = vmatprep.subr.bf16.mxu0 0
    %3538 = vmatpush1.bf16.msra.mxu0 0
    %3539 = vmatprep.subr.bf16.mxu0 0
    %3540 = vmatpush1.bf16.msra.mxu0 0
    %3541 = vmatprep.mubr.bf16.mxu0 0
    %3542 = vmatmul.mubr.bf16.gmra.mrb[0].mxu0 %v3335
    %v3543 = vpop.f32.mrb[0].mxu0
    %v3544 = vadd.f32 %v646, %v3543
    %v3545 = vpop.f32.mrb[0].mxu0
    %v3546 = vadd.f32 %v648, %v3545
    %v3547 = vpop.f32.mrb[0].mxu0
    %v3548 = vadd.f32 %v650, %v3547
    %v3549 = vpop.f32.mrb[0].mxu0
    %v3550 = vadd.f32 %v652, %v3549
    %3551 = vdwg.mxu0
    %3552 = vmatprep.subr.bf16.mxu0 %v3315
    %3553 = vmatpush1.bf16.msra.mxu0 %v3314
    %3554 = vmatprep.subr.bf16.mxu0 0
    %3555 = vmatpush1.bf16.msra.mxu0 0
    %3556 = vmatprep.subr.bf16.mxu0 0
    %3557 = vmatpush1.bf16.msra.mxu0 0
    %3558 = vmatprep.subr.bf16.mxu0 0
    %3559 = vmatpush1.bf16.msra.mxu0 0
    %3560 = vmatprep.subr.bf16.mxu0 0
    %3561 = vmatpush1.bf16.msra.mxu0 0
    %3562 = vmatprep.subr.bf16.mxu0 0
    %3563 = vmatpush1.bf16.msra.mxu0 0
    %3564 = vmatprep.subr.bf16.mxu0 0
    %3565 = vmatpush1.bf16.msra.mxu0 0
    %3566 = vmatprep.subr.bf16.mxu0 0
    %3567 = vmatpush1.bf16.msra.mxu0 0
    %3568 = vmatprep.subr.bf16.mxu0 0
    %3569 = vmatpush1.bf16.msra.mxu0 0
    %3570 = vmatprep.subr.bf16.mxu0 0
    %3571 = vmatpush1.bf16.msra.mxu0 0
    %3572 = vmatprep.subr.bf16.mxu0 0
    %3573 = vmatpush1.bf16.msra.mxu0 0
    %3574 = vmatprep.subr.bf16.mxu0 0
    %3575 = vmatpush1.bf16.msra.mxu0 0
    %3576 = vmatprep.subr.bf16.mxu0 0
    %3577 = vmatpush1.bf16.msra.mxu0 0
    %3578 = vmatprep.subr.bf16.mxu0 0
    %3579 = vmatpush1.bf16.msra.mxu0 0
    %3580 = vmatprep.subr.bf16.mxu0 0
    %3581 = vmatpush1.bf16.msra.mxu0 0
    %3582 = vmatprep.subr.bf16.mxu0 0
    %3583 = vmatpush1.bf16.msra.mxu0 0
    %3584 = vmatprep.mubr.bf16.mxu0 0
    %3585 = vmatmul.mubr.bf16.gmra.mrb[0].mxu0 %v3335
    %v3586 = vpop.f32.mrb[0].mxu0
    %v3587 = vadd.f32 %v729, %v3586
    %v3588 = vpop.f32.mrb[0].mxu0
    %v3589 = vadd.f32 %v731, %v3588
    %v3590 = vpop.f32.mrb[0].mxu0
    %v3591 = vadd.f32 %v733, %v3590
    %v3592 = vpop.f32.mrb[0].mxu0
    %v3593 = vadd.f32 %v735, %v3592
    %3594 = vdwg.mxu0
    %3595 = vmatprep.subr.bf16.mxu0 %v3317
    %3596 = vmatpush1.bf16.msra.mxu0 %v3316
    %3597 = vmatprep.subr.bf16.mxu0 0
    %3598 = vmatpush1.bf16.msra.mxu0 0
    %3599 = vmatprep.subr.bf16.mxu0 0
    %3600 = vmatpush1.bf16.msra.mxu0 0
    %3601 = vmatprep.subr.bf16.mxu0 0
    %3602 = vmatpush1.bf16.msra.mxu0 0
    %3603 = vmatprep.subr.bf16.mxu0 0
    %3604 = vmatpush1.bf16.msra.mxu0 0
    %3605 = vmatprep.subr.bf16.mxu0 0
    %3606 = vmatpush1.bf16.msra.mxu0 0
    %3607 = vmatprep.subr.bf16.mxu0 0
    %3608 = vmatpush1.bf16.msra.mxu0 0
    %3609 = vmatprep.subr.bf16.mxu0 0
    %3610 = vmatpush1.bf16.msra.mxu0 0
    %3611 = vmatprep.subr.bf16.mxu0 0
    %3612 = vmatpush1.bf16.msra.mxu0 0
    %3613 = vmatprep.subr.bf16.mxu0 0
    %3614 = vmatpush1.bf16.msra.mxu0 0
    %3615 = vmatprep.subr.bf16.mxu0 0
    %3616 = vmatpush1.bf16.msra.mxu0 0
    %3617 = vmatprep.subr.bf16.mxu0 0
    %3618 = vmatpush1.bf16.msra.mxu0 0
    %3619 = vmatprep.subr.bf16.mxu0 0
    %3620 = vmatpush1.bf16.msra.mxu0 0
    %3621 = vmatprep.subr.bf16.mxu0 0
    %3622 = vmatpush1.bf16.msra.mxu0 0
    %3623 = vmatprep.subr.bf16.mxu0 0
    %3624 = vmatpush1.bf16.msra.mxu0 0
    %3625 = vmatprep.subr.bf16.mxu0 0
    %3626 = vmatpush1.bf16.msra.mxu0 0
    %3627 = vmatprep.mubr.bf16.mxu0 0
    %3628 = vmatmul.mubr.bf16.gmra.mrb[0].mxu0 %v3335
    %v3629 = vpop.f32.mrb[0].mxu0
    %v3630 = vadd.f32 %v812, %v3629
    %v3631 = vpop.f32.mrb[0].mxu0
    %v3632 = vadd.f32 %v814, %v3631
    %v3633 = vpop.f32.mrb[0].mxu0
    %v3634 = vadd.f32 %v816, %v3633
    %v3635 = vpop.f32.mrb[0].mxu0
    %v3636 = vadd.f32 %v818, %v3635
    %3637 = vdwg.mxu0
    %3638 = vmatprep.subr.bf16.mxu0 %v3319
    %3639 = vmatpush1.bf16.msra.mxu0 %v3318
    %3640 = vmatprep.subr.bf16.mxu0 0
    %3641 = vmatpush1.bf16.msra.mxu0 0
    %3642 = vmatprep.subr.bf16.mxu0 0
    %3643 = vmatpush1.bf16.msra.mxu0 0
    %3644 = vmatprep.subr.bf16.mxu0 0
    %3645 = vmatpush1.bf16.msra.mxu0 0
    %3646 = vmatprep.subr.bf16.mxu0 0
    %3647 = vmatpush1.bf16.msra.mxu0 0
    %3648 = vmatprep.subr.bf16.mxu0 0
    %3649 = vmatpush1.bf16.msra.mxu0 0
    %3650 = vmatprep.subr.bf16.mxu0 0
    %3651 = vmatpush1.bf16.msra.mxu0 0
    %3652 = vmatprep.subr.bf16.mxu0 0
    %3653 = vmatpush1.bf16.msra.mxu0 0
    %3654 = vmatprep.subr.bf16.mxu0 0
    %3655 = vmatpush1.bf16.msra.mxu0 0
    %3656 = vmatprep.subr.bf16.mxu0 0
    %3657 = vmatpush1.bf16.msra.mxu0 0
    %3658 = vmatprep.subr.bf16.mxu0 0
    %3659 = vmatpush1.bf16.msra.mxu0 0
    %3660 = vmatprep.subr.bf16.mxu0 0
    %3661 = vmatpush1.bf16.msra.mxu0 0
    %3662 = vmatprep.subr.bf16.mxu0 0
    %3663 = vmatpush1.bf16.msra.mxu0 0
    %3664 = vmatprep.subr.bf16.mxu0 0
    %3665 = vmatpush1.bf16.msra.mxu0 0
    %3666 = vmatprep.subr.bf16.mxu0 0
    %3667 = vmatpush1.bf16.msra.mxu0 0
    %3668 = vmatprep.subr.bf16.mxu0 0
    %3669 = vmatpush1.bf16.msra.mxu0 0
    %3670 = vmatprep.mubr.bf16.mxu0 0
    %3671 = vmatmul.mubr.bf16.gmra.mrb[0].mxu0 %v3335
    %v3672 = vpop.f32.mrb[0].mxu0
    %v3673 = vadd.f32 %v895, %v3672
    %v3674 = vpop.f32.mrb[0].mxu0
    %v3675 = vadd.f32 %v897, %v3674
    %v3676 = vpop.f32.mrb[0].mxu0
    %v3677 = vadd.f32 %v899, %v3676
    %v3678 = vpop.f32.mrb[0].mxu0
    %v3679 = vadd.f32 %v901, %v3678
    %3680 = vdwg.mxu0
    %3681 = vmatprep.subr.bf16.mxu0 %v3321
    %3682 = vmatpush1.bf16.msra.mxu0 %v3320
    %3683 = vmatprep.subr.bf16.mxu0 0
    %3684 = vmatpush1.bf16.msra.mxu0 0
    %3685 = vmatprep.subr.bf16.mxu0 0
    %3686 = vmatpush1.bf16.msra.mxu0 0
    %3687 = vmatprep.subr.bf16.mxu0 0
    %3688 = vmatpush1.bf16.msra.mxu0 0
    %3689 = vmatprep.subr.bf16.mxu0 0
    %3690 = vmatpush1.bf16.msra.mxu0 0
    %3691 = vmatprep.subr.bf16.mxu0 0
    %3692 = vmatpush1.bf16.msra.mxu0 0
    %3693 = vmatprep.subr.bf16.mxu0 0
    %3694 = vmatpush1.bf16.msra.mxu0 0
    %3695 = vmatprep.subr.bf16.mxu0 0
    %3696 = vmatpush1.bf16.msra.mxu0 0
    %3697 = vmatprep.subr.bf16.mxu0 0
    %3698 = vmatpush1.bf16.msra.mxu0 0
    %3699 = vmatprep.subr.bf16.mxu0 0
    %3700 = vmatpush1.bf16.msra.mxu0 0
    %3701 = vmatprep.subr.bf16.mxu0 0
    %3702 = vmatpush1.bf16.msra.mxu0 0
    %3703 = vmatprep.subr.bf16.mxu0 0
    %3704 = vmatpush1.bf16.msra.mxu0 0
    %3705 = vmatprep.subr.bf16.mxu0 0
    %3706 = vmatpush1.bf16.msra.mxu0 0
    %3707 = vmatprep.subr.bf16.mxu0 0
    %3708 = vmatpush1.bf16.msra.mxu0 0
    %3709 = vmatprep.subr.bf16.mxu0 0
    %3710 = vmatpush1.bf16.msra.mxu0 0
    %3711 = vmatprep.subr.bf16.mxu0 0
    %3712 = vmatpush1.bf16.msra.mxu0 0
    %3713 = vmatprep.mubr.bf16.mxu0 0
    %3714 = vmatmul.mubr.bf16.gmra.mrb[0].mxu0 %v3335
    %v3715 = vpop.f32.mrb[0].mxu0
    %v3716 = vadd.f32 %v978, %v3715
    %v3717 = vpop.f32.mrb[0].mxu0
    %v3718 = vadd.f32 %v980, %v3717
    %v3719 = vpop.f32.mrb[0].mxu0
    %v3720 = vadd.f32 %v982, %v3719
    %v3721 = vpop.f32.mrb[0].mxu0
    %v3722 = vadd.f32 %v984, %v3721
    %3723 = vdwg.mxu0
    %3724 = vmatprep.subr.bf16.mxu0 %v3323
    %3725 = vmatpush1.bf16.msra.mxu0 %v3322
    %3726 = vmatprep.subr.bf16.mxu0 0
    %3727 = vmatpush1.bf16.msra.mxu0 0
    %3728 = vmatprep.subr.bf16.mxu0 0
    %3729 = vmatpush1.bf16.msra.mxu0 0
    %3730 = vmatprep.subr.bf16.mxu0 0
    %3731 = vmatpush1.bf16.msra.mxu0 0
    %3732 = vmatprep.subr.bf16.mxu0 0
    %3733 = vmatpush1.bf16.msra.mxu0 0
    %3734 = vmatprep.subr.bf16.mxu0 0
    %3735 = vmatpush1.bf16.msra.mxu0 0
    %3736 = vmatprep.subr.bf16.mxu0 0
    %3737 = vmatpush1.bf16.msra.mxu0 0
    %3738 = vmatprep.subr.bf16.mxu0 0
    %3739 = vmatpush1.bf16.msra.mxu0 0
    %3740 = vmatprep.subr.bf16.mxu0 0
    %3741 = vmatpush1.bf16.msra.mxu0 0
    %3742 = vmatprep.subr.bf16.mxu0 0
    %3743 = vmatpush1.bf16.msra.mxu0 0
    %3744 = vmatprep.subr.bf16.mxu0 0
    %3745 = vmatpush1.bf16.msra.mxu0 0
    %3746 = vmatprep.subr.bf16.mxu0 0
    %3747 = vmatpush1.bf16.msra.mxu0 0
    %3748 = vmatprep.subr.bf16.mxu0 0
    %3749 = vmatpush1.bf16.msra.mxu0 0
    %3750 = vmatprep.subr.bf16.mxu0 0
    %3751 = vmatpush1.bf16.msra.mxu0 0
    %3752 = vmatprep.subr.bf16.mxu0 0
    %3753 = vmatpush1.bf16.msra.mxu0 0
    %3754 = vmatprep.subr.bf16.mxu0 0
    %3755 = vmatpush1.bf16.msra.mxu0 0
    %3756 = vmatprep.mubr.bf16.mxu0 0
    %3757 = vmatmul.mubr.bf16.gmra.mrb[0].mxu0 %v3335
    %v3758 = vpop.f32.mrb[0].mxu0
    %v3759 = vadd.f32 %v1061, %v3758
    %v3760 = vpop.f32.mrb[0].mxu0
    %v3761 = vadd.f32 %v1063, %v3760
    %v3762 = vpop.f32.mrb[0].mxu0
    %v3763 = vadd.f32 %v1065, %v3762
    %v3764 = vpop.f32.mrb[0].mxu0
    %v3765 = vadd.f32 %v1067, %v3764
    %3766 = vdwg.mxu0
    %3767 = vmatprep.subr.bf16.mxu0 %v3325
    %3768 = vmatpush1.bf16.msra.mxu0 %v3324
    %3769 = vmatprep.subr.bf16.mxu0 0
    %3770 = vmatpush1.bf16.msra.mxu0 0
    %3771 = vmatprep.subr.bf16.mxu0 0
    %3772 = vmatpush1.bf16.msra.mxu0 0
    %3773 = vmatprep.subr.bf16.mxu0 0
    %3774 = vmatpush1.bf16.msra.mxu0 0
    %3775 = vmatprep.subr.bf16.mxu0 0
    %3776 = vmatpush1.bf16.msra.mxu0 0
    %3777 = vmatprep.subr.bf16.mxu0 0
    %3778 = vmatpush1.bf16.msra.mxu0 0
    %3779 = vmatprep.subr.bf16.mxu0 0
    %3780 = vmatpush1.bf16.msra.mxu0 0
    %3781 = vmatprep.subr.bf16.mxu0 0
    %3782 = vmatpush1.bf16.msra.mxu0 0
    %3783 = vmatprep.subr.bf16.mxu0 0
    %3784 = vmatpush1.bf16.msra.mxu0 0
    %3785 = vmatprep.subr.bf16.mxu0 0
    %3786 = vmatpush1.bf16.msra.mxu0 0
    %3787 = vmatprep.subr.bf16.mxu0 0
    %3788 = vmatpush1.bf16.msra.mxu0 0
    %3789 = vmatprep.subr.bf16.mxu0 0
    %3790 = vmatpush1.bf16.msra.mxu0 0
    %3791 = vmatprep.subr.bf16.mxu0 0
    %3792 = vmatpush1.bf16.msra.mxu0 0
    %3793 = vmatprep.subr.bf16.mxu0 0
    %3794 = vmatpush1.bf16.msra.mxu0 0
    %3795 = vmatprep.subr.bf16.mxu0 0
    %3796 = vmatpush1.bf16.msra.mxu0 0
    %3797 = vmatprep.subr.bf16.mxu0 0
    %3798 = vmatpush1.bf16.msra.mxu0 0
    %3799 = vmatprep.mubr.bf16.mxu0 0
    %3800 = vmatmul.mubr.bf16.gmra.mrb[0].mxu0 %v3335
    %v3801 = vpop.f32.mrb[0].mxu0
    %v3802 = vadd.f32 %v1144, %v3801
    %v3803 = vpop.f32.mrb[0].mxu0
    %v3804 = vadd.f32 %v1146, %v3803
    %v3805 = vpop.f32.mrb[0].mxu0
    %v3806 = vadd.f32 %v1148, %v3805
    %v3807 = vpop.f32.mrb[0].mxu0
    %v3808 = vadd.f32 %v1150, %v3807
    %3809 = vdwg.mxu0
    %3810 = vmatprep.subr.bf16.mxu0 %v3327
    %3811 = vmatpush1.bf16.msra.mxu0 %v3326
    %3812 = vmatprep.subr.bf16.mxu0 0
    %3813 = vmatpush1.bf16.msra.mxu0 0
    %3814 = vmatprep.subr.bf16.mxu0 0
    %3815 = vmatpush1.bf16.msra.mxu0 0
    %3816 = vmatprep.subr.bf16.mxu0 0
    %3817 = vmatpush1.bf16.msra.mxu0 0
    %3818 = vmatprep.subr.bf16.mxu0 0
    %3819 = vmatpush1.bf16.msra.mxu0 0
    %3820 = vmatprep.subr.bf16.mxu0 0
    %3821 = vmatpush1.bf16.msra.mxu0 0
    %3822 = vmatprep.subr.bf16.mxu0 0
    %3823 = vmatpush1.bf16.msra.mxu0 0
    %3824 = vmatprep.subr.bf16.mxu0 0
    %3825 = vmatpush1.bf16.msra.mxu0 0
    %3826 = vmatprep.subr.bf16.mxu0 0
    %3827 = vmatpush1.bf16.msra.mxu0 0
    %3828 = vmatprep.subr.bf16.mxu0 0
    %3829 = vmatpush1.bf16.msra.mxu0 0
    %3830 = vmatprep.subr.bf16.mxu0 0
    %3831 = vmatpush1.bf16.msra.mxu0 0
    %3832 = vmatprep.subr.bf16.mxu0 0
    %3833 = vmatpush1.bf16.msra.mxu0 0
    %3834 = vmatprep.subr.bf16.mxu0 0
    %3835 = vmatpush1.bf16.msra.mxu0 0
    %3836 = vmatprep.subr.bf16.mxu0 0
    %3837 = vmatpush1.bf16.msra.mxu0 0
    %3838 = vmatprep.subr.bf16.mxu0 0
    %3839 = vmatpush1.bf16.msra.mxu0 0
    %3840 = vmatprep.subr.bf16.mxu0 0
    %3841 = vmatpush1.bf16.msra.mxu0 0
    %3842 = vmatprep.mubr.bf16.mxu0 0
    %3843 = vmatmul.mubr.bf16.gmra.mrb[0].mxu0 %v3335
    %v3844 = vpop.f32.mrb[0].mxu0
    %v3845 = vadd.f32 %v1227, %v3844
    %v3846 = vpop.f32.mrb[0].mxu0
    %v3847 = vadd.f32 %v1229, %v3846
    %v3848 = vpop.f32.mrb[0].mxu0
    %v3849 = vadd.f32 %v1231, %v3848
    %v3850 = vpop.f32.mrb[0].mxu0
    %v3851 = vadd.f32 %v1233, %v3850
    %3852 = vdwg.mxu0
    %v3853 = vld [vmem:[%s5] sm:$0xff]
    %v3854 = vld [vmem:[%s5 + $0x8] sm:$0xff]
    %3856 = vset.pattern.permute.xlu0 0
    %3857 = vperm.xlu0 %3856, %v3853
    %v3858 = vpop.permute.xlu0 %3857
    %3861 = vset.pattern.permute.xlu0 0
    %3862 = vperm.xlu0 %3861, %v3854
    %v3863 = vpop.permute.xlu0 %3862
    %v3865 = vadd.f32 %v3372, %v3858
    %v3866 = vadd.f32 %v3374, %v3858
    %v3867 = vadd.f32 %v3415, %v3858
    %v3868 = vadd.f32 %v3417, %v3858
    %v3869 = vadd.f32 %v3458, %v3858
    %v3870 = vadd.f32 %v3460, %v3858
    %v3871 = vadd.f32 %v3501, %v3858
    %v3872 = vadd.f32 %v3503, %v3858
    %v3873 = vadd.f32 %v3544, %v3858
    %v3874 = vadd.f32 %v3546, %v3858
    %v3875 = vadd.f32 %v3587, %v3858
    %v3876 = vadd.f32 %v3589, %v3858
    %v3877 = vadd.f32 %v3630, %v3858
    %v3878 = vadd.f32 %v3632, %v3858
    %v3879 = vadd.f32 %v3673, %v3858
    %v3880 = vadd.f32 %v3675, %v3858
    %v3881 = vadd.f32 %v3716, %v3858
    %v3882 = vadd.f32 %v3718, %v3858
    %v3883 = vadd.f32 %v3759, %v3858
    %v3884 = vadd.f32 %v3761, %v3858
    %v3885 = vadd.f32 %v3802, %v3858
    %v3886 = vadd.f32 %v3804, %v3858
    %v3887 = vadd.f32 %v3845, %v3858
    %v3888 = vadd.f32 %v3847, %v3858
    %v3889 = vadd.f32 %v3376, %v3863
    %v3890 = vadd.f32 %v3378, %v3863
    %v3891 = vadd.f32 %v3419, %v3863
    %v3892 = vadd.f32 %v3421, %v3863
    %v3893 = vadd.f32 %v3462, %v3863
    %v3894 = vadd.f32 %v3464, %v3863
    %v3895 = vadd.f32 %v3505, %v3863
    %v3896 = vadd.f32 %v3507, %v3863
    %v3897 = vadd.f32 %v3548, %v3863
    %v3898 = vadd.f32 %v3550, %v3863
    %v3899 = vadd.f32 %v3591, %v3863
    %v3900 = vadd.f32 %v3593, %v3863
    %v3901 = vadd.f32 %v3634, %v3863
    %v3902 = vadd.f32 %v3636, %v3863
    %v3903 = vadd.f32 %v3677, %v3863
    %v3904 = vadd.f32 %v3679, %v3863
    %v3905 = vadd.f32 %v3720, %v3863
    %v3906 = vadd.f32 %v3722, %v3863
    %v3907 = vadd.f32 %v3763, %v3863
    %v3908 = vadd.f32 %v3765, %v3863
    %v3909 = vadd.f32 %v3806, %v3863
    %v3910 = vadd.f32 %v3808, %v3863
    %v3911 = vadd.f32 %v3849, %v3863
    %v3912 = vadd.f32 %v3851, %v3863
    %v3913 = vmax.f32 %v3865, 0.0
    %v3914 = vmax.f32 %v3866, 0.0
    %v3915 = vmax.f32 %v3867, 0.0
    %v3916 = vmax.f32 %v3868, 0.0
    %v3917 = vmax.f32 %v3869, 0.0
    %v3918 = vmax.f32 %v3870, 0.0
    %v3919 = vmax.f32 %v3871, 0.0
    %v3920 = vmax.f32 %v3872, 0.0
    %v3921 = vmax.f32 %v3873, 0.0
    %v3922 = vmax.f32 %v3874, 0.0
    %v3923 = vmax.f32 %v3875, 0.0
    %v3924 = vmax.f32 %v3876, 0.0
    %v3925 = vmax.f32 %v3877, 0.0
    %v3926 = vmax.f32 %v3878, 0.0
    %v3927 = vmax.f32 %v3879, 0.0
    %v3928 = vmax.f32 %v3880, 0.0
    %v3929 = vmax.f32 %v3881, 0.0
    %v3930 = vmax.f32 %v3882, 0.0
    %v3931 = vmax.f32 %v3883, 0.0
    %v3932 = vmax.f32 %v3884, 0.0
    %v3933 = vmax.f32 %v3885, 0.0
    %v3934 = vmax.f32 %v3886, 0.0
    %v3935 = vmax.f32 %v3887, 0.0
    %v3936 = vmax.f32 %v3888, 0.0
    %v3937 = vmax.f32 %v3889, 0.0
    %v3938 = vmax.f32 %v3890, 0.0
    %v3939 = vmax.f32 %v3891, 0.0
    %v3940 = vmax.f32 %v3892, 0.0
    %v3941 = vmax.f32 %v3893, 0.0
    %v3942 = vmax.f32 %v3894, 0.0
    %v3943 = vmax.f32 %v3895, 0.0
    %v3944 = vmax.f32 %v3896, 0.0
    %v3945 = vmax.f32 %v3897, 0.0
    %v3946 = vmax.f32 %v3898, 0.0
    %v3947 = vmax.f32 %v3899, 0.0
    %v3948 = vmax.f32 %v3900, 0.0
    %v3949 = vmax.f32 %v3901, 0.0
    %v3950 = vmax.f32 %v3902, 0.0
    %v3951 = vmax.f32 %v3903, 0.0
    %v3952 = vmax.f32 %v3904, 0.0
    %v3953 = vmax.f32 %v3905, 0.0
    %v3954 = vmax.f32 %v3906, 0.0
    %v3955 = vmax.f32 %v3907, 0.0
    %v3956 = vmax.f32 %v3908, 0.0
    %v3957 = vmax.f32 %v3909, 0.0
    %v3958 = vmax.f32 %v3910, 0.0
    %v3959 = vmax.f32 %v3911, 0.0
    %v3960 = vmax.f32 %v3912, 0.0
    %v3961 = vld [vmem:[%s6] sm:$0x3]
    %v3962 = vpack.c.bf16 %v3937, %v3913
    %v3963 = vpack.c.bf16 %v3938, %v3914
    %v3964 = vpack.c.bf16 %v3939, %v3915
    %v3965 = vpack.c.bf16 %v3940, %v3916
    %v3966 = vpack.c.bf16 %v3941, %v3917
    %v3967 = vpack.c.bf16 %v3942, %v3918
    %v3968 = vpack.c.bf16 %v3943, %v3919
    %v3969 = vpack.c.bf16 %v3944, %v3920
    %v3970 = vpack.c.bf16 %v3945, %v3921
    %v3971 = vpack.c.bf16 %v3946, %v3922
    %v3972 = vpack.c.bf16 %v3947, %v3923
    %v3973 = vpack.c.bf16 %v3948, %v3924
    %v3974 = vpack.c.bf16 %v3949, %v3925
    %v3975 = vpack.c.bf16 %v3950, %v3926
    %v3976 = vpack.c.bf16 %v3951, %v3927
    %v3977 = vpack.c.bf16 %v3952, %v3928
    %v3978 = vpack.c.bf16 %v3953, %v3929
    %v3979 = vpack.c.bf16 %v3954, %v3930
    %v3980 = vpack.c.bf16 %v3955, %v3931
    %v3981 = vpack.c.bf16 %v3956, %v3932
    %v3982 = vpack.c.bf16 %v3957, %v3933
    %v3983 = vpack.c.bf16 %v3958, %v3934
    %v3984 = vpack.c.bf16 %v3959, %v3935
    %v3985 = vpack.c.bf16 %v3960, %v3936
    %v3986 = vld [vmem:[%s7] sm:$0x7]
    %3988 = vset.pattern.permute.xlu0 0
    %3989 = vperm.xlu0 %3988, %v3986
    %v3990 = vpop.permute.xlu0 %3989
    %v3993 = vsel %vm3333, %v3961, 0
    %3995 = vmatprep.subr.bf16.mxu0 %v3963
    %3996 = vmatpush1.bf16.msra.mxu0 %v3962
    %3997 = vmatprep.subr.bf16.mxu0 0
    %3998 = vmatpush1.bf16.msra.mxu0 0
    %3999 = vmatprep.subr.bf16.mxu0 0
    %4000 = vmatpush1.bf16.msra.mxu0 0
    %4001 = vmatprep.subr.bf16.mxu0 0
    %4002 = vmatpush1.bf16.msra.mxu0 0
    %4003 = vmatprep.subr.bf16.mxu0 0
    %4004 = vmatpush1.bf16.msra.mxu0 0
    %4005 = vmatprep.subr.bf16.mxu0 0
    %4006 = vmatpush1.bf16.msra.mxu0 0
    %4007 = vmatprep.subr.bf16.mxu0 0
    %4008 = vmatpush1.bf16.msra.mxu0 0
    %4009 = vmatprep.subr.bf16.mxu0 0
    %4010 = vmatpush1.bf16.msra.mxu0 0
    %4011 = vmatprep.subr.bf16.mxu0 0
    %4012 = vmatpush1.bf16.msra.mxu0 0
    %4013 = vmatprep.subr.bf16.mxu0 0
    %4014 = vmatpush1.bf16.msra.mxu0 0
    %4015 = vmatprep.subr.bf16.mxu0 0
    %4016 = vmatpush1.bf16.msra.mxu0 0
    %4017 = vmatprep.subr.bf16.mxu0 0
    %4018 = vmatpush1.bf16.msra.mxu0 0
    %4019 = vmatprep.subr.bf16.mxu0 0
    %4020 = vmatpush1.bf16.msra.mxu0 0
    %4021 = vmatprep.subr.bf16.mxu0 0
    %4022 = vmatpush1.bf16.msra.mxu0 0
    %4023 = vmatprep.subr.bf16.mxu0 0
    %4024 = vmatpush1.bf16.msra.mxu0 0
    %4025 = vmatprep.subr.bf16.mxu0 0
    %4026 = vmatpush1.bf16.msra.mxu0 0
    %4027 = vmatprep.mubr.bf16.mxu0 0
    %4028 = vmatmul.mubr.bf16.gmra.mrb[0].mxu0 %v3993
    %v4029 = vpop.f32.mrb[0].mxu0
    %v4030 = vadd.f32 %v3990, %v4029
    %v4031 = vpop.f32.mrb[0].mxu0
    %v4032 = vadd.f32 %v3990, %v4031
    %v4033 = vpop.f32.mrb[0].mxu0
    %v4034 = vpop.f32.mrb[0].mxu0
    %4035 = vdwg.mxu0
    %4036 = vmatprep.subr.bf16.mxu0 %v3965
    %4037 = vmatpush1.bf16.msra.mxu0 %v3964
    %4038 = vmatprep.subr.bf16.mxu0 0
    %4039 = vmatpush1.bf16.msra.mxu0 0
    %4040 = vmatprep.subr.bf16.mxu0 0
    %4041 = vmatpush1.bf16.msra.mxu0 0
    %4042 = vmatprep.subr.bf16.mxu0 0
    %4043 = vmatpush1.bf16.msra.mxu0 0
    %4044 = vmatprep.subr.bf16.mxu0 0
    %4045 = vmatpush1.bf16.msra.mxu0 0
    %4046 = vmatprep.subr.bf16.mxu0 0
    %4047 = vmatpush1.bf16.msra.mxu0 0
    %4048 = vmatprep.subr.bf16.mxu0 0
    %4049 = vmatpush1.bf16.msra.mxu0 0
    %4050 = vmatprep.subr.bf16.mxu0 0
    %4051 = vmatpush1.bf16.msra.mxu0 0
    %4052 = vmatprep.subr.bf16.mxu0 0
    %4053 = vmatpush1.bf16.msra.mxu0 0
    %4054 = vmatprep.subr.bf16.mxu0 0
    %4055 = vmatpush1.bf16.msra.mxu0 0
    %4056 = vmatprep.subr.bf16.mxu0 0
    %4057 = vmatpush1.bf16.msra.mxu0 0
    %4058 = vmatprep.subr.bf16.mxu0 0
    %4059 = vmatpush1.bf16.msra.mxu0 0
    %4060 = vmatprep.subr.bf16.mxu0 0
    %4061 = vmatpush1.bf16.msra.mxu0 0
    %4062 = vmatprep.subr.bf16.mxu0 0
    %4063 = vmatpush1.bf16.msra.mxu0 0
    %4064 = vmatprep.subr.bf16.mxu0 0
    %4065 = vmatpush1.bf16.msra.mxu0 0
    %4066 = vmatprep.subr.bf16.mxu0 0
    %4067 = vmatpush1.bf16.msra.mxu0 0
    %4068 = vmatprep.mubr.bf16.mxu0 0
    %4069 = vmatmul.mubr.bf16.gmra.mrb[0].mxu0 %v3993
    %v4070 = vpop.f32.mrb[0].mxu0
    %v4071 = vadd.f32 %v3990, %v4070
    %v4072 = vpop.f32.mrb[0].mxu0
    %v4073 = vadd.f32 %v3990, %v4072
    %v4074 = vpop.f32.mrb[0].mxu0
    %v4075 = vpop.f32.mrb[0].mxu0
    %4076 = vdwg.mxu0
    %4077 = vmatprep.subr.bf16.mxu0 %v3967
    %4078 = vmatpush1.bf16.msra.mxu0 %v3966
    %4079 = vmatprep.subr.bf16.mxu0 0
    %4080 = vmatpush1.bf16.msra.mxu0 0
    %4081 = vmatprep.subr.bf16.mxu0 0
    %4082 = vmatpush1.bf16.msra.mxu0 0
    %4083 = vmatprep.subr.bf16.mxu0 0
    %4084 = vmatpush1.bf16.msra.mxu0 0
    %4085 = vmatprep.subr.bf16.mxu0 0
    %4086 = vmatpush1.bf16.msra.mxu0 0
    %4087 = vmatprep.subr.bf16.mxu0 0
    %4088 = vmatpush1.bf16.msra.mxu0 0
    %4089 = vmatprep.subr.bf16.mxu0 0
    %4090 = vmatpush1.bf16.msra.mxu0 0
    %4091 = vmatprep.subr.bf16.mxu0 0
    %4092 = vmatpush1.bf16.msra.mxu0 0
    %4093 = vmatprep.subr.bf16.mxu0 0
    %4094 = vmatpush1.bf16.msra.mxu0 0
    %4095 = vmatprep.subr.bf16.mxu0 0
    %4096 = vmatpush1.bf16.msra.mxu0 0
    %4097 = vmatprep.subr.bf16.mxu0 0
    %4098 = vmatpush1.bf16.msra.mxu0 0
    %4099 = vmatprep.subr.bf16.mxu0 0
    %4100 = vmatpush1.bf16.msra.mxu0 0
    %4101 = vmatprep.subr.bf16.mxu0 0
    %4102 = vmatpush1.bf16.msra.mxu0 0
    %4103 = vmatprep.subr.bf16.mxu0 0
    %4104 = vmatpush1.bf16.msra.mxu0 0
    %4105 = vmatprep.subr.bf16.mxu0 0
    %4106 = vmatpush1.bf16.msra.mxu0 0
    %4107 = vmatprep.subr.bf16.mxu0 0
    %4108 = vmatpush1.bf16.msra.mxu0 0
    %4109 = vmatprep.mubr.bf16.mxu0 0
    %4110 = vmatmul.mubr.bf16.gmra.mrb[0].mxu0 %v3993
    %v4111 = vpop.f32.mrb[0].mxu0
    %v4112 = vadd.f32 %v3990, %v4111
    %v4113 = vpop.f32.mrb[0].mxu0
    %v4114 = vadd.f32 %v3990, %v4113
    %v4115 = vpop.f32.mrb[0].mxu0
    %v4116 = vpop.f32.mrb[0].mxu0
    %4117 = vdwg.mxu0
    %4118 = vmatprep.subr.bf16.mxu0 %v3969
    %4119 = vmatpush1.bf16.msra.mxu0 %v3968
    %4120 = vmatprep.subr.bf16.mxu0 0
    %4121 = vmatpush1.bf16.msra.mxu0 0
    %4122 = vmatprep.subr.bf16.mxu0 0
    %4123 = vmatpush1.bf16.msra.mxu0 0
    %4124 = vmatprep.subr.bf16.mxu0 0
    %4125 = vmatpush1.bf16.msra.mxu0 0
    %4126 = vmatprep.subr.bf16.mxu0 0
    %4127 = vmatpush1.bf16.msra.mxu0 0
    %4128 = vmatprep.subr.bf16.mxu0 0
    %4129 = vmatpush1.bf16.msra.mxu0 0
    %4130 = vmatprep.subr.bf16.mxu0 0
    %4131 = vmatpush1.bf16.msra.mxu0 0
    %4132 = vmatprep.subr.bf16.mxu0 0
    %4133 = vmatpush1.bf16.msra.mxu0 0
    %4134 = vmatprep.subr.bf16.mxu0 0
    %4135 = vmatpush1.bf16.msra.mxu0 0
    %4136 = vmatprep.subr.bf16.mxu0 0
    %4137 = vmatpush1.bf16.msra.mxu0 0
    %4138 = vmatprep.subr.bf16.mxu0 0
    %4139 = vmatpush1.bf16.msra.mxu0 0
    %4140 = vmatprep.subr.bf16.mxu0 0
    %4141 = vmatpush1.bf16.msra.mxu0 0
    %4142 = vmatprep.subr.bf16.mxu0 0
    %4143 = vmatpush1.bf16.msra.mxu0 0
    %4144 = vmatprep.subr.bf16.mxu0 0
    %4145 = vmatpush1.bf16.msra.mxu0 0
    %4146 = vmatprep.subr.bf16.mxu0 0
    %4147 = vmatpush1.bf16.msra.mxu0 0
    %4148 = vmatprep.subr.bf16.mxu0 0
    %4149 = vmatpush1.bf16.msra.mxu0 0
    %4150 = vmatprep.mubr.bf16.mxu0 0
    %4151 = vmatmul.mubr.bf16.gmra.mrb[0].mxu0 %v3993
    %v4152 = vpop.f32.mrb[0].mxu0
    %v4153 = vadd.f32 %v3990, %v4152
    %v4154 = vpop.f32.mrb[0].mxu0
    %v4155 = vadd.f32 %v3990, %v4154
    %v4156 = vpop.f32.mrb[0].mxu0
    %v4157 = vpop.f32.mrb[0].mxu0
    %4158 = vdwg.mxu0
    %4159 = vmatprep.subr.bf16.mxu0 %v3971
    %4160 = vmatpush1.bf16.msra.mxu0 %v3970
    %4161 = vmatprep.subr.bf16.mxu0 0
    %4162 = vmatpush1.bf16.msra.mxu0 0
    %4163 = vmatprep.subr.bf16.mxu0 0
    %4164 = vmatpush1.bf16.msra.mxu0 0
    %4165 = vmatprep.subr.bf16.mxu0 0
    %4166 = vmatpush1.bf16.msra.mxu0 0
    %4167 = vmatprep.subr.bf16.mxu0 0
    %4168 = vmatpush1.bf16.msra.mxu0 0
    %4169 = vmatprep.subr.bf16.mxu0 0
    %4170 = vmatpush1.bf16.msra.mxu0 0
    %4171 = vmatprep.subr.bf16.mxu0 0
    %4172 = vmatpush1.bf16.msra.mxu0 0
    %4173 = vmatprep.subr.bf16.mxu0 0
    %4174 = vmatpush1.bf16.msra.mxu0 0
    %4175 = vmatprep.subr.bf16.mxu0 0
    %4176 = vmatpush1.bf16.msra.mxu0 0
    %4177 = vmatprep.subr.bf16.mxu0 0
    %4178 = vmatpush1.bf16.msra.mxu0 0
    %4179 = vmatprep.subr.bf16.mxu0 0
    %4180 = vmatpush1.bf16.msra.mxu0 0
    %4181 = vmatprep.subr.bf16.mxu0 0
    %4182 = vmatpush1.bf16.msra.mxu0 0
    %4183 = vmatprep.subr.bf16.mxu0 0
    %4184 = vmatpush1.bf16.msra.mxu0 0
    %4185 = vmatprep.subr.bf16.mxu0 0
    %4186 = vmatpush1.bf16.msra.mxu0 0
    %4187 = vmatprep.subr.bf16.mxu0 0
    %4188 = vmatpush1.bf16.msra.mxu0 0
    %4189 = vmatprep.subr.bf16.mxu0 0
    %4190 = vmatpush1.bf16.msra.mxu0 0
    %4191 = vmatprep.mubr.bf16.mxu0 0
    %4192 = vmatmul.mubr.bf16.gmra.mrb[0].mxu0 %v3993
    %v4193 = vpop.f32.mrb[0].mxu0
    %v4194 = vadd.f32 %v3990, %v4193
    %v4195 = vpop.f32.mrb[0].mxu0
    %v4196 = vadd.f32 %v3990, %v4195
    %v4197 = vpop.f32.mrb[0].mxu0
    %v4198 = vpop.f32.mrb[0].mxu0
    %4199 = vdwg.mxu0
    %4200 = vmatprep.subr.bf16.mxu0 %v3973
    %4201 = vmatpush1.bf16.msra.mxu0 %v3972
    %4202 = vmatprep.subr.bf16.mxu0 0
    %4203 = vmatpush1.bf16.msra.mxu0 0
    %4204 = vmatprep.subr.bf16.mxu0 0
    %4205 = vmatpush1.bf16.msra.mxu0 0
    %4206 = vmatprep.subr.bf16.mxu0 0
    %4207 = vmatpush1.bf16.msra.mxu0 0
    %4208 = vmatprep.subr.bf16.mxu0 0
    %4209 = vmatpush1.bf16.msra.mxu0 0
    %4210 = vmatprep.subr.bf16.mxu0 0
    %4211 = vmatpush1.bf16.msra.mxu0 0
    %4212 = vmatprep.subr.bf16.mxu0 0
    %4213 = vmatpush1.bf16.msra.mxu0 0
    %4214 = vmatprep.subr.bf16.mxu0 0
    %4215 = vmatpush1.bf16.msra.mxu0 0
    %4216 = vmatprep.subr.bf16.mxu0 0
    %4217 = vmatpush1.bf16.msra.mxu0 0
    %4218 = vmatprep.subr.bf16.mxu0 0
    %4219 = vmatpush1.bf16.msra.mxu0 0
    %4220 = vmatprep.subr.bf16.mxu0 0
    %4221 = vmatpush1.bf16.msra.mxu0 0
    %4222 = vmatprep.subr.bf16.mxu0 0
    %4223 = vmatpush1.bf16.msra.mxu0 0
    %4224 = vmatprep.subr.bf16.mxu0 0
    %4225 = vmatpush1.bf16.msra.mxu0 0
    %4226 = vmatprep.subr.bf16.mxu0 0
    %4227 = vmatpush1.bf16.msra.mxu0 0
    %4228 = vmatprep.subr.bf16.mxu0 0
    %4229 = vmatpush1.bf16.msra.mxu0 0
    %4230 = vmatprep.subr.bf16.mxu0 0
    %4231 = vmatpush1.bf16.msra.mxu0 0
    %4232 = vmatprep.mubr.bf16.mxu0 0
    %4233 = vmatmul.mubr.bf16.gmra.mrb[0].mxu0 %v3993
    %v4234 = vpop.f32.mrb[0].mxu0
    %v4235 = vadd.f32 %v3990, %v4234
    %v4236 = vpop.f32.mrb[0].mxu0
    %v4237 = vadd.f32 %v3990, %v4236
    %v4238 = vpop.f32.mrb[0].mxu0
    %v4239 = vpop.f32.mrb[0].mxu0
    %4240 = vdwg.mxu0
    %4241 = vmatprep.subr.bf16.mxu0 %v3975
    %4242 = vmatpush1.bf16.msra.mxu0 %v3974
    %4243 = vmatprep.subr.bf16.mxu0 0
    %4244 = vmatpush1.bf16.msra.mxu0 0
    %4245 = vmatprep.subr.bf16.mxu0 0
    %4246 = vmatpush1.bf16.msra.mxu0 0
    %4247 = vmatprep.subr.bf16.mxu0 0
    %4248 = vmatpush1.bf16.msra.mxu0 0
    %4249 = vmatprep.subr.bf16.mxu0 0
    %4250 = vmatpush1.bf16.msra.mxu0 0
    %4251 = vmatprep.subr.bf16.mxu0 0
    %4252 = vmatpush1.bf16.msra.mxu0 0
    %4253 = vmatprep.subr.bf16.mxu0 0
    %4254 = vmatpush1.bf16.msra.mxu0 0
    %4255 = vmatprep.subr.bf16.mxu0 0
    %4256 = vmatpush1.bf16.msra.mxu0 0
    %4257 = vmatprep.subr.bf16.mxu0 0
    %4258 = vmatpush1.bf16.msra.mxu0 0
    %4259 = vmatprep.subr.bf16.mxu0 0
    %4260 = vmatpush1.bf16.msra.mxu0 0
    %4261 = vmatprep.subr.bf16.mxu0 0
    %4262 = vmatpush1.bf16.msra.mxu0 0
    %4263 = vmatprep.subr.bf16.mxu0 0
    %4264 = vmatpush1.bf16.msra.mxu0 0
    %4265 = vmatprep.subr.bf16.mxu0 0
    %4266 = vmatpush1.bf16.msra.mxu0 0
    %4267 = vmatprep.subr.bf16.mxu0 0
    %4268 = vmatpush1.bf16.msra.mxu0 0
    %4269 = vmatprep.subr.bf16.mxu0 0
    %4270 = vmatpush1.bf16.msra.mxu0 0
    %4271 = vmatprep.subr.bf16.mxu0 0
    %4272 = vmatpush1.bf16.msra.mxu0 0
    %4273 = vmatprep.mubr.bf16.mxu0 0
    %4274 = vmatmul.mubr.bf16.gmra.mrb[0].mxu0 %v3993
    %v4275 = vpop.f32.mrb[0].mxu0
    %v4276 = vadd.f32 %v3990, %v4275
    %v4277 = vpop.f32.mrb[0].mxu0
    %v4278 = vadd.f32 %v3990, %v4277
    %v4279 = vpop.f32.mrb[0].mxu0
    %v4280 = vpop.f32.mrb[0].mxu0
    %4281 = vdwg.mxu0
    %4282 = vmatprep.subr.bf16.mxu0 %v3977
    %4283 = vmatpush1.bf16.msra.mxu0 %v3976
    %4284 = vmatprep.subr.bf16.mxu0 0
    %4285 = vmatpush1.bf16.msra.mxu0 0
    %4286 = vmatprep.subr.bf16.mxu0 0
    %4287 = vmatpush1.bf16.msra.mxu0 0
    %4288 = vmatprep.subr.bf16.mxu0 0
    %4289 = vmatpush1.bf16.msra.mxu0 0
    %4290 = vmatprep.subr.bf16.mxu0 0
    %4291 = vmatpush1.bf16.msra.mxu0 0
    %4292 = vmatprep.subr.bf16.mxu0 0
    %4293 = vmatpush1.bf16.msra.mxu0 0
    %4294 = vmatprep.subr.bf16.mxu0 0
    %4295 = vmatpush1.bf16.msra.mxu0 0
    %4296 = vmatprep.subr.bf16.mxu0 0
    %4297 = vmatpush1.bf16.msra.mxu0 0
    %4298 = vmatprep.subr.bf16.mxu0 0
    %4299 = vmatpush1.bf16.msra.mxu0 0
    %4300 = vmatprep.subr.bf16.mxu0 0
    %4301 = vmatpush1.bf16.msra.mxu0 0
    %4302 = vmatprep.subr.bf16.mxu0 0
    %4303 = vmatpush1.bf16.msra.mxu0 0
    %4304 = vmatprep.subr.bf16.mxu0 0
    %4305 = vmatpush1.bf16.msra.mxu0 0
    %4306 = vmatprep.subr.bf16.mxu0 0
    %4307 = vmatpush1.bf16.msra.mxu0 0
    %4308 = vmatprep.subr.bf16.mxu0 0
    %4309 = vmatpush1.bf16.msra.mxu0 0
    %4310 = vmatprep.subr.bf16.mxu0 0
    %4311 = vmatpush1.bf16.msra.mxu0 0
    %4312 = vmatprep.subr.bf16.mxu0 0
    %4313 = vmatpush1.bf16.msra.mxu0 0
    %4314 = vmatprep.mubr.bf16.mxu0 0
    %4315 = vmatmul.mubr.bf16.gmra.mrb[0].mxu0 %v3993
    %v4316 = vpop.f32.mrb[0].mxu0
    %v4317 = vadd.f32 %v3990, %v4316
    %v4318 = vpop.f32.mrb[0].mxu0
    %v4319 = vadd.f32 %v3990, %v4318
    %v4320 = vpop.f32.mrb[0].mxu0
    %v4321 = vpop.f32.mrb[0].mxu0
    %4322 = vdwg.mxu0
    %4323 = vmatprep.subr.bf16.mxu0 %v3979
    %4324 = vmatpush1.bf16.msra.mxu0 %v3978
    %4325 = vmatprep.subr.bf16.mxu0 0
    %4326 = vmatpush1.bf16.msra.mxu0 0
    %4327 = vmatprep.subr.bf16.mxu0 0
    %4328 = vmatpush1.bf16.msra.mxu0 0
    %4329 = vmatprep.subr.bf16.mxu0 0
    %4330 = vmatpush1.bf16.msra.mxu0 0
    %4331 = vmatprep.subr.bf16.mxu0 0
    %4332 = vmatpush1.bf16.msra.mxu0 0
    %4333 = vmatprep.subr.bf16.mxu0 0
    %4334 = vmatpush1.bf16.msra.mxu0 0
    %4335 = vmatprep.subr.bf16.mxu0 0
    %4336 = vmatpush1.bf16.msra.mxu0 0
    %4337 = vmatprep.subr.bf16.mxu0 0
    %4338 = vmatpush1.bf16.msra.mxu0 0
    %4339 = vmatprep.subr.bf16.mxu0 0
    %4340 = vmatpush1.bf16.msra.mxu0 0
    %4341 = vmatprep.subr.bf16.mxu0 0
    %4342 = vmatpush1.bf16.msra.mxu0 0
    %4343 = vmatprep.subr.bf16.mxu0 0
    %4344 = vmatpush1.bf16.msra.mxu0 0
    %4345 = vmatprep.subr.bf16.mxu0 0
    %4346 = vmatpush1.bf16.msra.mxu0 0
    %4347 = vmatprep.subr.bf16.mxu0 0
    %4348 = vmatpush1.bf16.msra.mxu0 0
    %4349 = vmatprep.subr.bf16.mxu0 0
    %4350 = vmatpush1.bf16.msra.mxu0 0
    %4351 = vmatprep.subr.bf16.mxu0 0
    %4352 = vmatpush1.bf16.msra.mxu0 0
    %4353 = vmatprep.subr.bf16.mxu0 0
    %4354 = vmatpush1.bf16.msra.mxu0 0
    %4355 = vmatprep.mubr.bf16.mxu0 0
    %4356 = vmatmul.mubr.bf16.gmra.mrb[0].mxu0 %v3993
    %v4357 = vpop.f32.mrb[0].mxu0
    %v4358 = vadd.f32 %v3990, %v4357
    %v4359 = vpop.f32.mrb[0].mxu0
    %v4360 = vadd.f32 %v3990, %v4359
    %v4361 = vpop.f32.mrb[0].mxu0
    %v4362 = vpop.f32.mrb[0].mxu0
    %4363 = vdwg.mxu0
    %4364 = vmatprep.subr.bf16.mxu0 %v3981
    %4365 = vmatpush1.bf16.msra.mxu0 %v3980
    %4366 = vmatprep.subr.bf16.mxu0 0
    %4367 = vmatpush1.bf16.msra.mxu0 0
    %4368 = vmatprep.subr.bf16.mxu0 0
    %4369 = vmatpush1.bf16.msra.mxu0 0
    %4370 = vmatprep.subr.bf16.mxu0 0
    %4371 = vmatpush1.bf16.msra.mxu0 0
    %4372 = vmatprep.subr.bf16.mxu0 0
    %4373 = vmatpush1.bf16.msra.mxu0 0
    %4374 = vmatprep.subr.bf16.mxu0 0
    %4375 = vmatpush1.bf16.msra.mxu0 0
    %4376 = vmatprep.subr.bf16.mxu0 0
    %4377 = vmatpush1.bf16.msra.mxu0 0
    %4378 = vmatprep.subr.bf16.mxu0 0
    %4379 = vmatpush1.bf16.msra.mxu0 0
    %4380 = vmatprep.subr.bf16.mxu0 0
    %4381 = vmatpush1.bf16.msra.mxu0 0
    %4382 = vmatprep.subr.bf16.mxu0 0
    %4383 = vmatpush1.bf16.msra.mxu0 0
    %4384 = vmatprep.subr.bf16.mxu0 0
    %4385 = vmatpush1.bf16.msra.mxu0 0
    %4386 = vmatprep.subr.bf16.mxu0 0
    %4387 = vmatpush1.bf16.msra.mxu0 0
    %4388 = vmatprep.subr.bf16.mxu0 0
    %4389 = vmatpush1.bf16.msra.mxu0 0
    %4390 = vmatprep.subr.bf16.mxu0 0
    %4391 = vmatpush1.bf16.msra.mxu0 0
    %4392 = vmatprep.subr.bf16.mxu0 0
    %4393 = vmatpush1.bf16.msra.mxu0 0
    %4394 = vmatprep.subr.bf16.mxu0 0
    %4395 = vmatpush1.bf16.msra.mxu0 0
    %4396 = vmatprep.mubr.bf16.mxu0 0
    %4397 = vmatmul.mubr.bf16.gmra.mrb[0].mxu0 %v3993
    %v4398 = vpop.f32.mrb[0].mxu0
    %v4399 = vadd.f32 %v3990, %v4398
    %v4400 = vpop.f32.mrb[0].mxu0
    %v4401 = vadd.f32 %v3990, %v4400
    %v4402 = vpop.f32.mrb[0].mxu0
    %v4403 = vpop.f32.mrb[0].mxu0
    %4404 = vdwg.mxu0
    %4405 = vmatprep.subr.bf16.mxu0 %v3983
    %4406 = vmatpush1.bf16.msra.mxu0 %v3982
    %4407 = vmatprep.subr.bf16.mxu0 0
    %4408 = vmatpush1.bf16.msra.mxu0 0
    %4409 = vmatprep.subr.bf16.mxu0 0
    %4410 = vmatpush1.bf16.msra.mxu0 0
    %4411 = vmatprep.subr.bf16.mxu0 0
    %4412 = vmatpush1.bf16.msra.mxu0 0
    %4413 = vmatprep.subr.bf16.mxu0 0
    %4414 = vmatpush1.bf16.msra.mxu0 0
    %4415 = vmatprep.subr.bf16.mxu0 0
    %4416 = vmatpush1.bf16.msra.mxu0 0
    %4417 = vmatprep.subr.bf16.mxu0 0
    %4418 = vmatpush1.bf16.msra.mxu0 0
    %4419 = vmatprep.subr.bf16.mxu0 0
    %4420 = vmatpush1.bf16.msra.mxu0 0
    %4421 = vmatprep.subr.bf16.mxu0 0
    %4422 = vmatpush1.bf16.msra.mxu0 0
    %4423 = vmatprep.subr.bf16.mxu0 0
    %4424 = vmatpush1.bf16.msra.mxu0 0
    %4425 = vmatprep.subr.bf16.mxu0 0
    %4426 = vmatpush1.bf16.msra.mxu0 0
    %4427 = vmatprep.subr.bf16.mxu0 0
    %4428 = vmatpush1.bf16.msra.mxu0 0
    %4429 = vmatprep.subr.bf16.mxu0 0
    %4430 = vmatpush1.bf16.msra.mxu0 0
    %4431 = vmatprep.subr.bf16.mxu0 0
    %4432 = vmatpush1.bf16.msra.mxu0 0
    %4433 = vmatprep.subr.bf16.mxu0 0
    %4434 = vmatpush1.bf16.msra.mxu0 0
    %4435 = vmatprep.subr.bf16.mxu0 0
    %4436 = vmatpush1.bf16.msra.mxu0 0
    %4437 = vmatprep.mubr.bf16.mxu0 0
    %4438 = vmatmul.mubr.bf16.gmra.mrb[0].mxu0 %v3993
    %v4439 = vpop.f32.mrb[0].mxu0
    %v4440 = vadd.f32 %v3990, %v4439
    %v4441 = vpop.f32.mrb[0].mxu0
    %v4442 = vadd.f32 %v3990, %v4441
    %v4443 = vpop.f32.mrb[0].mxu0
    %v4444 = vpop.f32.mrb[0].mxu0
    %4445 = vdwg.mxu0
    %4446 = vmatprep.subr.bf16.mxu0 %v3985
    %4447 = vmatpush1.bf16.msra.mxu0 %v3984
    %4448 = vmatprep.subr.bf16.mxu0 0
    %4449 = vmatpush1.bf16.msra.mxu0 0
    %4450 = vmatprep.subr.bf16.mxu0 0
    %4451 = vmatpush1.bf16.msra.mxu0 0
    %4452 = vmatprep.subr.bf16.mxu0 0
    %4453 = vmatpush1.bf16.msra.mxu0 0
    %4454 = vmatprep.subr.bf16.mxu0 0
    %4455 = vmatpush1.bf16.msra.mxu0 0
    %4456 = vmatprep.subr.bf16.mxu0 0
    %4457 = vmatpush1.bf16.msra.mxu0 0
    %4458 = vmatprep.subr.bf16.mxu0 0
    %4459 = vmatpush1.bf16.msra.mxu0 0
    %4460 = vmatprep.subr.bf16.mxu0 0
    %4461 = vmatpush1.bf16.msra.mxu0 0
    %4462 = vmatprep.subr.bf16.mxu0 0
    %4463 = vmatpush1.bf16.msra.mxu0 0
    %4464 = vmatprep.subr.bf16.mxu0 0
    %4465 = vmatpush1.bf16.msra.mxu0 0
    %4466 = vmatprep.subr.bf16.mxu0 0
    %4467 = vmatpush1.bf16.msra.mxu0 0
    %4468 = vmatprep.subr.bf16.mxu0 0
    %4469 = vmatpush1.bf16.msra.mxu0 0
    %4470 = vmatprep.subr.bf16.mxu0 0
    %4471 = vmatpush1.bf16.msra.mxu0 0
    %4472 = vmatprep.subr.bf16.mxu0 0
    %4473 = vmatpush1.bf16.msra.mxu0 0
    %4474 = vmatprep.subr.bf16.mxu0 0
    %4475 = vmatpush1.bf16.msra.mxu0 0
    %4476 = vmatprep.subr.bf16.mxu0 0
    %4477 = vmatpush1.bf16.msra.mxu0 0
    %4478 = vmatprep.mubr.bf16.mxu0 0
    %4479 = vmatmul.mubr.bf16.gmra.mrb[0].mxu0 %v3993
    %v4480 = vpop.f32.mrb[0].mxu0
    %v4481 = vadd.f32 %v3990, %v4480
    %v4482 = vpop.f32.mrb[0].mxu0
    %v4483 = vadd.f32 %v3990, %v4482
    %v4484 = vpop.f32.mrb[0].mxu0
    %v4485 = vpop.f32.mrb[0].mxu0
    %4486 = vdwg.mxu0
    %v4511 = vcombine.low %v3254, %v3255
    %v4512 = vcombine.low %v3256, %v3257
    %v4513 = vcombine.low %v3258, %v3259
    %v4514 = vcombine.low %v3260, %v3261
    %v4516 = vunpack.c.l.s4 1966171168
    %v4517 = vunpack.c.0.s8 %v4516
    %v4518 = vlaneseq
    %v4519 = vshrl.u32 %v4518, 7
    %v4520 = vsub.s32 %v4517, %v4519
    %v4521 = vrot.slane %v4511, %v4520
    %v4523 = vunpack.c.l.s4 1966171168
    %v4524 = vunpack.c.0.s8 %v4523
    %v4525 = vlaneseq
    %v4526 = vshrl.u32 %v4525, 7
    %v4527 = vsub.s32 %v4524, %v4526
    %v4528 = vrot.slane %v4512, %v4527
    %v4530 = vunpack.c.l.s4 1966171168
    %v4531 = vunpack.c.0.s8 %v4530
    %v4532 = vlaneseq
    %v4533 = vshrl.u32 %v4532, 7
    %v4534 = vsub.s32 %v4531, %v4533
    %v4535 = vrot.slane %v4513, %v4534
    %v4537 = vunpack.c.l.s4 1966171168
    %v4538 = vunpack.c.0.s8 %v4537
    %v4539 = vlaneseq
    %v4540 = vshrl.u32 %v4539, 7
    %v4541 = vsub.s32 %v4538, %v4540
    %v4542 = vrot.slane %v4514, %v4541
    %v4543 = vcombine.low %v4521, %v4528
    %v4544 = vcombine.low %v4535, %v4542
    %v4546 = vunpack.c.l.s4 1966171168
    %v4547 = vunpack.c.0.s8 %v4546
    %v4548 = vlaneseq
    %v4549 = vshrl.u32 %v4548, 7
    %v4550 = vsub.s32 %v4547, %v4549
    %v4551 = vrot.slane %v4543, %v4550
    %v4553 = vunpack.c.l.s4 1966171168
    %v4554 = vunpack.c.0.s8 %v4553
    %v4555 = vlaneseq
    %v4556 = vshrl.u32 %v4555, 7
    %v4557 = vsub.s32 %v4554, %v4556
    %v4558 = vrot.slane %v4544, %v4557
    %v4559 = vcombine.low %v4551, %v4558
    %v4560 = vcombine.low %v3262, %v3263
    %v4561 = vcombine.low %v3264, %v3265
    %v4562 = vcombine.low %v3266, %v3267
    %v4563 = vcombine.low %v3268, %v3269
    %v4565 = vunpack.c.l.s4 1966171168
    %v4566 = vunpack.c.0.s8 %v4565
    %v4567 = vlaneseq
    %v4568 = vshrl.u32 %v4567, 7
    %v4569 = vsub.s32 %v4566, %v4568
    %v4570 = vrot.slane %v4560, %v4569
    %v4572 = vunpack.c.l.s4 1966171168
    %v4573 = vunpack.c.0.s8 %v4572
    %v4574 = vlaneseq
    %v4575 = vshrl.u32 %v4574, 7
    %v4576 = vsub.s32 %v4573, %v4575
    %v4577 = vrot.slane %v4561, %v4576
    %v4579 = vunpack.c.l.s4 1966171168
    %v4580 = vunpack.c.0.s8 %v4579
    %v4581 = vlaneseq
    %v4582 = vshrl.u32 %v4581, 7
    %v4583 = vsub.s32 %v4580, %v4582
    %v4584 = vrot.slane %v4562, %v4583
    %v4586 = vunpack.c.l.s4 1966171168
    %v4587 = vunpack.c.0.s8 %v4586
    %v4588 = vlaneseq
    %v4589 = vshrl.u32 %v4588, 7
    %v4590 = vsub.s32 %v4587, %v4589
    %v4591 = vrot.slane %v4563, %v4590
    %v4592 = vcombine.low %v4570, %v4577
    %v4593 = vcombine.low %v4584, %v4591
    %v4595 = vunpack.c.l.s4 1966171168
    %v4596 = vunpack.c.0.s8 %v4595
    %v4597 = vlaneseq
    %v4598 = vshrl.u32 %v4597, 7
    %v4599 = vsub.s32 %v4596, %v4598
    %v4600 = vrot.slane %v4592, %v4599
    %v4602 = vunpack.c.l.s4 1966171168
    %v4603 = vunpack.c.0.s8 %v4602
    %v4604 = vlaneseq
    %v4605 = vshrl.u32 %v4604, 7
    %v4606 = vsub.s32 %v4603, %v4605
    %v4607 = vrot.slane %v4593, %v4606
    %v4608 = vcombine.low %v4600, %v4607
    %v4609 = vcombine.low %v3270, %v3271
    %v4610 = vcombine.low %v3272, %v3273
    %v4611 = vcombine.low %v3274, %v3275
    %v4612 = vcombine.low %v3276, %v3277
    %v4614 = vunpack.c.l.s4 1966171168
    %v4615 = vunpack.c.0.s8 %v4614
    %v4616 = vlaneseq
    %v4617 = vshrl.u32 %v4616, 7
    %v4618 = vsub.s32 %v4615, %v4617
    %v4619 = vrot.slane %v4609, %v4618
    %v4621 = vunpack.c.l.s4 1966171168
    %v4622 = vunpack.c.0.s8 %v4621
    %v4623 = vlaneseq
    %v4624 = vshrl.u32 %v4623, 7
    %v4625 = vsub.s32 %v4622, %v4624
    %v4626 = vrot.slane %v4610, %v4625
    %v4628 = vunpack.c.l.s4 1966171168
    %v4629 = vunpack.c.0.s8 %v4628
    %v4630 = vlaneseq
    %v4631 = vshrl.u32 %v4630, 7
    %v4632 = vsub.s32 %v4629, %v4631
    %v4633 = vrot.slane %v4611, %v4632
    %v4635 = vunpack.c.l.s4 1966171168
    %v4636 = vunpack.c.0.s8 %v4635
    %v4637 = vlaneseq
    %v4638 = vshrl.u32 %v4637, 7
    %v4639 = vsub.s32 %v4636, %v4638
    %v4640 = vrot.slane %v4612, %v4639
    %v4641 = vcombine.low %v4619, %v4626
    %v4642 = vcombine.low %v4633, %v4640
    %v4644 = vunpack.c.l.s4 1966171168
    %v4645 = vunpack.c.0.s8 %v4644
    %v4646 = vlaneseq
    %v4647 = vshrl.u32 %v4646, 7
    %v4648 = vsub.s32 %v4645, %v4647
    %v4649 = vrot.slane %v4641, %v4648
    %v4651 = vunpack.c.l.s4 1966171168
    %v4652 = vunpack.c.0.s8 %v4651
    %v4653 = vlaneseq
    %v4654 = vshrl.u32 %v4653, 7
    %v4655 = vsub.s32 %v4652, %v4654
    %v4656 = vrot.slane %v4642, %v4655
    %v4657 = vcombine.low %v4649, %v4656
    %4661 = vst [vmem:[#allocation5] ss:$4 sm:$0xff] %v4559
    %s4662 = scalar_lea.vmem [#allocation5], 32
    %4663 = vst [vmem:[%s4662] ss:$4 sm:$0xff] %v4608
    %s4664 = scalar_lea.vmem [#allocation5], 64
    %4665 = vst [vmem:[%s4664] ss:$4 sm:$0xff] %v4657
    %v4690 = vcombine.low %v4030, %v4032
    %v4691 = vcombine.low %v4071, %v4073
    %v4692 = vcombine.low %v4112, %v4114
    %v4693 = vcombine.low %v4153, %v4155
    %v4694 = vcombine.low %v4194, %v4196
    %v4695 = vcombine.low %v4235, %v4237
    %v4696 = vcombine.low %v4276, %v4278
    %v4697 = vcombine.low %v4317, %v4319
    %v4698 = vcombine.low %v4358, %v4360
    %v4699 = vcombine.low %v4399, %v4401
    %v4700 = vcombine.low %v4440, %v4442
    %v4701 = vcombine.low %v4481, %v4483
    %v4702 = vrot.slane %v4690, 7
    %v4703 = vrot.slane %v4691, 7
    %v4704 = vrot.slane %v4692, 7
    %v4705 = vrot.slane %v4693, 7
    %v4706 = vrot.slane %v4694, 7
    %v4707 = vrot.slane %v4695, 7
    %v4708 = vrot.slane %v4696, 7
    %v4709 = vrot.slane %v4697, 7
    %v4710 = vrot.slane %v4698, 7
    %v4711 = vrot.slane %v4699, 7
    %v4712 = vrot.slane %v4700, 7
    %v4713 = vrot.slane %v4701, 7
    %4726 = vst [vmem:[#allocation5] sm:$0xee] %v4702
    %4727 = vst [vmem:[#allocation5 + $0x8] sm:$0xee] %v4703
    %4728 = vst [vmem:[#allocation5 + $0x10] sm:$0xee] %v4704
    %4729 = vst [vmem:[#allocation5 + $0x18] sm:$0xee] %v4705
    %4730 = vst [vmem:[#allocation5 + $0x20] sm:$0xee] %v4706
    %4731 = vst [vmem:[#allocation5 + $0x28] sm:$0xee] %v4707
    %4732 = vst [vmem:[#allocation5 + $0x30] sm:$0xee] %v4708
    %4733 = vst [vmem:[#allocation5 + $0x38] sm:$0xee] %v4709
    %4734 = vst [vmem:[#allocation5 + $0x40] sm:$0xee] %v4710
    %4735 = vst [vmem:[#allocation5 + $0x48] sm:$0xee] %v4711
    %4736 = vst [vmem:[#allocation5 + $0x50] sm:$0xee] %v4712
    %4737 = vst [vmem:[#allocation5 + $0x58] sm:$0xee] %v4713
    // Predicated region
    $region38: #{tpu_custom_call.1} parent=1 // pred_check
      _
    $region39: #{tpu_custom_call.1} parent=1 // pred_check_branch
      %4739 = sbr.rel (0) target = $region41
    $region40: #{tpu_custom_call.1} parent=1 // pred_region
      %s4741 = ssub.s32 1536, 1536
      %4742 = vsyncadd [#allocation4], %s4741
      %s4744 = sshll.u32 [#allocation5], 4
      %s4745 = int_to_ptr.vmem [resolvable:$true] %s4744
      %4747 = dma.vmem_to_hbm [thread:$0]  %s4745, 1536, %s8, [#allocation4]
    $region41: #{tpu_custom_call.1} parent=1 // pred_fallthru
      _
    // Predicated region
    $region42: #{tpu_custom_call.1} parent=1 // pred_check
      _
    $region43: #{tpu_custom_call.1} parent=1 // pred_check_branch
      %4749 = sbr.rel (0) target = $region45
    $region44: #{tpu_custom_call.1} parent=1 // pred_region
      %4750 = dma.done [#allocation4], 1536
    $region45: #{tpu_custom_call.1} parent=1 // pred_fallthru
      _
    %4751 = vsyncpa [#allocation3], 1
    %4752 = vsyncpa [#allocation4], 1

</llo_original>
